<compile_context>
chip_gen: v7x
topology: tpu7x:2x2x1
jax: 0.10.0
libtpu: 0.0.40
codegen_flags: <defaults>
</compile_context>

<pallas_src>
import functools

import jax
import jax.numpy as jnp
from jax import lax
from jax.experimental import pallas as pl
from jax.experimental.pallas import tpu as pltpu


# ----------------------------- tiling helpers ------------------------------ #

def _round_up(x, m):
    return ((x + m - 1) // m) * m


# Tile caps chosen so that bf16 LHS/RHS + f32 out/residual/acc, double buffered,
# stay around ~2-3 MB -> safe under the 16/32 MiB scoped-VMEM defaults of
# v5e/v6e/v7x. tn=256 matches the 256-wide MXU on v6e/v7x; multiples of 128
# keep v5e's 128x128 MXU tiles unpadded.
_TM_MAX, _TN_MAX, _TK_MAX = 256, 256, 512


def _pick_tiles(M, K, N):
    tm = min(_TM_MAX, _round_up(M, 16))    # sublane axis (bf16 packs 16 rows/vreg)
    tk = min(_TK_MAX, _round_up(K, 128))   # lane axis of LHS / sublane of RHS
    tn = min(_TN_MAX, _round_up(N, 128))   # lane axis of output (lane-dense stores)
    return tm, tk, tn


# ----------------------------- Pallas kernel ------------------------------- #

def _matmul_fused_kernel(x_ref, w_ref, b_ref, *rest, has_residual, relu_input):
    """out = (relu?(x) @ w) + b (+ residual); f32 accumulation in VMEM scratch."""
    if has_residual:
        r_ref, o_ref, acc_ref = rest
    else:
        o_ref, acc_ref = rest

    k = pl.program_id(2)

    @pl.when(k == 0)
    def _init():
        acc_ref[...] = jnp.zeros_like(acc_ref)

    x = x_ref[...]
    if relu_input:
        # Fused ReLU on the LHS tile: free VPU work under MXU slack.
        x = jnp.maximum(x, jnp.zeros_like(x))
    acc_ref[...] += jnp.dot(x, w_ref[...], preferred_element_type=jnp.float32)

    @pl.when(k == pl.num_programs(2) - 1)
    def _finalize():
        out = acc_ref[...] + b_ref[...]          # f32 epilogue
        if has_residual:
            out = out + r_ref[...]               # fused residual add (f32)
        o_ref[...] = out.astype(o_ref.dtype)


def matmul_bias_fused(x, w, b, residual=None, relu_input=False):
    """x: (M, K), w: (K, N), b: (N,), residual: optional (M, N). Returns (M, N) f32."""
    M, K = x.shape
    Kw, N = w.shape
    assert K == Kw
    tm, tk, tn = _pick_tiles(M, K, N)
    Mp, Kp, Np = _round_up(M, tm), _round_up(K, tk), _round_up(N, tn)

    xp = jnp.pad(x.astype(jnp.bfloat16), ((0, Mp - M), (0, Kp - K)))
    wp = jnp.pad(w.astype(jnp.bfloat16), ((0, Kp - K), (0, Np - N)))
    bp = jnp.pad(b.astype(jnp.float32), (0, Np - N)).reshape(1, Np)

    in_specs = [
        pl.BlockSpec((tm, tk), lambda i, j, k: (i, k)),
        pl.BlockSpec((tk, tn), lambda i, j, k: (k, j)),
        pl.BlockSpec((1, tn), lambda i, j, k: (0, j)),
    ]
    args = [xp, wp, bp]
    if residual is not None:
        rp = jnp.pad(residual.astype(jnp.float32), ((0, Mp - M), (0, Np - N)))
        in_specs.append(pl.BlockSpec((tm, tn), lambda i, j, k: (i, j)))
        args.append(rp)

    bytes_accessed = (xp.size * 2 + wp.size * 2 + bp.size * 4 + Mp * Np * 4
                      + (Mp * Np * 4 if residual is not None else 0))
    kernel = functools.partial(_matmul_fused_kernel,
                               has_residual=residual is not None,
                               relu_input=relu_input)

    out = pl.pallas_call(
        kernel,
        out_shape=jax.ShapeDtypeStruct((Mp, Np), jnp.float32),
        grid_spec=pltpu.PrefetchScalarGridSpec(
            num_scalar_prefetch=0,
            grid=(Mp // tm, Np // tn, Kp // tk),
            in_specs=in_specs,
            out_specs=pl.BlockSpec((tm, tn), lambda i, j, k: (i, j)),
            scratch_shapes=[pltpu.VMEM((tm, tn), jnp.float32)],
        ),
        compiler_params=pltpu.CompilerParams(
            dimension_semantics=("parallel", "parallel", "arbitrary"),
            vmem_limit_bytes=32 * 1024 * 1024,
        ),
        cost_estimate=pl.CostEstimate(
            flops=2 * Mp * Np * Kp,
            transcendentals=0,
            bytes_accessed=int(bytes_accessed)),
    )(*args)
    return out[:M, :N]


# ----------------------------- conv / glue --------------------------------- #

def _im2col(x, kh, kw, stride, pad):
    """x: (B, H, W, C) NHWC -> (B*Ho*Wo, kh*kw*C) patches, row order (kh, kw, C)."""
    B, H, W, C = x.shape
    xp = jnp.pad(x, ((0, 0), (pad, pad), (pad, pad), (0, 0)))
    Ho = (H + 2 * pad - kh) // stride + 1
    Wo = (W + 2 * pad - kw) // stride + 1
    patches = []
    for dy in range(kh):
        for dx in range(kw):
            patches.append(
                xp[:, dy:dy + (Ho - 1) * stride + 1:stride,
                      dx:dx + (Wo - 1) * stride + 1:stride, :])
    cols = jnp.concatenate(patches, axis=-1)          # (B, Ho, Wo, kh*kw*C)
    return cols.reshape(B * Ho * Wo, kh * kw * C), (B, Ho, Wo)


def conv2d(x_nhwc, w2, b, kh, kw, stride, pad, residual=None, relu_input=False):
    """Conv2d (NHWC activations, pre-flattened (kh*kw*Cin, Cout) bf16 weights)."""
    B, H, W, C = x_nhwc.shape
    x_bf = x_nhwc.astype(jnp.bfloat16)   # halve bytes of any materialized im2col
    if kh == 1 and kw == 1 and stride == 1 and pad == 0:
        cols, (Bo, Ho, Wo) = x_bf.reshape(B * H * W, C), (B, H, W)   # no expansion
    else:
        cols, (Bo, Ho, Wo) = _im2col(x_bf, kh, kw, stride, pad)
    r2 = None if residual is None else residual.reshape(Bo * Ho * Wo, -1)
    out = matmul_bias_fused(cols, w2, b, residual=r2, relu_input=relu_input)
    return out.reshape(Bo, Ho, Wo, -1)


def upsample2x_nearest(x_nhwc):
    # out[n, i, j, c] = in[n, i//2, j//2, c]  (== nn.Upsample(scale_factor=2, 'nearest'))
    return jnp.repeat(jnp.repeat(x_nhwc, 2, axis=1), 2, axis=2)


# ----------------------------- parameters ---------------------------------- #

def _init_conv(key, cout, cin, kh, kw):
    kw_, kb_ = jax.random.split(key)
    fan_in = cin * kh * kw
    bound = 1.0 / jnp.sqrt(jnp.float32(fan_in))
    w = jax.random.uniform(kw_, (cout, cin, kh, kw), jnp.float32, -bound, bound)
    b = jax.random.uniform(kb_, (cout,), jnp.float32, -bound, bound)
    return w, b


def init_params(key, c3_size, c4_size, c5_size, feature_size):
    keys = jax.random.split(key, 8)
    p = {}
    p["p5_1_w"], p["p5_1_b"] = _init_conv(keys[0], feature_size, c5_size, 1, 1)
    p["p5_2_w"], p["p5_2_b"] = _init_conv(keys[1], feature_size, feature_size, 3, 3)
    p["p4_1_w"], p["p4_1_b"] = _init_conv(keys[2], feature_size, c4_size, 1, 1)
    p["p4_2_w"], p["p4_2_b"] = _init_conv(keys[3], feature_size, feature_size, 3, 3)
    p["p3_1_w"], p["p3_1_b"] = _init_conv(keys[4], feature_size, c3_size, 1, 1)
    p["p3_2_w"], p["p3_2_b"] = _init_conv(keys[5], feature_size, feature_size, 3, 3)
    p["p6_w"], p["p6_b"] = _init_conv(keys[6], feature_size, c5_size, 3, 3)
    p["p7_2_w"], p["p7_2_b"] = _init_conv(keys[7], feature_size, feature_size, 3, 3)
    return p


def prepare_params(params):
    """Hoisted out of the forward pass: OIHW -> (kh*kw*Cin, Cout) bf16 weights."""
    prep = {}
    for name, val in params.items():
        if name.endswith("_w"):
            cout, cin, kh, kw = val.shape
            prep[name] = (jnp.transpose(val, (2, 3, 1, 0))
                          .reshape(kh * kw * cin, cout).astype(jnp.bfloat16))
        else:
            prep[name] = val.astype(jnp.float32)
    return prep


# ----------------------------- forward pass -------------------------------- #

def pyramid_features_forward(c3, c4, c5, prep):
    """Inputs/outputs NHWC. Mirrors PyramidFeatures.forward exactly."""
    p5_x = conv2d(c5, prep["p5_1_w"], prep["p5_1_b"], 1, 1, 1, 0)
    p5_up = upsample2x_nearest(p5_x)
    p5_out = conv2d(p5_x, prep["p5_2_w"], prep["p5_2_b"], 3, 3, 1, 1)

    # p4_x = p4_1(c4) + upsample(p5_x): residual fused into the 1x1 conv epilogue.
    p4_x = conv2d(c4, prep["p4_1_w"], prep["p4_1_b"], 1, 1, 1, 0, residual=p5_up)
    p4_up = upsample2x_nearest(p4_x)
    p4_out = conv2d(p4_x, prep["p4_2_w"], prep["p4_2_b"], 3, 3, 1, 1)

    # p3_x = p3_1(c3) + upsample(p4_x): residual fused into the 1x1 conv epilogue.
    p3_x = conv2d(c3, prep["p3_1_w"], prep["p3_1_b"], 1, 1, 1, 0, residual=p4_up)
    p3_out = conv2d(p3_x, prep["p3_2_w"], prep["p3_2_b"], 3, 3, 1, 1)

    p6_out = conv2d(c5, prep["p6_w"], prep["p6_b"], 3, 3, 2, 1)
    # p7 = p7_2(relu(p6)): ReLU fused into the matmul (applied to the LHS tile).
    p7_out = conv2d(p6_out, prep["p7_2_w"], prep["p7_2_b"], 3, 3, 2, 1,
                    relu_input=True)

    return [p3_out, p4_out, p5_out, p6_out, p7_out]


# ----------------------------- pure-JAX reference --------------------------- #

def _conv_ref(x, w_oihw, b, stride, pad):
    w_hwio = jnp.transpose(w_oihw, (2, 3, 1, 0))
    y = lax.conv_general_dilated(
        x, w_hwio, window_strides=(stride, stride),
        padding=[(pad, pad), (pad, pad)],
        dimension_numbers=("NHWC", "HWIO", "NHWC"))
    return y + b


def pyramid_features_ref(c3, c4, c5, p):
    p5_x = _conv_ref(c5, p["p5_1_w"], p["p5_1_b"], 1, 0)
    p5_up = upsample2x_nearest(p5_x)
    p5_x = _conv_ref(p5_x, p["p5_2_w"], p["p5_2_b"], 1, 1)
    p4_x = _conv_ref(c4, p["p4_1_w"], p["p4_1_b"], 1, 0)
    p4_x = p5_up + p4_x
    p4_up = upsample2x_nearest(p4_x)
    p4_x = _conv_ref(p4_x, p["p4_2_w"], p["p4_2_b"], 1, 1)
    p3_x = _conv_ref(c3, p["p3_1_w"], p["p3_1_b"], 1, 0)
    p3_x = p3_x + p4_up
    p3_x = _conv_ref(p3_x, p["p3_2_w"], p["p3_2_b"], 1, 1)
    p6_x = _conv_ref(c5, p["p6_w"], p["p6_b"], 2, 1)
    p7_x = jnp.maximum(p6_x, 0.0)
    p7_x = _conv_ref(p7_x, p["p7_2_w"], p["p7_2_b"], 2, 1)
    return [p3_x, p4_x, p5_x, p6_x, p7_x]


# ----------------------------- main ----------------------------------------- #

if __name__ == "__main__":
    key = jax.random.PRNGKey(0)
    k3, k4, k5, kp = jax.random.split(key, 4)

    # Small shapes consistent with an FPN: c3 stride-8, c4 stride-16, c5 stride-32.
    B = 2
    c3_size, c4_size, c5_size, feature_size = 4, 8, 16, 32
    # PyTorch-convention NCHW inputs ...
    c3_nchw = jax.random.normal(k3, (B, c3_size, 16, 16), jnp.float32)
    c4_nchw = jax.random.normal(k4, (B, c4_size, 8, 8), jnp.float32)
    c5_nchw = jax.random.normal(k5, (B, c5_size, 4, 4), jnp.float32)
    # ... transposed to the kernel's NHWC layout (channels on the TPU lane dim).
    c3 = jnp.transpose(c3_nchw, (0, 2, 3, 1))
    c4 = jnp.transpose(c4_nchw, (0, 2, 3, 1))
    c5 = jnp.transpose(c5_nchw, (0, 2, 3, 1))

    params = init_params(kp, c3_size, c4_size, c5_size, feature_size)
    prep = prepare_params(params)   # hoisted weight transform (outside the hot path)

    fwd = jax.jit(pyramid_features_forward)
    outs = fwd(c3, c4, c5, prep)
    outs = jax.block_until_ready(outs)

    expected_shapes = [
        (B, 16, 16, feature_size),  # p3
        (B, 8, 8, feature_size),    # p4
        (B, 4, 4, feature_size),    # p5
        (B, 2, 2, feature_size),    # p6
        (B, 1, 1, feature_size),    # p7
    ]
    for o, s in zip(outs, expected_shapes):
        assert o.shape == s, (o.shape, s)

    # f32 reference; tolerance loosened because the Pallas path uses bf16 MXU
    # operands with f32 accumulation.
    refs = pyramid_features_ref(c3, c4, c5, params)
    for o, r in zip(outs, refs):
        assert jnp.allclose(o, r, atol=3e-2, rtol=3e-2), float(jnp.max(jnp.abs(o - r)))

    print("KERNEL_OK")
</pallas_src>

<mosaic_0001>
module attributes {stable_mosaic.version = 11 : i64} {
  func.func @_matmul_fused_kernel(%arg0: i32, %arg1: i32, %arg2: i32, %arg3: memref<16x256xbf16, #tpu.memory_space<vmem>>, %arg4: memref<256x128xbf16, #tpu.memory_space<vmem>>, %arg5: memref<1x128xf32, #tpu.memory_space<vmem>>, %arg6: memref<16x128xf32, #tpu.memory_space<vmem>>, %arg7: memref<16x128xf32, #tpu.memory_space<vmem>>) attributes {dimension_semantics = [#tpu.dimension_semantics<parallel>, #tpu.dimension_semantics<parallel>, #tpu.dimension_semantics<arbitrary>], iteration_bounds = array<i64: 1, 1, 1>, scalar_prefetch = 0 : i64, scratch_operands = 1 : i64, tpu.core_type = #tpu.core_type<tc>, window_params = [{transform_indices = @transform_0, window_bounds = array<i64: 16, 256>}, {transform_indices = @transform_1, window_bounds = array<i64: 256, 128>}, {transform_indices = @transform_2, window_bounds = array<i64: 1, 128>}, {transform_indices = @transform_3, window_bounds = array<i64: 16, 128>}]} {
    %c0_i32 = arith.constant 0 : i32
    %0 = arith.cmpi eq, %arg2, %c0_i32 : i32
    %1 = arith.extui %0 : i1 to i32
    %c0_i32_0 = arith.constant 0 : i32
    %2 = arith.cmpi ne, %1, %c0_i32_0 : i32
    scf.if %2 {
      %cst_10 = arith.constant 0.000000e+00 : f32
      %12 = vector.broadcast %cst_10 : f32 to vector<16x128xf32>
      %c0_11 = arith.constant 0 : index
      %c0_12 = arith.constant 0 : index
      %13 = vector.load %arg7[%c0_11, %c0_12] : memref<16x128xf32, #tpu.memory_space<vmem>>, vector<16x128xf32>
      tpu.vector_store %arg7[%c0_11, %c0_12], %12 {strides = array<i32>} : memref<16x128xf32, #tpu.memory_space<vmem>>, vector<16x128xf32>,
    } else {
    }
    %c0 = arith.constant 0 : index
    %c0_1 = arith.constant 0 : index
    %3 = vector.load %arg3[%c0, %c0_1] : memref<16x256xbf16, #tpu.memory_space<vmem>>, vector<16x256xbf16>
    %c0_2 = arith.constant 0 : index
    %c0_3 = arith.constant 0 : index
    %4 = vector.load %arg7[%c0_2, %c0_3] : memref<16x128xf32, #tpu.memory_space<vmem>>, vector<16x128xf32>
    %c0_4 = arith.constant 0 : index
    %c0_5 = arith.constant 0 : index
    %5 = vector.load %arg4[%c0_4, %c0_5] : memref<256x128xbf16, #tpu.memory_space<vmem>>, vector<256x128xbf16>
    %cst = arith.constant dense<0.000000e+00> : vector<16x128xf32>
    %6 = tpu.matmul %3, %5, %cst {dimension_numbers = #tpu.dot_dimension_numbers<[1], [0], [0], [1], [0, 0, 1, 1], [], []>} : vector<16x256xbf16>, vector<256x128xbf16>, vector<16x128xf32> -> vector<16x128xf32>
    %7 = arith.addf %4, %6 : vector<16x128xf32>
    %c0_6 = arith.constant 0 : index
    %c0_7 = arith.constant 0 : index
    %8 = vector.load %arg7[%c0_6, %c0_7] : memref<16x128xf32, #tpu.memory_space<vmem>>, vector<16x128xf32>
    tpu.vector_store %arg7[%c0_6, %c0_7], %7 {strides = array<i32>} : memref<16x128xf32, #tpu.memory_space<vmem>>, vector<16x128xf32>,
    %c0_i32_8 = arith.constant 0 : i32
    %9 = arith.cmpi eq, %arg2, %c0_i32_8 : i32
    %10 = arith.extui %9 : i1 to i32
    %c0_i32_9 = arith.constant 0 : i32
    %11 = arith.cmpi ne, %10, %c0_i32_9 : i32
    scf.if %11 {
      %c0_10 = arith.constant 0 : index
      %c0_11 = arith.constant 0 : index
      %12 = vector.load %arg7[%c0_10, %c0_11] : memref<16x128xf32, #tpu.memory_space<vmem>>, vector<16x128xf32>
      %c0_12 = arith.constant 0 : index
      %c0_13 = arith.constant 0 : index
      %13 = vector.load %arg5[%c0_12, %c0_13] : memref<1x128xf32, #tpu.memory_space<vmem>>, vector<1x128xf32>
      %14 = vector.broadcast %13 : vector<1x128xf32> to vector<16x128xf32>
      %15 = arith.addf %12, %14 : vector<16x128xf32>
      %c0_14 = arith.constant 0 : index
      %c0_15 = arith.constant 0 : index
      %16 = vector.load %arg6[%c0_14, %c0_15] : memref<16x128xf32, #tpu.memory_space<vmem>>, vector<16x128xf32>
      tpu.vector_store %arg6[%c0_14, %c0_15], %15 {strides = array<i32>} : memref<16x128xf32, #tpu.memory_space<vmem>>, vector<16x128xf32>,
    } else {
    }
    return
  }
  func.func @transform_0(%arg0: i32, %arg1: i32, %arg2: i32) -> (i32, i32) {
    %c0_i32 = arith.constant 0 : i32
    return %arg0, %arg2 : i32, i32
  }
  func.func @transform_1(%arg0: i32, %arg1: i32, %arg2: i32) -> (i32, i32) {
    %c0_i32 = arith.constant 0 : i32
    return %arg2, %arg1 : i32, i32
  }
  func.func @transform_2(%arg0: i32, %arg1: i32, %arg2: i32) -> (i32, i32) {
    %c0_i32 = arith.constant 0 : i32
    %c0_i32_0 = arith.constant 0 : i32
    return %c0_i32, %arg1 : i32, i32
  }
  func.func @transform_3(%arg0: i32, %arg1: i32, %arg2: i32) -> (i32, i32) {
    %c0_i32 = arith.constant 0 : i32
    return %arg0, %arg1 : i32, i32
  }
}

module attributes {stable_mosaic.version = 11 : i64} {
  func.func @_matmul_fused_kernel(%arg0: i32, %arg1: i32, %arg2: i32, %arg3: memref<16x384xbf16, #tpu.memory_space<vmem>>, %arg4: memref<384x128xbf16, #tpu.memory_space<vmem>>, %arg5: memref<1x128xf32, #tpu.memory_space<vmem>>, %arg6: memref<16x128xf32, #tpu.memory_space<vmem>>, %arg7: memref<16x128xf32, #tpu.memory_space<vmem>>) attributes {dimension_semantics = [#tpu.dimension_semantics<parallel>, #tpu.dimension_semantics<parallel>, #tpu.dimension_semantics<arbitrary>], iteration_bounds = array<i64: 1, 1, 1>, scalar_prefetch = 0 : i64, scratch_operands = 1 : i64, tpu.core_type = #tpu.core_type<tc>, window_params = [{transform_indices = @transform_0, window_bounds = array<i64: 16, 384>}, {transform_indices = @transform_1, window_bounds = array<i64: 384, 128>}, {transform_indices = @transform_2, window_bounds = array<i64: 1, 128>}, {transform_indices = @transform_3, window_bounds = array<i64: 16, 128>}]} {
    %c0_i32 = arith.constant 0 : i32
    %0 = arith.cmpi eq, %arg2, %c0_i32 : i32
    %1 = arith.extui %0 : i1 to i32
    %c0_i32_0 = arith.constant 0 : i32
    %2 = arith.cmpi ne, %1, %c0_i32_0 : i32
    scf.if %2 {
      %cst_11 = arith.constant 0.000000e+00 : f32
      %14 = vector.broadcast %cst_11 : f32 to vector<16x128xf32>
      %c0_12 = arith.constant 0 : index
      %c0_13 = arith.constant 0 : index
      %15 = vector.load %arg7[%c0_12, %c0_13] : memref<16x128xf32, #tpu.memory_space<vmem>>, vector<16x128xf32>
      tpu.vector_store %arg7[%c0_12, %c0_13], %14 {strides = array<i32>} : memref<16x128xf32, #tpu.memory_space<vmem>>, vector<16x128xf32>,
    } else {
    }
    %c0 = arith.constant 0 : index
    %c0_1 = arith.constant 0 : index
    %3 = vector.load %arg3[%c0, %c0_1] : memref<16x384xbf16, #tpu.memory_space<vmem>>, vector<16x384xbf16>
    %cst = arith.constant 0.000000e+00 : bf16
    %4 = vector.broadcast %cst : bf16 to vector<16x384xbf16>
    %5 = arith.maximumf %3, %4 : vector<16x384xbf16>
    %c0_2 = arith.constant 0 : index
    %c0_3 = arith.constant 0 : index
    %6 = vector.load %arg7[%c0_2, %c0_3] : memref<16x128xf32, #tpu.memory_space<vmem>>, vector<16x128xf32>
    %c0_4 = arith.constant 0 : index
    %c0_5 = arith.constant 0 : index
    %7 = vector.load %arg4[%c0_4, %c0_5] : memref<384x128xbf16, #tpu.memory_space<vmem>>, vector<384x128xbf16>
    %cst_6 = arith.constant dense<0.000000e+00> : vector<16x128xf32>
    %8 = tpu.matmul %5, %7, %cst_6 {dimension_numbers = #tpu.dot_dimension_numbers<[1], [0], [0], [1], [0, 0, 1, 1], [], []>} : vector<16x384xbf16>, vector<384x128xbf16>, vector<16x128xf32> -> vector<16x128xf32>
    %9 = arith.addf %6, %8 : vector<16x128xf32>
    %c0_7 = arith.constant 0 : index
    %c0_8 = arith.constant 0 : index
    %10 = vector.load %arg7[%c0_7, %c0_8] : memref<16x128xf32, #tpu.memory_space<vmem>>, vector<16x128xf32>
    tpu.vector_store %arg7[%c0_7, %c0_8], %9 {strides = array<i32>} : memref<16x128xf32, #tpu.memory_space<vmem>>, vector<16x128xf32>,
    %c0_i32_9 = arith.constant 0 : i32
    %11 = arith.cmpi eq, %arg2, %c0_i32_9 : i32
    %12 = arith.extui %11 : i1 to i32
    %c0_i32_10 = arith.constant 0 : i32
    %13 = arith.cmpi ne, %12, %c0_i32_10 : i32
    scf.if %13 {
      %c0_11 = arith.constant 0 : index
      %c0_12 = arith.constant 0 : index
      %14 = vector.load %arg7[%c0_11, %c0_12] : memref<16x128xf32, #tpu.memory_space<vmem>>, vector<16x128xf32>
      %c0_13 = arith.constant 0 : index
      %c0_14 = arith.constant 0 : index
      %15 = vector.load %arg5[%c0_13, %c0_14] : memref<1x128xf32, #tpu.memory_space<vmem>>, vector<1x128xf32>
      %16 = vector.broadcast %15 : vector<1x128xf32> to vector<16x128xf32>
      %17 = arith.addf %14, %16 : vector<16x128xf32>
      %c0_15 = arith.constant 0 : index
      %c0_16 = arith.constant 0 : index
      %18 = vector.load %arg6[%c0_15, %c0_16] : memref<16x128xf32, #tpu.memory_space<vmem>>, vector<16x128xf32>
      tpu.vector_store %arg6[%c0_15, %c0_16], %17 {strides = array<i32>} : memref<16x128xf32, #tpu.memory_space<vmem>>, vector<16x128xf32>,
    } else {
    }
    return
  }
  func.func @transform_0(%arg0: i32, %arg1: i32, %arg2: i32) -> (i32, i32) {
    %c0_i32 = arith.constant 0 : i32
    return %arg0, %arg2 : i32, i32
  }
  func.func @transform_1(%arg0: i32, %arg1: i32, %arg2: i32) -> (i32, i32) {
    %c0_i32 = arith.constant 0 : i32
    return %arg2, %arg1 : i32, i32
  }
  func.func @transform_2(%arg0: i32, %arg1: i32, %arg2: i32) -> (i32, i32) {
    %c0_i32 = arith.constant 0 : i32
    %c0_i32_0 = arith.constant 0 : i32
    return %c0_i32, %arg1 : i32, i32
  }
  func.func @transform_3(%arg0: i32, %arg1: i32, %arg2: i32) -> (i32, i32) {
    %c0_i32 = arith.constant 0 : i32
    return %arg0, %arg1 : i32, i32
  }
}

module attributes {stable_mosaic.version = 11 : i64} {
  func.func @_matmul_fused_kernel(%arg0: i32, %arg1: i32, %arg2: i32, %arg3: memref<32x128xbf16, #tpu.memory_space<vmem>>, %arg4: memref<128x128xbf16, #tpu.memory_space<vmem>>, %arg5: memref<1x128xf32, #tpu.memory_space<vmem>>, %arg6: memref<32x128xf32, #tpu.memory_space<vmem>>, %arg7: memref<32x128xf32, #tpu.memory_space<vmem>>) attributes {dimension_semantics = [#tpu.dimension_semantics<parallel>, #tpu.dimension_semantics<parallel>, #tpu.dimension_semantics<arbitrary>], iteration_bounds = array<i64: 1, 1, 1>, scalar_prefetch = 0 : i64, scratch_operands = 1 : i64, tpu.core_type = #tpu.core_type<tc>, window_params = [{transform_indices = @transform_0, window_bounds = array<i64: 32, 128>}, {transform_indices = @transform_1, window_bounds = array<i64: 128, 128>}, {transform_indices = @transform_2, window_bounds = array<i64: 1, 128>}, {transform_indices = @transform_3, window_bounds = array<i64: 32, 128>}]} {
    %c0_i32 = arith.constant 0 : i32
    %0 = arith.cmpi eq, %arg2, %c0_i32 : i32
    %1 = arith.extui %0 : i1 to i32
    %c0_i32_0 = arith.constant 0 : i32
    %2 = arith.cmpi ne, %1, %c0_i32_0 : i32
    scf.if %2 {
      %cst_10 = arith.constant 0.000000e+00 : f32
      %12 = vector.broadcast %cst_10 : f32 to vector<32x128xf32>
      %c0_11 = arith.constant 0 : index
      %c0_12 = arith.constant 0 : index
      %13 = vector.load %arg7[%c0_11, %c0_12] : memref<32x128xf32, #tpu.memory_space<vmem>>, vector<32x128xf32>
      tpu.vector_store %arg7[%c0_11, %c0_12], %12 {strides = array<i32>} : memref<32x128xf32, #tpu.memory_space<vmem>>, vector<32x128xf32>,
    } else {
    }
    %c0 = arith.constant 0 : index
    %c0_1 = arith.constant 0 : index
    %3 = vector.load %arg3[%c0, %c0_1] : memref<32x128xbf16, #tpu.memory_space<vmem>>, vector<32x128xbf16>
    %c0_2 = arith.constant 0 : index
    %c0_3 = arith.constant 0 : index
    %4 = vector.load %arg7[%c0_2, %c0_3] : memref<32x128xf32, #tpu.memory_space<vmem>>, vector<32x128xf32>
    %c0_4 = arith.constant 0 : index
    %c0_5 = arith.constant 0 : index
    %5 = vector.load %arg4[%c0_4, %c0_5] : memref<128x128xbf16, #tpu.memory_space<vmem>>, vector<128x128xbf16>
    %cst = arith.constant dense<0.000000e+00> : vector<32x128xf32>
    %6 = tpu.matmul %3, %5, %cst {dimension_numbers = #tpu.dot_dimension_numbers<[1], [0], [0], [1], [0, 0, 1, 1], [], []>} : vector<32x128xbf16>, vector<128x128xbf16>, vector<32x128xf32> -> vector<32x128xf32>
    %7 = arith.addf %4, %6 : vector<32x128xf32>
    %c0_6 = arith.constant 0 : index
    %c0_7 = arith.constant 0 : index
    %8 = vector.load %arg7[%c0_6, %c0_7] : memref<32x128xf32, #tpu.memory_space<vmem>>, vector<32x128xf32>
    tpu.vector_store %arg7[%c0_6, %c0_7], %7 {strides = array<i32>} : memref<32x128xf32, #tpu.memory_space<vmem>>, vector<32x128xf32>,
    %c0_i32_8 = arith.constant 0 : i32
    %9 = arith.cmpi eq, %arg2, %c0_i32_8 : i32
    %10 = arith.extui %9 : i1 to i32
    %c0_i32_9 = arith.constant 0 : i32
    %11 = arith.cmpi ne, %10, %c0_i32_9 : i32
    scf.if %11 {
      %c0_10 = arith.constant 0 : index
      %c0_11 = arith.constant 0 : index
      %12 = vector.load %arg7[%c0_10, %c0_11] : memref<32x128xf32, #tpu.memory_space<vmem>>, vector<32x128xf32>
      %c0_12 = arith.constant 0 : index
      %c0_13 = arith.constant 0 : index
      %13 = vector.load %arg5[%c0_12, %c0_13] : memref<1x128xf32, #tpu.memory_space<vmem>>, vector<1x128xf32>
      %14 = vector.broadcast %13 : vector<1x128xf32> to vector<32x128xf32>
      %15 = arith.addf %12, %14 : vector<32x128xf32>
      %c0_14 = arith.constant 0 : index
      %c0_15 = arith.constant 0 : index
      %16 = vector.load %arg6[%c0_14, %c0_15] : memref<32x128xf32, #tpu.memory_space<vmem>>, vector<32x128xf32>
      tpu.vector_store %arg6[%c0_14, %c0_15], %15 {strides = array<i32>} : memref<32x128xf32, #tpu.memory_space<vmem>>, vector<32x128xf32>,
    } else {
    }
    return
  }
  func.func @transform_0(%arg0: i32, %arg1: i32, %arg2: i32) -> (i32, i32) {
    %c0_i32 = arith.constant 0 : i32
    return %arg0, %arg2 : i32, i32
  }
  func.func @transform_1(%arg0: i32, %arg1: i32, %arg2: i32) -> (i32, i32) {
    %c0_i32 = arith.constant 0 : i32
    return %arg2, %arg1 : i32, i32
  }
  func.func @transform_2(%arg0: i32, %arg1: i32, %arg2: i32) -> (i32, i32) {
    %c0_i32 = arith.constant 0 : i32
    %c0_i32_0 = arith.constant 0 : i32
    return %c0_i32, %arg1 : i32, i32
  }
  func.func @transform_3(%arg0: i32, %arg1: i32, %arg2: i32) -> (i32, i32) {
    %c0_i32 = arith.constant 0 : i32
    return %arg0, %arg1 : i32, i32
  }
}

module attributes {stable_mosaic.version = 11 : i64} {
  func.func @_matmul_fused_kernel(%arg0: i32, %arg1: i32, %arg2: i32, %arg3: memref<128x128xbf16, #tpu.memory_space<vmem>>, %arg4: memref<128x128xbf16, #tpu.memory_space<vmem>>, %arg5: memref<1x128xf32, #tpu.memory_space<vmem>>, %arg6: memref<128x128xf32, #tpu.memory_space<vmem>>, %arg7: memref<128x128xf32, #tpu.memory_space<vmem>>, %arg8: memref<128x128xf32, #tpu.memory_space<vmem>>) attributes {dimension_semantics = [#tpu.dimension_semantics<parallel>, #tpu.dimension_semantics<parallel>, #tpu.dimension_semantics<arbitrary>], iteration_bounds = array<i64: 1, 1, 1>, scalar_prefetch = 0 : i64, scratch_operands = 1 : i64, tpu.core_type = #tpu.core_type<tc>, window_params = [{transform_indices = @transform_0, window_bounds = array<i64: 128, 128>}, {transform_indices = @transform_1, window_bounds = array<i64: 128, 128>}, {transform_indices = @transform_2, window_bounds = array<i64: 1, 128>}, {transform_indices = @transform_3, window_bounds = array<i64: 128, 128>}, {transform_indices = @transform_4, window_bounds = array<i64: 128, 128>}]} {
    %c0_i32 = arith.constant 0 : i32
    %0 = arith.cmpi eq, %arg2, %c0_i32 : i32
    %1 = arith.extui %0 : i1 to i32
    %c0_i32_0 = arith.constant 0 : i32
    %2 = arith.cmpi ne, %1, %c0_i32_0 : i32
    scf.if %2 {
      %cst_10 = arith.constant 0.000000e+00 : f32
      %12 = vector.broadcast %cst_10 : f32 to vector<128x128xf32>
      %c0_11 = arith.constant 0 : index
      %c0_12 = arith.constant 0 : index
      %13 = vector.load %arg8[%c0_11, %c0_12] : memref<128x128xf32, #tpu.memory_space<vmem>>, vector<128x128xf32>
      tpu.vector_store %arg8[%c0_11, %c0_12], %12 {strides = array<i32>} : memref<128x128xf32, #tpu.memory_space<vmem>>, vector<128x128xf32>,
    } else {
    }
    %c0 = arith.constant 0 : index
    %c0_1 = arith.constant 0 : index
    %3 = vector.load %arg3[%c0, %c0_1] : memref<128x128xbf16, #tpu.memory_space<vmem>>, vector<128x128xbf16>
    %c0_2 = arith.constant 0 : index
    %c0_3 = arith.constant 0 : index
    %4 = vector.load %arg8[%c0_2, %c0_3] : memref<128x128xf32, #tpu.memory_space<vmem>>, vector<128x128xf32>
    %c0_4 = arith.constant 0 : index
    %c0_5 = arith.constant 0 : index
    %5 = vector.load %arg4[%c0_4, %c0_5] : memref<128x128xbf16, #tpu.memory_space<vmem>>, vector<128x128xbf16>
    %cst = arith.constant dense<0.000000e+00> : vector<128x128xf32>
    %6 = tpu.matmul %3, %5, %cst {dimension_numbers = #tpu.dot_dimension_numbers<[1], [0], [0], [1], [0, 0, 1, 1], [], []>} : vector<128x128xbf16>, vector<128x128xbf16>, vector<128x128xf32> -> vector<128x128xf32>
    %7 = arith.addf %4, %6 : vector<128x128xf32>
    %c0_6 = arith.constant 0 : index
    %c0_7 = arith.constant 0 : index
    %8 = vector.load %arg8[%c0_6, %c0_7] : memref<128x128xf32, #tpu.memory_space<vmem>>, vector<128x128xf32>
    tpu.vector_store %arg8[%c0_6, %c0_7], %7 {strides = array<i32>} : memref<128x128xf32, #tpu.memory_space<vmem>>, vector<128x128xf32>,
    %c0_i32_8 = arith.constant 0 : i32
    %9 = arith.cmpi eq, %arg2, %c0_i32_8 : i32
    %10 = arith.extui %9 : i1 to i32
    %c0_i32_9 = arith.constant 0 : i32
    %11 = arith.cmpi ne, %10, %c0_i32_9 : i32
    scf.if %11 {
      %c0_10 = arith.constant 0 : index
      %c0_11 = arith.constant 0 : index
      %12 = vector.load %arg8[%c0_10, %c0_11] : memref<128x128xf32, #tpu.memory_space<vmem>>, vector<128x128xf32>
      %c0_12 = arith.constant 0 : index
      %c0_13 = arith.constant 0 : index
      %13 = vector.load %arg5[%c0_12, %c0_13] : memref<1x128xf32, #tpu.memory_space<vmem>>, vector<1x128xf32>
      %14 = vector.broadcast %13 : vector<1x128xf32> to vector<128x128xf32>
      %15 = arith.addf %12, %14 : vector<128x128xf32>
      %c0_14 = arith.constant 0 : index
      %c0_15 = arith.constant 0 : index
      %16 = vector.load %arg6[%c0_14, %c0_15] : memref<128x128xf32, #tpu.memory_space<vmem>>, vector<128x128xf32>
      %17 = arith.addf %15, %16 : vector<128x128xf32>
      %c0_16 = arith.constant 0 : index
      %c0_17 = arith.constant 0 : index
      %18 = vector.load %arg7[%c0_16, %c0_17] : memref<128x128xf32, #tpu.memory_space<vmem>>, vector<128x128xf32>
      tpu.vector_store %arg7[%c0_16, %c0_17], %17 {strides = array<i32>} : memref<128x128xf32, #tpu.memory_space<vmem>>, vector<128x128xf32>,
    } else {
    }
    return
  }
  func.func @transform_0(%arg0: i32, %arg1: i32, %arg2: i32) -> (i32, i32) {
    %c0_i32 = arith.constant 0 : i32
    return %arg0, %arg2 : i32, i32
  }
  func.func @transform_1(%arg0: i32, %arg1: i32, %arg2: i32) -> (i32, i32) {
    %c0_i32 = arith.constant 0 : i32
    return %arg2, %arg1 : i32, i32
  }
  func.func @transform_2(%arg0: i32, %arg1: i32, %arg2: i32) -> (i32, i32) {
    %c0_i32 = arith.constant 0 : i32
    %c0_i32_0 = arith.constant 0 : i32
    return %c0_i32, %arg1 : i32, i32
  }
  func.func @transform_3(%arg0: i32, %arg1: i32, %arg2: i32) -> (i32, i32) {
    %c0_i32 = arith.constant 0 : i32
    return %arg0, %arg1 : i32, i32
  }
  func.func @transform_4(%arg0: i32, %arg1: i32, %arg2: i32) -> (i32, i32) {
    %c0_i32 = arith.constant 0 : i32
    return %arg0, %arg1 : i32, i32
  }
}

module attributes {stable_mosaic.version = 11 : i64} {
  func.func @_matmul_fused_kernel(%arg0: i32, %arg1: i32, %arg2: i32, %arg3: memref<128x384xbf16, #tpu.memory_space<vmem>>, %arg4: memref<384x128xbf16, #tpu.memory_space<vmem>>, %arg5: memref<1x128xf32, #tpu.memory_space<vmem>>, %arg6: memref<128x128xf32, #tpu.memory_space<vmem>>, %arg7: memref<128x128xf32, #tpu.memory_space<vmem>>) attributes {dimension_semantics = [#tpu.dimension_semantics<parallel>, #tpu.dimension_semantics<parallel>, #tpu.dimension_semantics<arbitrary>], iteration_bounds = array<i64: 1, 1, 1>, scalar_prefetch = 0 : i64, scratch_operands = 1 : i64, tpu.core_type = #tpu.core_type<tc>, window_params = [{transform_indices = @transform_0, window_bounds = array<i64: 128, 384>}, {transform_indices = @transform_1, window_bounds = array<i64: 384, 128>}, {transform_indices = @transform_2, window_bounds = array<i64: 1, 128>}, {transform_indices = @transform_3, window_bounds = array<i64: 128, 128>}]} {
    %c0_i32 = arith.constant 0 : i32
    %0 = arith.cmpi eq, %arg2, %c0_i32 : i32
    %1 = arith.extui %0 : i1 to i32
    %c0_i32_0 = arith.constant 0 : i32
    %2 = arith.cmpi ne, %1, %c0_i32_0 : i32
    scf.if %2 {
      %cst_10 = arith.constant 0.000000e+00 : f32
      %12 = vector.broadcast %cst_10 : f32 to vector<128x128xf32>
      %c0_11 = arith.constant 0 : index
      %c0_12 = arith.constant 0 : index
      %13 = vector.load %arg7[%c0_11, %c0_12] : memref<128x128xf32, #tpu.memory_space<vmem>>, vector<128x128xf32>
      tpu.vector_store %arg7[%c0_11, %c0_12], %12 {strides = array<i32>} : memref<128x128xf32, #tpu.memory_space<vmem>>, vector<128x128xf32>,
    } else {
    }
    %c0 = arith.constant 0 : index
    %c0_1 = arith.constant 0 : index
    %3 = vector.load %arg3[%c0, %c0_1] : memref<128x384xbf16, #tpu.memory_space<vmem>>, vector<128x384xbf16>
    %c0_2 = arith.constant 0 : index
    %c0_3 = arith.constant 0 : index
    %4 = vector.load %arg7[%c0_2, %c0_3] : memref<128x128xf32, #tpu.memory_space<vmem>>, vector<128x128xf32>
    %c0_4 = arith.constant 0 : index
    %c0_5 = arith.constant 0 : index
    %5 = vector.load %arg4[%c0_4, %c0_5] : memref<384x128xbf16, #tpu.memory_space<vmem>>, vector<384x128xbf16>
    %cst = arith.constant dense<0.000000e+00> : vector<128x128xf32>
    %6 = tpu.matmul %3, %5, %cst {dimension_numbers = #tpu.dot_dimension_numbers<[1], [0], [0], [1], [0, 0, 1, 1], [], []>} : vector<128x384xbf16>, vector<384x128xbf16>, vector<128x128xf32> -> vector<128x128xf32>
    %7 = arith.addf %4, %6 : vector<128x128xf32>
    %c0_6 = arith.constant 0 : index
    %c0_7 = arith.constant 0 : index
    %8 = vector.load %arg7[%c0_6, %c0_7] : memref<128x128xf32, #tpu.memory_space<vmem>>, vector<128x128xf32>
    tpu.vector_store %arg7[%c0_6, %c0_7], %7 {strides = array<i32>} : memref<128x128xf32, #tpu.memory_space<vmem>>, vector<128x128xf32>,
    %c0_i32_8 = arith.constant 0 : i32
    %9 = arith.cmpi eq, %arg2, %c0_i32_8 : i32
    %10 = arith.extui %9 : i1 to i32
    %c0_i32_9 = arith.constant 0 : i32
    %11 = arith.cmpi ne, %10, %c0_i32_9 : i32
    scf.if %11 {
      %c0_10 = arith.constant 0 : index
      %c0_11 = arith.constant 0 : index
      %12 = vector.load %arg7[%c0_10, %c0_11] : memref<128x128xf32, #tpu.memory_space<vmem>>, vector<128x128xf32>
      %c0_12 = arith.constant 0 : index
      %c0_13 = arith.constant 0 : index
      %13 = vector.load %arg5[%c0_12, %c0_13] : memref<1x128xf32, #tpu.memory_space<vmem>>, vector<1x128xf32>
      %14 = vector.broadcast %13 : vector<1x128xf32> to vector<128x128xf32>
      %15 = arith.addf %12, %14 : vector<128x128xf32>
      %c0_14 = arith.constant 0 : index
      %c0_15 = arith.constant 0 : index
      %16 = vector.load %arg6[%c0_14, %c0_15] : memref<128x128xf32, #tpu.memory_space<vmem>>, vector<128x128xf32>
      tpu.vector_store %arg6[%c0_14, %c0_15], %15 {strides = array<i32>} : memref<128x128xf32, #tpu.memory_space<vmem>>, vector<128x128xf32>,
    } else {
    }
    return
  }
  func.func @transform_0(%arg0: i32, %arg1: i32, %arg2: i32) -> (i32, i32) {
    %c0_i32 = arith.constant 0 : i32
    return %arg0, %arg2 : i32, i32
  }
  func.func @transform_1(%arg0: i32, %arg1: i32, %arg2: i32) -> (i32, i32) {
    %c0_i32 = arith.constant 0 : i32
    return %arg2, %arg1 : i32, i32
  }
  func.func @transform_2(%arg0: i32, %arg1: i32, %arg2: i32) -> (i32, i32) {
    %c0_i32 = arith.constant 0 : i32
    %c0_i32_0 = arith.constant 0 : i32
    return %c0_i32, %arg1 : i32, i32
  }
  func.func @transform_3(%arg0: i32, %arg1: i32, %arg2: i32) -> (i32, i32) {
    %c0_i32 = arith.constant 0 : i32
    return %arg0, %arg1 : i32, i32
  }
}

module attributes {stable_mosaic.version = 11 : i64} {
  func.func @_matmul_fused_kernel(%arg0: i32, %arg1: i32, %arg2: i32, %arg3: memref<256x128xbf16, #tpu.memory_space<vmem>>, %arg4: memref<128x128xbf16, #tpu.memory_space<vmem>>, %arg5: memref<1x128xf32, #tpu.memory_space<vmem>>, %arg6: memref<256x128xf32, #tpu.memory_space<vmem>>, %arg7: memref<256x128xf32, #tpu.memory_space<vmem>>, %arg8: memref<256x128xf32, #tpu.memory_space<vmem>>) attributes {dimension_semantics = [#tpu.dimension_semantics<parallel>, #tpu.dimension_semantics<parallel>, #tpu.dimension_semantics<arbitrary>], iteration_bounds = array<i64: 2, 1, 1>, scalar_prefetch = 0 : i64, scratch_operands = 1 : i64, tpu.core_type = #tpu.core_type<tc>, window_params = [{transform_indices = @transform_0, window_bounds = array<i64: 256, 128>}, {transform_indices = @transform_1, window_bounds = array<i64: 128, 128>}, {transform_indices = @transform_2, window_bounds = array<i64: 1, 128>}, {transform_indices = @transform_3, window_bounds = array<i64: 256, 128>}, {transform_indices = @transform_4, window_bounds = array<i64: 256, 128>}]} {
    %c0_i32 = arith.constant 0 : i32
    %0 = arith.cmpi eq, %arg2, %c0_i32 : i32
    %1 = arith.extui %0 : i1 to i32
    %c0_i32_0 = arith.constant 0 : i32
    %2 = arith.cmpi ne, %1, %c0_i32_0 : i32
    scf.if %2 {
      %cst_10 = arith.constant 0.000000e+00 : f32
      %12 = vector.broadcast %cst_10 : f32 to vector<256x128xf32>
      %c0_11 = arith.constant 0 : index
      %c0_12 = arith.constant 0 : index
      %13 = vector.load %arg8[%c0_11, %c0_12] : memref<256x128xf32, #tpu.memory_space<vmem>>, vector<256x128xf32>
      tpu.vector_store %arg8[%c0_11, %c0_12], %12 {strides = array<i32>} : memref<256x128xf32, #tpu.memory_space<vmem>>, vector<256x128xf32>,
    } else {
    }
    %c0 = arith.constant 0 : index
    %c0_1 = arith.constant 0 : index
    %3 = vector.load %arg3[%c0, %c0_1] : memref<256x128xbf16, #tpu.memory_space<vmem>>, vector<256x128xbf16>
    %c0_2 = arith.constant 0 : index
    %c0_3 = arith.constant 0 : index
    %4 = vector.load %arg8[%c0_2, %c0_3] : memref<256x128xf32, #tpu.memory_space<vmem>>, vector<256x128xf32>
    %c0_4 = arith.constant 0 : index
    %c0_5 = arith.constant 0 : index
    %5 = vector.load %arg4[%c0_4, %c0_5] : memref<128x128xbf16, #tpu.memory_space<vmem>>, vector<128x128xbf16>
    %cst = arith.constant dense<0.000000e+00> : vector<256x128xf32>
    %6 = tpu.matmul %3, %5, %cst {dimension_numbers = #tpu.dot_dimension_numbers<[1], [0], [0], [1], [0, 0, 1, 1], [], []>} : vector<256x128xbf16>, vector<128x128xbf16>, vector<256x128xf32> -> vector<256x128xf32>
    %7 = arith.addf %4, %6 : vector<256x128xf32>
    %c0_6 = arith.constant 0 : index
    %c0_7 = arith.constant 0 : index
    %8 = vector.load %arg8[%c0_6, %c0_7] : memref<256x128xf32, #tpu.memory_space<vmem>>, vector<256x128xf32>
    tpu.vector_store %arg8[%c0_6, %c0_7], %7 {strides = array<i32>} : memref<256x128xf32, #tpu.memory_space<vmem>>, vector<256x128xf32>,
    %c0_i32_8 = arith.constant 0 : i32
    %9 = arith.cmpi eq, %arg2, %c0_i32_8 : i32
    %10 = arith.extui %9 : i1 to i32
    %c0_i32_9 = arith.constant 0 : i32
    %11 = arith.cmpi ne, %10, %c0_i32_9 : i32
    scf.if %11 {
      %c0_10 = arith.constant 0 : index
      %c0_11 = arith.constant 0 : index
      %12 = vector.load %arg8[%c0_10, %c0_11] : memref<256x128xf32, #tpu.memory_space<vmem>>, vector<256x128xf32>
      %c0_12 = arith.constant 0 : index
      %c0_13 = arith.constant 0 : index
      %13 = vector.load %arg5[%c0_12, %c0_13] : memref<1x128xf32, #tpu.memory_space<vmem>>, vector<1x128xf32>
      %14 = vector.broadcast %13 : vector<1x128xf32> to vector<256x128xf32>
      %15 = arith.addf %12, %14 : vector<256x128xf32>
      %c0_14 = arith.constant 0 : index
      %c0_15 = arith.constant 0 : index
      %16 = vector.load %arg6[%c0_14, %c0_15] : memref<256x128xf32, #tpu.memory_space<vmem>>, vector<256x128xf32>
      %17 = arith.addf %15, %16 : vector<256x128xf32>
      %c0_16 = arith.constant 0 : index
      %c0_17 = arith.constant 0 : index
      %18 = vector.load %arg7[%c0_16, %c0_17] : memref<256x128xf32, #tpu.memory_space<vmem>>, vector<256x128xf32>
      tpu.vector_store %arg7[%c0_16, %c0_17], %17 {strides = array<i32>} : memref<256x128xf32, #tpu.memory_space<vmem>>, vector<256x128xf32>,
    } else {
    }
    return
  }
  func.func @transform_0(%arg0: i32, %arg1: i32, %arg2: i32) -> (i32, i32) {
    %c0_i32 = arith.constant 0 : i32
    return %arg0, %arg2 : i32, i32
  }
  func.func @transform_1(%arg0: i32, %arg1: i32, %arg2: i32) -> (i32, i32) {
    %c0_i32 = arith.constant 0 : i32
    return %arg2, %arg1 : i32, i32
  }
  func.func @transform_2(%arg0: i32, %arg1: i32, %arg2: i32) -> (i32, i32) {
    %c0_i32 = arith.constant 0 : i32
    %c0_i32_0 = arith.constant 0 : i32
    return %c0_i32, %arg1 : i32, i32
  }
  func.func @transform_3(%arg0: i32, %arg1: i32, %arg2: i32) -> (i32, i32) {
    %c0_i32 = arith.constant 0 : i32
    return %arg0, %arg1 : i32, i32
  }
  func.func @transform_4(%arg0: i32, %arg1: i32, %arg2: i32) -> (i32, i32) {
    %c0_i32 = arith.constant 0 : i32
    return %arg0, %arg1 : i32, i32
  }
}

module attributes {stable_mosaic.version = 11 : i64} {
  func.func @_matmul_fused_kernel(%arg0: i32, %arg1: i32, %arg2: i32, %arg3: memref<256x384xbf16, #tpu.memory_space<vmem>>, %arg4: memref<384x128xbf16, #tpu.memory_space<vmem>>, %arg5: memref<1x128xf32, #tpu.memory_space<vmem>>, %arg6: memref<256x128xf32, #tpu.memory_space<vmem>>, %arg7: memref<256x128xf32, #tpu.memory_space<vmem>>) attributes {dimension_semantics = [#tpu.dimension_semantics<parallel>, #tpu.dimension_semantics<parallel>, #tpu.dimension_semantics<arbitrary>], iteration_bounds = array<i64: 2, 1, 1>, scalar_prefetch = 0 : i64, scratch_operands = 1 : i64, tpu.core_type = #tpu.core_type<tc>, window_params = [{transform_indices = @transform_0, window_bounds = array<i64: 256, 384>}, {transform_indices = @transform_1, window_bounds = array<i64: 384, 128>}, {transform_indices = @transform_2, window_bounds = array<i64: 1, 128>}, {transform_indices = @transform_3, window_bounds = array<i64: 256, 128>}]} {
    %c0_i32 = arith.constant 0 : i32
    %0 = arith.cmpi eq, %arg2, %c0_i32 : i32
    %1 = arith.extui %0 : i1 to i32
    %c0_i32_0 = arith.constant 0 : i32
    %2 = arith.cmpi ne, %1, %c0_i32_0 : i32
    scf.if %2 {
      %cst_10 = arith.constant 0.000000e+00 : f32
      %12 = vector.broadcast %cst_10 : f32 to vector<256x128xf32>
      %c0_11 = arith.constant 0 : index
      %c0_12 = arith.constant 0 : index
      %13 = vector.load %arg7[%c0_11, %c0_12] : memref<256x128xf32, #tpu.memory_space<vmem>>, vector<256x128xf32>
      tpu.vector_store %arg7[%c0_11, %c0_12], %12 {strides = array<i32>} : memref<256x128xf32, #tpu.memory_space<vmem>>, vector<256x128xf32>,
    } else {
    }
    %c0 = arith.constant 0 : index
    %c0_1 = arith.constant 0 : index
    %3 = vector.load %arg3[%c0, %c0_1] : memref<256x384xbf16, #tpu.memory_space<vmem>>, vector<256x384xbf16>
    %c0_2 = arith.constant 0 : index
    %c0_3 = arith.constant 0 : index
    %4 = vector.load %arg7[%c0_2, %c0_3] : memref<256x128xf32, #tpu.memory_space<vmem>>, vector<256x128xf32>
    %c0_4 = arith.constant 0 : index
    %c0_5 = arith.constant 0 : index
    %5 = vector.load %arg4[%c0_4, %c0_5] : memref<384x128xbf16, #tpu.memory_space<vmem>>, vector<384x128xbf16>
    %cst = arith.constant dense<0.000000e+00> : vector<256x128xf32>
    %6 = tpu.matmul %3, %5, %cst {dimension_numbers = #tpu.dot_dimension_numbers<[1], [0], [0], [1], [0, 0, 1, 1], [], []>} : vector<256x384xbf16>, vector<384x128xbf16>, vector<256x128xf32> -> vector<256x128xf32>
    %7 = arith.addf %4, %6 : vector<256x128xf32>
    %c0_6 = arith.constant 0 : index
    %c0_7 = arith.constant 0 : index
    %8 = vector.load %arg7[%c0_6, %c0_7] : memref<256x128xf32, #tpu.memory_space<vmem>>, vector<256x128xf32>
    tpu.vector_store %arg7[%c0_6, %c0_7], %7 {strides = array<i32>} : memref<256x128xf32, #tpu.memory_space<vmem>>, vector<256x128xf32>,
    %c0_i32_8 = arith.constant 0 : i32
    %9 = arith.cmpi eq, %arg2, %c0_i32_8 : i32
    %10 = arith.extui %9 : i1 to i32
    %c0_i32_9 = arith.constant 0 : i32
    %11 = arith.cmpi ne, %10, %c0_i32_9 : i32
    scf.if %11 {
      %c0_10 = arith.constant 0 : index
      %c0_11 = arith.constant 0 : index
      %12 = vector.load %arg7[%c0_10, %c0_11] : memref<256x128xf32, #tpu.memory_space<vmem>>, vector<256x128xf32>
      %c0_12 = arith.constant 0 : index
      %c0_13 = arith.constant 0 : index
      %13 = vector.load %arg5[%c0_12, %c0_13] : memref<1x128xf32, #tpu.memory_space<vmem>>, vector<1x128xf32>
      %14 = vector.broadcast %13 : vector<1x128xf32> to vector<256x128xf32>
      %15 = arith.addf %12, %14 : vector<256x128xf32>
      %c0_14 = arith.constant 0 : index
      %c0_15 = arith.constant 0 : index
      %16 = vector.load %arg6[%c0_14, %c0_15] : memref<256x128xf32, #tpu.memory_space<vmem>>, vector<256x128xf32>
      tpu.vector_store %arg6[%c0_14, %c0_15], %15 {strides = array<i32>} : memref<256x128xf32, #tpu.memory_space<vmem>>, vector<256x128xf32>,
    } else {
    }
    return
  }
  func.func @transform_0(%arg0: i32, %arg1: i32, %arg2: i32) -> (i32, i32) {
    %c0_i32 = arith.constant 0 : i32
    return %arg0, %arg2 : i32, i32
  }
  func.func @transform_1(%arg0: i32, %arg1: i32, %arg2: i32) -> (i32, i32) {
    %c0_i32 = arith.constant 0 : i32
    return %arg2, %arg1 : i32, i32
  }
  func.func @transform_2(%arg0: i32, %arg1: i32, %arg2: i32) -> (i32, i32) {
    %c0_i32 = arith.constant 0 : i32
    %c0_i32_0 = arith.constant 0 : i32
    return %c0_i32, %arg1 : i32, i32
  }
  func.func @transform_3(%arg0: i32, %arg1: i32, %arg2: i32) -> (i32, i32) {
    %c0_i32 = arith.constant 0 : i32
    return %arg0, %arg1 : i32, i32
  }
}

module attributes {stable_mosaic.version = 11 : i64} {
  func.func @_matmul_fused_kernel(%arg0: i32, %arg1: i32, %arg2: i32, %arg3: memref<32x384xbf16, #tpu.memory_space<vmem>>, %arg4: memref<384x128xbf16, #tpu.memory_space<vmem>>, %arg5: memref<1x128xf32, #tpu.memory_space<vmem>>, %arg6: memref<32x128xf32, #tpu.memory_space<vmem>>, %arg7: memref<32x128xf32, #tpu.memory_space<vmem>>) attributes {dimension_semantics = [#tpu.dimension_semantics<parallel>, #tpu.dimension_semantics<parallel>, #tpu.dimension_semantics<arbitrary>], iteration_bounds = array<i64: 1, 1, 1>, scalar_prefetch = 0 : i64, scratch_operands = 1 : i64, tpu.core_type = #tpu.core_type<tc>, window_params = [{transform_indices = @transform_0, window_bounds = array<i64: 32, 384>}, {transform_indices = @transform_1, window_bounds = array<i64: 384, 128>}, {transform_indices = @transform_2, window_bounds = array<i64: 1, 128>}, {transform_indices = @transform_3, window_bounds = array<i64: 32, 128>}]} {
    %c0_i32 = arith.constant 0 : i32
    %0 = arith.cmpi eq, %arg2, %c0_i32 : i32
    %1 = arith.extui %0 : i1 to i32
    %c0_i32_0 = arith.constant 0 : i32
    %2 = arith.cmpi ne, %1, %c0_i32_0 : i32
    scf.if %2 {
      %cst_10 = arith.constant 0.000000e+00 : f32
      %12 = vector.broadcast %cst_10 : f32 to vector<32x128xf32>
      %c0_11 = arith.constant 0 : index
      %c0_12 = arith.constant 0 : index
      %13 = vector.load %arg7[%c0_11, %c0_12] : memref<32x128xf32, #tpu.memory_space<vmem>>, vector<32x128xf32>
      tpu.vector_store %arg7[%c0_11, %c0_12], %12 {strides = array<i32>} : memref<32x128xf32, #tpu.memory_space<vmem>>, vector<32x128xf32>,
    } else {
    }
    %c0 = arith.constant 0 : index
    %c0_1 = arith.constant 0 : index
    %3 = vector.load %arg3[%c0, %c0_1] : memref<32x384xbf16, #tpu.memory_space<vmem>>, vector<32x384xbf16>
    %c0_2 = arith.constant 0 : index
    %c0_3 = arith.constant 0 : index
    %4 = vector.load %arg7[%c0_2, %c0_3] : memref<32x128xf32, #tpu.memory_space<vmem>>, vector<32x128xf32>
    %c0_4 = arith.constant 0 : index
    %c0_5 = arith.constant 0 : index
    %5 = vector.load %arg4[%c0_4, %c0_5] : memref<384x128xbf16, #tpu.memory_space<vmem>>, vector<384x128xbf16>
    %cst = arith.constant dense<0.000000e+00> : vector<32x128xf32>
    %6 = tpu.matmul %3, %5, %cst {dimension_numbers = #tpu.dot_dimension_numbers<[1], [0], [0], [1], [0, 0, 1, 1], [], []>} : vector<32x384xbf16>, vector<384x128xbf16>, vector<32x128xf32> -> vector<32x128xf32>
    %7 = arith.addf %4, %6 : vector<32x128xf32>
    %c0_6 = arith.constant 0 : index
    %c0_7 = arith.constant 0 : index
    %8 = vector.load %arg7[%c0_6, %c0_7] : memref<32x128xf32, #tpu.memory_space<vmem>>, vector<32x128xf32>
    tpu.vector_store %arg7[%c0_6, %c0_7], %7 {strides = array<i32>} : memref<32x128xf32, #tpu.memory_space<vmem>>, vector<32x128xf32>,
    %c0_i32_8 = arith.constant 0 : i32
    %9 = arith.cmpi eq, %arg2, %c0_i32_8 : i32
    %10 = arith.extui %9 : i1 to i32
    %c0_i32_9 = arith.constant 0 : i32
    %11 = arith.cmpi ne, %10, %c0_i32_9 : i32
    scf.if %11 {
      %c0_10 = arith.constant 0 : index
      %c0_11 = arith.constant 0 : index
      %12 = vector.load %arg7[%c0_10, %c0_11] : memref<32x128xf32, #tpu.memory_space<vmem>>, vector<32x128xf32>
      %c0_12 = arith.constant 0 : index
      %c0_13 = arith.constant 0 : index
      %13 = vector.load %arg5[%c0_12, %c0_13] : memref<1x128xf32, #tpu.memory_space<vmem>>, vector<1x128xf32>
      %14 = vector.broadcast %13 : vector<1x128xf32> to vector<32x128xf32>
      %15 = arith.addf %12, %14 : vector<32x128xf32>
      %c0_14 = arith.constant 0 : index
      %c0_15 = arith.constant 0 : index
      %16 = vector.load %arg6[%c0_14, %c0_15] : memref<32x128xf32, #tpu.memory_space<vmem>>, vector<32x128xf32>
      tpu.vector_store %arg6[%c0_14, %c0_15], %15 {strides = array<i32>} : memref<32x128xf32, #tpu.memory_space<vmem>>, vector<32x128xf32>,
    } else {
    }
    return
  }
  func.func @transform_0(%arg0: i32, %arg1: i32, %arg2: i32) -> (i32, i32) {
    %c0_i32 = arith.constant 0 : i32
    return %arg0, %arg2 : i32, i32
  }
  func.func @transform_1(%arg0: i32, %arg1: i32, %arg2: i32) -> (i32, i32) {
    %c0_i32 = arith.constant 0 : i32
    return %arg2, %arg1 : i32, i32
  }
  func.func @transform_2(%arg0: i32, %arg1: i32, %arg2: i32) -> (i32, i32) {
    %c0_i32 = arith.constant 0 : i32
    %c0_i32_0 = arith.constant 0 : i32
    return %c0_i32, %arg1 : i32, i32
  }
  func.func @transform_3(%arg0: i32, %arg1: i32, %arg2: i32) -> (i32, i32) {
    %c0_i32 = arith.constant 0 : i32
    return %arg0, %arg1 : i32, i32
  }
}

</mosaic_0001>

<llo_original>
// kernel: pyramid_features_forward.14
$region0: #{pyramid_features_forward.14}
  #allocation0 [shape = 'u32[]', space=smem, size = 0x4, offset = 0x4, fixed_abs, tag = 'smem constant byte address 0x4 - core index']
  #allocation1 [shape = 'u32[144,128]{1,0:T(1,128)}', space=vmem, size = 0x12000, scoped, tag = 'internal scratch']
  #allocation2 [shape = 'f32[16,128]{1,0:T(8,128)}', space=vmem, size = 0x2000, scoped, tag = 'scratch operand']
  %s0 = inlined_call_operand.vmem [shape: bf16[16,256], index: 0, kind: input, shape index: {}]
  %s1 = inlined_call_operand.vmem [shape: bf16[256,128], index: 1, kind: input, shape index: {}]
  %s2 = inlined_call_operand.vmem [shape: f32[1,128], index: 2, kind: input, shape index: {}]
  %s3 = inlined_call_operand.vmem [shape: f32[16,128], index: 3, kind: output, shape index: {}]
  %s4 = sld [smem:[#allocation0]]
  $region30: #{pyramid_features_forward.14} parent=0
    _
  %s6 = ssub.s32 1, %s4
  %s7 = scalar_select 0, %s6, %s4
  // Predicated region
  $region2: #{pyramid_features_forward.14} parent=0 // pred_check
    _
  $region3: #{pyramid_features_forward.14} parent=0 // pred_check_branch
    %9 = sbr.rel (0) target = $region5
  $region4: #{pyramid_features_forward.14} parent=0 // pred_region
    _
  $region5: #{pyramid_features_forward.14} parent=0 // pred_fallthru
    _
  // Predicated region
  $region6: #{pyramid_features_forward.14} parent=0 // pred_check
    _
  $region7: #{pyramid_features_forward.14} parent=0 // pred_check_branch
    %11 = sbr.rel (0) target = $region9
  $region8: #{pyramid_features_forward.14} parent=0 // pred_region
    _
  $region9: #{pyramid_features_forward.14} parent=0 // pred_fallthru
    _
  // Predicated region
  $region10: #{pyramid_features_forward.14} parent=0 // pred_check
    _
  $region11: #{pyramid_features_forward.14} parent=0 // pred_check_branch
    %13 = sbr.rel (0) target = $region13
  $region12: #{pyramid_features_forward.14} parent=0 // pred_region
    _
  $region13: #{pyramid_features_forward.14} parent=0 // pred_fallthru
    _
  %p15 = scmp.eq.s32.totalorder 0, 0
  // Predicated region
  $region14: #{pyramid_features_forward.14} parent=0 // pred_check
    %p16 = pneg %p15
  $region15: #{pyramid_features_forward.14} parent=0 // pred_check_branch
    %18 = sbr.rel (%p16) target = $region17
  $region16: #{pyramid_features_forward.14} parent=0 // pred_region
    %19 = vst [vmem:[#allocation2] sm:$0xff] 0.0
    %20 = vst [vmem:[#allocation2 + $0x8] sm:$0xff] 0.0
  $region17: #{pyramid_features_forward.14} parent=0 // pred_fallthru
    _
  %v21 = vld [vmem:[%s0] sm:$0xff]
  %v22 = vld [vmem:[%s0 + $0x8] sm:$0xff]
  %v23 = vld [vmem:[#allocation2] sm:$0xff]
  %v24 = vld [vmem:[#allocation2 + $0x8] sm:$0xff]
  %v25 = vld [vmem:[%s1] sm:$0xf]
  %v26 = vld [vmem:[%s1 + $0x4] sm:$0xf]
  %v27 = vld [vmem:[%s1 + $0x8] sm:$0xf]
  %v28 = vld [vmem:[%s1 + $0xc] sm:$0xf]
  %v29 = vld [vmem:[%s1 + $0x10] sm:$0xf]
  %v30 = vld [vmem:[%s1 + $0x14] sm:$0xf]
  %v31 = vld [vmem:[%s1 + $0x18] sm:$0xf]
  %v32 = vld [vmem:[%s1 + $0x1c] sm:$0xf]
  %v33 = vld [vmem:[%s1 + $0x20] sm:$0xf]
  %v34 = vld [vmem:[%s1 + $0x24] sm:$0xf]
  %v35 = vld [vmem:[%s1 + $0x28] sm:$0xf]
  %v36 = vld [vmem:[%s1 + $0x2c] sm:$0xf]
  %v37 = vld [vmem:[%s1 + $0x30] sm:$0xf]
  %v38 = vld [vmem:[%s1 + $0x34] sm:$0xf]
  %v39 = vld [vmem:[%s1 + $0x38] sm:$0xf]
  %v40 = vld [vmem:[%s1 + $0x3c] sm:$0xf]
  %v41 = vld [vmem:[%s1 + $0x40] sm:$0xf]
  %v42 = vld [vmem:[%s1 + $0x44] sm:$0xf]
  %v43 = vld [vmem:[%s1 + $0x48] sm:$0xf]
  %v44 = vld [vmem:[%s1 + $0x4c] sm:$0xf]
  %v45 = vld [vmem:[%s1 + $0x50] sm:$0xf]
  %v46 = vld [vmem:[%s1 + $0x54] sm:$0xf]
  %v47 = vld [vmem:[%s1 + $0x58] sm:$0xf]
  %v48 = vld [vmem:[%s1 + $0x5c] sm:$0xf]
  %v49 = vld [vmem:[%s1 + $0x60] sm:$0xf]
  %v50 = vld [vmem:[%s1 + $0x64] sm:$0xf]
  %v51 = vld [vmem:[%s1 + $0x68] sm:$0xf]
  %v52 = vld [vmem:[%s1 + $0x6c] sm:$0xf]
  %v53 = vld [vmem:[%s1 + $0x70] sm:$0xf]
  %v54 = vld [vmem:[%s1 + $0x74] sm:$0xf]
  %v55 = vld [vmem:[%s1 + $0x78] sm:$0xf]
  %v56 = vld [vmem:[%s1 + $0x7c] sm:$0xf]
  %v59 = vunpack.c.l.b16 %v21
  %v60 = vunpack.c.h.b16 %v21
  %v61 = vunpack.c.l.b16 %v22
  %v62 = vunpack.c.h.b16 %v22
  %v63 = vpack.c.b16 %v61, %v59
  %v64 = vpack.c.b16 %v62, %v60
  %v99 = vunpack.c.l.b16 %v25
  %v100 = vunpack.c.l.b16 %v26
  %v101 = vunpack.c.l.b16 %v27
  %v102 = vunpack.c.l.b16 %v28
  %v103 = vunpack.c.l.b16 %v29
  %v104 = vunpack.c.l.b16 %v30
  %v105 = vunpack.c.l.b16 %v31
  %v106 = vunpack.c.l.b16 %v32
  %v107 = vunpack.c.l.b16 %v33
  %v108 = vunpack.c.l.b16 %v34
  %v109 = vunpack.c.l.b16 %v35
  %v110 = vunpack.c.l.b16 %v36
  %v111 = vunpack.c.l.b16 %v37
  %v112 = vunpack.c.l.b16 %v38
  %v113 = vunpack.c.l.b16 %v39
  %v114 = vunpack.c.l.b16 %v40
  %v115 = vunpack.c.l.b16 %v41
  %v116 = vunpack.c.l.b16 %v42
  %v117 = vunpack.c.l.b16 %v43
  %v118 = vunpack.c.l.b16 %v44
  %v119 = vunpack.c.l.b16 %v45
  %v120 = vunpack.c.l.b16 %v46
  %v121 = vunpack.c.l.b16 %v47
  %v122 = vunpack.c.l.b16 %v48
  %v123 = vunpack.c.l.b16 %v49
  %v124 = vunpack.c.l.b16 %v50
  %v125 = vunpack.c.l.b16 %v51
  %v126 = vunpack.c.l.b16 %v52
  %v127 = vunpack.c.l.b16 %v53
  %v128 = vunpack.c.l.b16 %v54
  %v129 = vunpack.c.l.b16 %v55
  %v130 = vunpack.c.l.b16 %v56
  %v131 = vpack.c.b16 %v100, %v99
  %v132 = vpack.c.b16 %v102, %v101
  %v133 = vpack.c.b16 %v104, %v103
  %v134 = vpack.c.b16 %v106, %v105
  %v135 = vpack.c.b16 %v108, %v107
  %v136 = vpack.c.b16 %v110, %v109
  %v137 = vpack.c.b16 %v112, %v111
  %v138 = vpack.c.b16 %v114, %v113
  %v139 = vpack.c.b16 %v116, %v115
  %v140 = vpack.c.b16 %v118, %v117
  %v141 = vpack.c.b16 %v120, %v119
  %v142 = vpack.c.b16 %v122, %v121
  %v143 = vpack.c.b16 %v124, %v123
  %v144 = vpack.c.b16 %v126, %v125
  %v145 = vpack.c.b16 %v128, %v127
  %v146 = vpack.c.b16 %v130, %v129
  %163 = vmatprep.subr.bf16.mxu0 0
  %164 = vmatpush1.bf16.msra.mxu0 %v131
  %165 = vmatprep.subr.bf16.mxu0 0
  %166 = vmatpush1.bf16.msra.mxu0 %v132
  %167 = vmatprep.subr.bf16.mxu0 0
  %168 = vmatpush1.bf16.msra.mxu0 %v133
  %169 = vmatprep.subr.bf16.mxu0 0
  %170 = vmatpush1.bf16.msra.mxu0 %v134
  %171 = vmatprep.subr.bf16.mxu0 0
  %172 = vmatpush1.bf16.msra.mxu0 %v135
  %173 = vmatprep.subr.bf16.mxu0 0
  %174 = vmatpush1.bf16.msra.mxu0 %v136
  %175 = vmatprep.subr.bf16.mxu0 0
  %176 = vmatpush1.bf16.msra.mxu0 %v137
  %177 = vmatprep.subr.bf16.mxu0 0
  %178 = vmatpush1.bf16.msra.mxu0 %v138
  %179 = vmatprep.subr.bf16.mxu0 0
  %180 = vmatpush1.bf16.msra.mxu0 %v139
  %181 = vmatprep.subr.bf16.mxu0 0
  %182 = vmatpush1.bf16.msra.mxu0 %v140
  %183 = vmatprep.subr.bf16.mxu0 0
  %184 = vmatpush1.bf16.msra.mxu0 %v141
  %185 = vmatprep.subr.bf16.mxu0 0
  %186 = vmatpush1.bf16.msra.mxu0 %v142
  %187 = vmatprep.subr.bf16.mxu0 0
  %188 = vmatpush1.bf16.msra.mxu0 %v143
  %189 = vmatprep.subr.bf16.mxu0 0
  %190 = vmatpush1.bf16.msra.mxu0 %v144
  %191 = vmatprep.subr.bf16.mxu0 0
  %192 = vmatpush1.bf16.msra.mxu0 %v145
  %193 = vmatprep.subr.bf16.mxu0 0
  %194 = vmatpush1.bf16.msra.mxu0 %v146
  %195 = vmatprep.mubr.bf16.mxu0 %v64
  %196 = vmatmul.mubr.bf16.gmra.mrb[0].mxu0 %v63
  %v197 = vpop.f32.mrb[0].mxu0
  %v198 = vadd.f32 0.0, %v197
  %v199 = vpop.f32.mrb[0].mxu0
  %v200 = vpop.f32.mrb[0].mxu0
  %v201 = vadd.f32 0.0, %v200
  %v202 = vpop.f32.mrb[0].mxu0
  %203 = vdwg.mxu0
  %v204 = vadd.f32 %v23, %v198
  %v205 = vadd.f32 %v24, %v201
  %206 = vst [vmem:[#allocation2] sm:$0xff] %v204
  %207 = vst [vmem:[#allocation2 + $0x8] sm:$0xff] %v205
  // Predicated region
  $region18: #{pyramid_features_forward.14} parent=0 // pred_check
    %p208 = pneg %p15
  $region19: #{pyramid_features_forward.14} parent=0 // pred_check_branch
    %210 = sbr.rel (%p208) target = $region21
  $region20: #{pyramid_features_forward.14} parent=0 // pred_region
    %v211 = vld [vmem:[#allocation2] sm:$0xff]
    %v212 = vld [vmem:[#allocation2 + $0x8] sm:$0xff]
    %v213 = vld [vmem:[%s2] sm:$0x1]
    %v215 = vlaneseq
    %v216 = vshrl.u32 %v215, 7
    %v217 = vsub.s32 0, %v216
    %v218 = vrot.slane %v213, %v217
    %v220 = vadd.f32 %v211, %v218
    %v221 = vadd.f32 %v212, %v218
    %222 = vst [vmem:[%s3] sm:$0xff] %v220
    %223 = vst [vmem:[%s3 + $0x8] sm:$0xff] %v221
  $region21: #{pyramid_features_forward.14} parent=0 // pred_fallthru
    _
  // Predicated region
  $region22: #{pyramid_features_forward.14} parent=0 // pred_check
    _
  $region23: #{pyramid_features_forward.14} parent=0 // pred_check_branch
    %225 = sbr.rel (0) target = $region25
  $region24: #{pyramid_features_forward.14} parent=0 // pred_region
    _
  $region25: #{pyramid_features_forward.14} parent=0 // pred_fallthru
    _
  // Predicated region
  $region26: #{pyramid_features_forward.14} parent=0 // pred_check
    _
  $region27: #{pyramid_features_forward.14} parent=0 // pred_check_branch
    %227 = sbr.rel (0) target = $region29
  $region28: #{pyramid_features_forward.14} parent=0 // pred_region
    _
  $region29: #{pyramid_features_forward.14} parent=0 // pred_fallthru
    _

// kernel: pyramid_features_forward.15
$region0: #{pyramid_features_forward.15}
  #allocation0 [shape = 'u32[]', space=smem, size = 0x4, offset = 0x4, fixed_abs, tag = 'smem constant byte address 0x4 - core index']
  #allocation1 [shape = 'u32[144,128]{1,0:T(1,128)}', space=vmem, size = 0x12000, scoped, tag = 'internal scratch']
  #allocation2 [shape = 'f32[16,128]{1,0:T(8,128)}', space=vmem, size = 0x2000, scoped, tag = 'scratch operand']
  %s0 = inlined_call_operand.vmem [shape: bf16[16,384], index: 0, kind: input, shape index: {}]
  %s1 = inlined_call_operand.vmem [shape: bf16[384,128], index: 1, kind: input, shape index: {}]
  %s2 = inlined_call_operand.vmem [shape: f32[1,128], index: 2, kind: input, shape index: {}]
  %s3 = inlined_call_operand.vmem [shape: f32[16,128], index: 3, kind: output, shape index: {}]
  %s4 = sld [smem:[#allocation0]]
  $region30: #{pyramid_features_forward.15} parent=0
    _
  %s6 = ssub.s32 1, %s4
  %s7 = scalar_select 0, %s6, %s4
  // Predicated region
  $region2: #{pyramid_features_forward.15} parent=0 // pred_check
    _
  $region3: #{pyramid_features_forward.15} parent=0 // pred_check_branch
    %9 = sbr.rel (0) target = $region5
  $region4: #{pyramid_features_forward.15} parent=0 // pred_region
    _
  $region5: #{pyramid_features_forward.15} parent=0 // pred_fallthru
    _
  // Predicated region
  $region6: #{pyramid_features_forward.15} parent=0 // pred_check
    _
  $region7: #{pyramid_features_forward.15} parent=0 // pred_check_branch
    %11 = sbr.rel (0) target = $region9
  $region8: #{pyramid_features_forward.15} parent=0 // pred_region
    _
  $region9: #{pyramid_features_forward.15} parent=0 // pred_fallthru
    _
  // Predicated region
  $region10: #{pyramid_features_forward.15} parent=0 // pred_check
    _
  $region11: #{pyramid_features_forward.15} parent=0 // pred_check_branch
    %13 = sbr.rel (0) target = $region13
  $region12: #{pyramid_features_forward.15} parent=0 // pred_region
    _
  $region13: #{pyramid_features_forward.15} parent=0 // pred_fallthru
    _
  %p15 = scmp.eq.s32.totalorder 0, 0
  // Predicated region
  $region14: #{pyramid_features_forward.15} parent=0 // pred_check
    %p16 = pneg %p15
  $region15: #{pyramid_features_forward.15} parent=0 // pred_check_branch
    %18 = sbr.rel (%p16) target = $region17
  $region16: #{pyramid_features_forward.15} parent=0 // pred_region
    %19 = vst [vmem:[#allocation2] sm:$0xff] 0.0
    %20 = vst [vmem:[#allocation2 + $0x8] sm:$0xff] 0.0
  $region17: #{pyramid_features_forward.15} parent=0 // pred_fallthru
    _
  %v21 = vld [vmem:[%s0] sm:$0xff]
  %v22 = vld [vmem:[%s0 + $0x8] sm:$0xf]
  %v23 = vld [vmem:[%s0 + $0xc] sm:$0xff]
  %v24 = vld [vmem:[%s0 + $0x14] sm:$0xf]
  %v25 = vmax.bf16 %v21, 0
  %v26 = vmax.bf16 %v22, 0
  %v27 = vmax.bf16 %v23, 0
  %v28 = vmax.bf16 %v24, 0
  %v29 = vld [vmem:[#allocation2] sm:$0xff]
  %v30 = vld [vmem:[#allocation2 + $0x8] sm:$0xff]
  %v31 = vld [vmem:[%s1] sm:$0xf]
  %v32 = vld [vmem:[%s1 + $0x4] sm:$0xf]
  %v33 = vld [vmem:[%s1 + $0x8] sm:$0xf]
  %v34 = vld [vmem:[%s1 + $0xc] sm:$0xf]
  %v35 = vld [vmem:[%s1 + $0x10] sm:$0xf]
  %v36 = vld [vmem:[%s1 + $0x14] sm:$0xf]
  %v37 = vld [vmem:[%s1 + $0x18] sm:$0xf]
  %v38 = vld [vmem:[%s1 + $0x1c] sm:$0xf]
  %v39 = vld [vmem:[%s1 + $0x20] sm:$0xf]
  %v40 = vld [vmem:[%s1 + $0x24] sm:$0xf]
  %v41 = vld [vmem:[%s1 + $0x28] sm:$0xf]
  %v42 = vld [vmem:[%s1 + $0x2c] sm:$0xf]
  %v43 = vld [vmem:[%s1 + $0x30] sm:$0xf]
  %v44 = vld [vmem:[%s1 + $0x34] sm:$0xf]
  %v45 = vld [vmem:[%s1 + $0x38] sm:$0xf]
  %v46 = vld [vmem:[%s1 + $0x3c] sm:$0xf]
  %v47 = vld [vmem:[%s1 + $0x40] sm:$0xf]
  %v48 = vld [vmem:[%s1 + $0x44] sm:$0xf]
  %v49 = vld [vmem:[%s1 + $0x48] sm:$0xf]
  %v50 = vld [vmem:[%s1 + $0x4c] sm:$0xf]
  %v51 = vld [vmem:[%s1 + $0x50] sm:$0xf]
  %v52 = vld [vmem:[%s1 + $0x54] sm:$0xf]
  %v53 = vld [vmem:[%s1 + $0x58] sm:$0xf]
  %v54 = vld [vmem:[%s1 + $0x5c] sm:$0xf]
  %v55 = vld [vmem:[%s1 + $0x60] sm:$0xf]
  %v56 = vld [vmem:[%s1 + $0x64] sm:$0xf]
  %v57 = vld [vmem:[%s1 + $0x68] sm:$0xf]
  %v58 = vld [vmem:[%s1 + $0x6c] sm:$0xf]
  %v59 = vld [vmem:[%s1 + $0x70] sm:$0xf]
  %v60 = vld [vmem:[%s1 + $0x74] sm:$0xf]
  %v61 = vld [vmem:[%s1 + $0x78] sm:$0xf]
  %v62 = vld [vmem:[%s1 + $0x7c] sm:$0xf]
  %v63 = vld [vmem:[%s1 + $0x80] sm:$0xf]
  %v64 = vld [vmem:[%s1 + $0x84] sm:$0xf]
  %v65 = vld [vmem:[%s1 + $0x88] sm:$0xf]
  %v66 = vld [vmem:[%s1 + $0x8c] sm:$0xf]
  %v67 = vld [vmem:[%s1 + $0x90] sm:$0xf]
  %v68 = vld [vmem:[%s1 + $0x94] sm:$0xf]
  %v69 = vld [vmem:[%s1 + $0x98] sm:$0xf]
  %v70 = vld [vmem:[%s1 + $0x9c] sm:$0xf]
  %v71 = vld [vmem:[%s1 + $0xa0] sm:$0xf]
  %v72 = vld [vmem:[%s1 + $0xa4] sm:$0xf]
  %v73 = vld [vmem:[%s1 + $0xa8] sm:$0xf]
  %v74 = vld [vmem:[%s1 + $0xac] sm:$0xf]
  %v75 = vld [vmem:[%s1 + $0xb0] sm:$0xf]
  %v76 = vld [vmem:[%s1 + $0xb4] sm:$0xf]
  %v77 = vld [vmem:[%s1 + $0xb8] sm:$0xf]
  %v78 = vld [vmem:[%s1 + $0xbc] sm:$0xf]
  %v83 = vunpack.c.l.b16 %v25
  %v84 = vunpack.c.h.b16 %v25
  %v85 = vunpack.c.l.b16 %v26
  %v86 = vunpack.c.l.b16 %v27
  %v87 = vunpack.c.h.b16 %v27
  %v88 = vunpack.c.l.b16 %v28
  %v89 = vpack.c.b16 %v86, %v83
  %v90 = vpack.c.b16 %v87, %v84
  %v91 = vpack.c.b16 %v88, %v85
  %v143 = vunpack.c.l.b16 %v31
  %v144 = vunpack.c.l.b16 %v32
  %v145 = vunpack.c.l.b16 %v33
  %v146 = vunpack.c.l.b16 %v34
  %v147 = vunpack.c.l.b16 %v35
  %v148 = vunpack.c.l.b16 %v36
  %v149 = vunpack.c.l.b16 %v37
  %v150 = vunpack.c.l.b16 %v38
  %v151 = vunpack.c.l.b16 %v39
  %v152 = vunpack.c.l.b16 %v40
  %v153 = vunpack.c.l.b16 %v41
  %v154 = vunpack.c.l.b16 %v42
  %v155 = vunpack.c.l.b16 %v43
  %v156 = vunpack.c.l.b16 %v44
  %v157 = vunpack.c.l.b16 %v45
  %v158 = vunpack.c.l.b16 %v46
  %v159 = vunpack.c.l.b16 %v47
  %v160 = vunpack.c.l.b16 %v48
  %v161 = vunpack.c.l.b16 %v49
  %v162 = vunpack.c.l.b16 %v50
  %v163 = vunpack.c.l.b16 %v51
  %v164 = vunpack.c.l.b16 %v52
  %v165 = vunpack.c.l.b16 %v53
  %v166 = vunpack.c.l.b16 %v54
  %v167 = vunpack.c.l.b16 %v55
  %v168 = vunpack.c.l.b16 %v56
  %v169 = vunpack.c.l.b16 %v57
  %v170 = vunpack.c.l.b16 %v58
  %v171 = vunpack.c.l.b16 %v59
  %v172 = vunpack.c.l.b16 %v60
  %v173 = vunpack.c.l.b16 %v61
  %v174 = vunpack.c.l.b16 %v62
  %v175 = vunpack.c.l.b16 %v63
  %v176 = vunpack.c.l.b16 %v64
  %v177 = vunpack.c.l.b16 %v65
  %v178 = vunpack.c.l.b16 %v66
  %v179 = vunpack.c.l.b16 %v67
  %v180 = vunpack.c.l.b16 %v68
  %v181 = vunpack.c.l.b16 %v69
  %v182 = vunpack.c.l.b16 %v70
  %v183 = vunpack.c.l.b16 %v71
  %v184 = vunpack.c.l.b16 %v72
  %v185 = vunpack.c.l.b16 %v73
  %v186 = vunpack.c.l.b16 %v74
  %v187 = vunpack.c.l.b16 %v75
  %v188 = vunpack.c.l.b16 %v76
  %v189 = vunpack.c.l.b16 %v77
  %v190 = vunpack.c.l.b16 %v78
  %v191 = vpack.c.b16 %v144, %v143
  %v192 = vpack.c.b16 %v146, %v145
  %v193 = vpack.c.b16 %v148, %v147
  %v194 = vpack.c.b16 %v150, %v149
  %v195 = vpack.c.b16 %v152, %v151
  %v196 = vpack.c.b16 %v154, %v153
  %v197 = vpack.c.b16 %v156, %v155
  %v198 = vpack.c.b16 %v158, %v157
  %v199 = vpack.c.b16 %v160, %v159
  %v200 = vpack.c.b16 %v162, %v161
  %v201 = vpack.c.b16 %v164, %v163
  %v202 = vpack.c.b16 %v166, %v165
  %v203 = vpack.c.b16 %v168, %v167
  %v204 = vpack.c.b16 %v170, %v169
  %v205 = vpack.c.b16 %v172, %v171
  %v206 = vpack.c.b16 %v174, %v173
  %v207 = vpack.c.b16 %v176, %v175
  %v208 = vpack.c.b16 %v178, %v177
  %v209 = vpack.c.b16 %v180, %v179
  %v210 = vpack.c.b16 %v182, %v181
  %v211 = vpack.c.b16 %v184, %v183
  %v212 = vpack.c.b16 %v186, %v185
  %v213 = vpack.c.b16 %v188, %v187
  %v214 = vpack.c.b16 %v190, %v189
  %239 = vmatprep.subr.bf16.mxu0 0
  %240 = vmatpush1.bf16.msra.mxu0 %v191
  %241 = vmatprep.subr.bf16.mxu0 0
  %242 = vmatpush1.bf16.msra.mxu0 %v192
  %243 = vmatprep.subr.bf16.mxu0 0
  %244 = vmatpush1.bf16.msra.mxu0 %v193
  %245 = vmatprep.subr.bf16.mxu0 0
  %246 = vmatpush1.bf16.msra.mxu0 %v194
  %247 = vmatprep.subr.bf16.mxu0 0
  %248 = vmatpush1.bf16.msra.mxu0 %v195
  %249 = vmatprep.subr.bf16.mxu0 0
  %250 = vmatpush1.bf16.msra.mxu0 %v196
  %251 = vmatprep.subr.bf16.mxu0 0
  %252 = vmatpush1.bf16.msra.mxu0 %v197
  %253 = vmatprep.subr.bf16.mxu0 0
  %254 = vmatpush1.bf16.msra.mxu0 %v198
  %255 = vmatprep.subr.bf16.mxu0 0
  %256 = vmatpush1.bf16.msra.mxu0 %v199
  %257 = vmatprep.subr.bf16.mxu0 0
  %258 = vmatpush1.bf16.msra.mxu0 %v200
  %259 = vmatprep.subr.bf16.mxu0 0
  %260 = vmatpush1.bf16.msra.mxu0 %v201
  %261 = vmatprep.subr.bf16.mxu0 0
  %262 = vmatpush1.bf16.msra.mxu0 %v202
  %263 = vmatprep.subr.bf16.mxu0 0
  %264 = vmatpush1.bf16.msra.mxu0 %v203
  %265 = vmatprep.subr.bf16.mxu0 0
  %266 = vmatpush1.bf16.msra.mxu0 %v204
  %267 = vmatprep.subr.bf16.mxu0 0
  %268 = vmatpush1.bf16.msra.mxu0 %v205
  %269 = vmatprep.subr.bf16.mxu0 0
  %270 = vmatpush1.bf16.msra.mxu0 %v206
  %271 = vmatprep.mubr.bf16.mxu0 %v90
  %272 = vmatmul.mubr.bf16.gmra.mrb[0].mxu0 %v89
  %v273 = vpop.f32.mrb[0].mxu0
  %v274 = vadd.f32 0.0, %v273
  %v275 = vpop.f32.mrb[0].mxu0
  %v276 = vpop.f32.mrb[0].mxu0
  %v277 = vadd.f32 0.0, %v276
  %v278 = vpop.f32.mrb[0].mxu0
  %279 = vdwg.mxu0
  %280 = vmatprep.subr.bf16.mxu0 0
  %281 = vmatpush1.bf16.msra.mxu0 %v207
  %282 = vmatprep.subr.bf16.mxu0 0
  %283 = vmatpush1.bf16.msra.mxu0 %v208
  %284 = vmatprep.subr.bf16.mxu0 0
  %285 = vmatpush1.bf16.msra.mxu0 %v209
  %286 = vmatprep.subr.bf16.mxu0 0
  %287 = vmatpush1.bf16.msra.mxu0 %v210
  %288 = vmatprep.subr.bf16.mxu0 0
  %289 = vmatpush1.bf16.msra.mxu0 %v211
  %290 = vmatprep.subr.bf16.mxu0 0
  %291 = vmatpush1.bf16.msra.mxu0 %v212
  %292 = vmatprep.subr.bf16.mxu0 0
  %293 = vmatpush1.bf16.msra.mxu0 %v213
  %294 = vmatprep.subr.bf16.mxu0 0
  %295 = vmatpush1.bf16.msra.mxu0 %v214
  %296 = vmatprep.subr.bf16.mxu0 0
  %297 = vmatpush1.bf16.msra.mxu0 0
  %298 = vmatprep.subr.bf16.mxu0 0
  %299 = vmatpush1.bf16.msra.mxu0 0
  %300 = vmatprep.subr.bf16.mxu0 0
  %301 = vmatpush1.bf16.msra.mxu0 0
  %302 = vmatprep.subr.bf16.mxu0 0
  %303 = vmatpush1.bf16.msra.mxu0 0
  %304 = vmatprep.subr.bf16.mxu0 0
  %305 = vmatpush1.bf16.msra.mxu0 0
  %306 = vmatprep.subr.bf16.mxu0 0
  %307 = vmatpush1.bf16.msra.mxu0 0
  %308 = vmatprep.subr.bf16.mxu0 0
  %309 = vmatpush1.bf16.msra.mxu0 0
  %310 = vmatprep.subr.bf16.mxu0 0
  %311 = vmatpush1.bf16.msra.mxu0 0
  %312 = vmatprep.mubr.bf16.mxu0 0
  %313 = vmatmul.mubr.bf16.gmra.mrb[0].mxu0 %v91
  %v314 = vpop.f32.mrb[0].mxu0
  %v315 = vadd.f32 %v274, %v314
  %v316 = vpop.f32.mrb[0].mxu0
  %v317 = vpop.f32.mrb[0].mxu0
  %v318 = vadd.f32 %v277, %v317
  %v319 = vpop.f32.mrb[0].mxu0
  %320 = vdwg.mxu0
  %v321 = vadd.f32 %v29, %v315
  %v322 = vadd.f32 %v30, %v318
  %323 = vst [vmem:[#allocation2] sm:$0xff] %v321
  %324 = vst [vmem:[#allocation2 + $0x8] sm:$0xff] %v322
  // Predicated region
  $region18: #{pyramid_features_forward.15} parent=0 // pred_check
    %p325 = pneg %p15
  $region19: #{pyramid_features_forward.15} parent=0 // pred_check_branch
    %327 = sbr.rel (%p325) target = $region21
  $region20: #{pyramid_features_forward.15} parent=0 // pred_region
    %v328 = vld [vmem:[#allocation2] sm:$0xff]
    %v329 = vld [vmem:[#allocation2 + $0x8] sm:$0xff]
    %v330 = vld [vmem:[%s2] sm:$0x1]
    %v332 = vlaneseq
    %v333 = vshrl.u32 %v332, 7
    %v334 = vsub.s32 0, %v333
    %v335 = vrot.slane %v330, %v334
    %v337 = vadd.f32 %v328, %v335
    %v338 = vadd.f32 %v329, %v335
    %339 = vst [vmem:[%s3] sm:$0xff] %v337
    %340 = vst [vmem:[%s3 + $0x8] sm:$0xff] %v338
  $region21: #{pyramid_features_forward.15} parent=0 // pred_fallthru
    _
  // Predicated region
  $region22: #{pyramid_features_forward.15} parent=0 // pred_check
    _
  $region23: #{pyramid_features_forward.15} parent=0 // pred_check_branch
    %342 = sbr.rel (0) target = $region25
  $region24: #{pyramid_features_forward.15} parent=0 // pred_region
    _
  $region25: #{pyramid_features_forward.15} parent=0 // pred_fallthru
    _
  // Predicated region
  $region26: #{pyramid_features_forward.15} parent=0 // pred_check
    _
  $region27: #{pyramid_features_forward.15} parent=0 // pred_check_branch
    %344 = sbr.rel (0) target = $region29
  $region28: #{pyramid_features_forward.15} parent=0 // pred_region
    _
  $region29: #{pyramid_features_forward.15} parent=0 // pred_fallthru
    _

// kernel: pyramid_features_forward.8
$region0: #{pyramid_features_forward.8}
  #allocation0 [shape = 'u32[]', space=smem, size = 0x4, offset = 0x4, fixed_abs, tag = 'smem constant byte address 0x4 - core index']
  #allocation1 [shape = 'u32[144,128]{1,0:T(1,128)}', space=vmem, size = 0x12000, scoped, tag = 'internal scratch']
  #allocation2 [shape = 'f32[32,128]{1,0:T(8,128)}', space=vmem, size = 0x4000, scoped, tag = 'scratch operand']
  %s0 = inlined_call_operand.vmem [shape: bf16[32,128], index: 0, kind: input, shape index: {}]
  %s1 = inlined_call_operand.vmem [shape: bf16[128,128], index: 1, kind: input, shape index: {}]
  %s2 = inlined_call_operand.vmem [shape: f32[1,128], index: 2, kind: input, shape index: {}]
  %s3 = inlined_call_operand.vmem [shape: f32[32,128], index: 3, kind: output, shape index: {}]
  %s4 = sld [smem:[#allocation0]]
  $region30: #{pyramid_features_forward.8} parent=0
    _
  %s6 = ssub.s32 1, %s4
  %s7 = scalar_select 0, %s6, %s4
  // Predicated region
  $region2: #{pyramid_features_forward.8} parent=0 // pred_check
    _
  $region3: #{pyramid_features_forward.8} parent=0 // pred_check_branch
    %9 = sbr.rel (0) target = $region5
  $region4: #{pyramid_features_forward.8} parent=0 // pred_region
    _
  $region5: #{pyramid_features_forward.8} parent=0 // pred_fallthru
    _
  // Predicated region
  $region6: #{pyramid_features_forward.8} parent=0 // pred_check
    _
  $region7: #{pyramid_features_forward.8} parent=0 // pred_check_branch
    %11 = sbr.rel (0) target = $region9
  $region8: #{pyramid_features_forward.8} parent=0 // pred_region
    _
  $region9: #{pyramid_features_forward.8} parent=0 // pred_fallthru
    _
  // Predicated region
  $region10: #{pyramid_features_forward.8} parent=0 // pred_check
    _
  $region11: #{pyramid_features_forward.8} parent=0 // pred_check_branch
    %13 = sbr.rel (0) target = $region13
  $region12: #{pyramid_features_forward.8} parent=0 // pred_region
    _
  $region13: #{pyramid_features_forward.8} parent=0 // pred_fallthru
    _
  %p15 = scmp.eq.s32.totalorder 0, 0
  // Predicated region
  $region14: #{pyramid_features_forward.8} parent=0 // pred_check
    %p16 = pneg %p15
  $region15: #{pyramid_features_forward.8} parent=0 // pred_check_branch
    %18 = sbr.rel (%p16) target = $region17
  $region16: #{pyramid_features_forward.8} parent=0 // pred_region
    %19 = vst [vmem:[#allocation2] sm:$0xff] 0.0
    %20 = vst [vmem:[#allocation2 + $0x8] sm:$0xff] 0.0
    %21 = vst [vmem:[#allocation2 + $0x10] sm:$0xff] 0.0
    %22 = vst [vmem:[#allocation2 + $0x18] sm:$0xff] 0.0
  $region17: #{pyramid_features_forward.8} parent=0 // pred_fallthru
    _
  %v23 = vld [vmem:[%s0] sm:$0xf]
  %v24 = vld [vmem:[%s0 + $0x4] sm:$0xf]
  %v25 = vld [vmem:[%s0 + $0x8] sm:$0xf]
  %v26 = vld [vmem:[%s0 + $0xc] sm:$0xf]
  %v27 = vld [vmem:[#allocation2] sm:$0xff]
  %v28 = vld [vmem:[#allocation2 + $0x8] sm:$0xff]
  %v29 = vld [vmem:[#allocation2 + $0x10] sm:$0xff]
  %v30 = vld [vmem:[#allocation2 + $0x18] sm:$0xff]
  %v31 = vld [vmem:[%s1] sm:$0xf]
  %v32 = vld [vmem:[%s1 + $0x4] sm:$0xf]
  %v33 = vld [vmem:[%s1 + $0x8] sm:$0xf]
  %v34 = vld [vmem:[%s1 + $0xc] sm:$0xf]
  %v35 = vld [vmem:[%s1 + $0x10] sm:$0xf]
  %v36 = vld [vmem:[%s1 + $0x14] sm:$0xf]
  %v37 = vld [vmem:[%s1 + $0x18] sm:$0xf]
  %v38 = vld [vmem:[%s1 + $0x1c] sm:$0xf]
  %v39 = vld [vmem:[%s1 + $0x20] sm:$0xf]
  %v40 = vld [vmem:[%s1 + $0x24] sm:$0xf]
  %v41 = vld [vmem:[%s1 + $0x28] sm:$0xf]
  %v42 = vld [vmem:[%s1 + $0x2c] sm:$0xf]
  %v43 = vld [vmem:[%s1 + $0x30] sm:$0xf]
  %v44 = vld [vmem:[%s1 + $0x34] sm:$0xf]
  %v45 = vld [vmem:[%s1 + $0x38] sm:$0xf]
  %v46 = vld [vmem:[%s1 + $0x3c] sm:$0xf]
  %v51 = vunpack.c.l.b16 %v23
  %v52 = vunpack.c.l.b16 %v24
  %v53 = vunpack.c.l.b16 %v25
  %v54 = vunpack.c.l.b16 %v26
  %v55 = vpack.c.b16 %v52, %v51
  %v56 = vpack.c.b16 %v54, %v53
  %v75 = vunpack.c.l.b16 %v31
  %v76 = vunpack.c.l.b16 %v32
  %v77 = vunpack.c.l.b16 %v33
  %v78 = vunpack.c.l.b16 %v34
  %v79 = vunpack.c.l.b16 %v35
  %v80 = vunpack.c.l.b16 %v36
  %v81 = vunpack.c.l.b16 %v37
  %v82 = vunpack.c.l.b16 %v38
  %v83 = vunpack.c.l.b16 %v39
  %v84 = vunpack.c.l.b16 %v40
  %v85 = vunpack.c.l.b16 %v41
  %v86 = vunpack.c.l.b16 %v42
  %v87 = vunpack.c.l.b16 %v43
  %v88 = vunpack.c.l.b16 %v44
  %v89 = vunpack.c.l.b16 %v45
  %v90 = vunpack.c.l.b16 %v46
  %v91 = vpack.c.b16 %v76, %v75
  %v92 = vpack.c.b16 %v78, %v77
  %v93 = vpack.c.b16 %v80, %v79
  %v94 = vpack.c.b16 %v82, %v81
  %v95 = vpack.c.b16 %v84, %v83
  %v96 = vpack.c.b16 %v86, %v85
  %v97 = vpack.c.b16 %v88, %v87
  %v98 = vpack.c.b16 %v90, %v89
  %107 = vmatprep.subr.bf16.mxu0 0
  %108 = vmatpush1.bf16.msra.mxu0 %v91
  %109 = vmatprep.subr.bf16.mxu0 0
  %110 = vmatpush1.bf16.msra.mxu0 %v92
  %111 = vmatprep.subr.bf16.mxu0 0
  %112 = vmatpush1.bf16.msra.mxu0 %v93
  %113 = vmatprep.subr.bf16.mxu0 0
  %114 = vmatpush1.bf16.msra.mxu0 %v94
  %115 = vmatprep.subr.bf16.mxu0 0
  %116 = vmatpush1.bf16.msra.mxu0 %v95
  %117 = vmatprep.subr.bf16.mxu0 0
  %118 = vmatpush1.bf16.msra.mxu0 %v96
  %119 = vmatprep.subr.bf16.mxu0 0
  %120 = vmatpush1.bf16.msra.mxu0 %v97
  %121 = vmatprep.subr.bf16.mxu0 0
  %122 = vmatpush1.bf16.msra.mxu0 %v98
  %123 = vmatprep.subr.bf16.mxu0 0
  %124 = vmatpush1.bf16.msra.mxu0 0
  %125 = vmatprep.subr.bf16.mxu0 0
  %126 = vmatpush1.bf16.msra.mxu0 0
  %127 = vmatprep.subr.bf16.mxu0 0
  %128 = vmatpush1.bf16.msra.mxu0 0
  %129 = vmatprep.subr.bf16.mxu0 0
  %130 = vmatpush1.bf16.msra.mxu0 0
  %131 = vmatprep.subr.bf16.mxu0 0
  %132 = vmatpush1.bf16.msra.mxu0 0
  %133 = vmatprep.subr.bf16.mxu0 0
  %134 = vmatpush1.bf16.msra.mxu0 0
  %135 = vmatprep.subr.bf16.mxu0 0
  %136 = vmatpush1.bf16.msra.mxu0 0
  %137 = vmatprep.subr.bf16.mxu0 0
  %138 = vmatpush1.bf16.msra.mxu0 0
  %139 = vmatprep.mubr.bf16.mxu0 0
  %140 = vmatmul.mubr.bf16.gmra.mrb[0].mxu0 %v55
  %v141 = vpop.f32.mrb[0].mxu0
  %v142 = vadd.f32 0.0, %v141
  %v143 = vpop.f32.mrb[0].mxu0
  %v144 = vpop.f32.mrb[0].mxu0
  %v145 = vadd.f32 0.0, %v144
  %v146 = vpop.f32.mrb[0].mxu0
  %147 = vmatprep.mubr.bf16.mxu0 0
  %148 = vmatmul.mubr.bf16.gmra.mrb[0].mxu0 %v56
  %v149 = vpop.f32.mrb[0].mxu0
  %v150 = vadd.f32 0.0, %v149
  %v151 = vpop.f32.mrb[0].mxu0
  %v152 = vpop.f32.mrb[0].mxu0
  %v153 = vadd.f32 0.0, %v152
  %v154 = vpop.f32.mrb[0].mxu0
  %155 = vdwg.mxu0
  %v156 = vadd.f32 %v27, %v142
  %v157 = vadd.f32 %v28, %v145
  %v158 = vadd.f32 %v29, %v150
  %v159 = vadd.f32 %v30, %v153
  %160 = vst [vmem:[#allocation2] sm:$0xff] %v156
  %161 = vst [vmem:[#allocation2 + $0x8] sm:$0xff] %v157
  %162 = vst [vmem:[#allocation2 + $0x10] sm:$0xff] %v158
  %163 = vst [vmem:[#allocation2 + $0x18] sm:$0xff] %v159
  // Predicated region
  $region18: #{pyramid_features_forward.8} parent=0 // pred_check
    %p164 = pneg %p15
  $region19: #{pyramid_features_forward.8} parent=0 // pred_check_branch
    %166 = sbr.rel (%p164) target = $region21
  $region20: #{pyramid_features_forward.8} parent=0 // pred_region
    %v167 = vld [vmem:[#allocation2] sm:$0xff]
    %v168 = vld [vmem:[#allocation2 + $0x8] sm:$0xff]
    %v169 = vld [vmem:[#allocation2 + $0x10] sm:$0xff]
    %v170 = vld [vmem:[#allocation2 + $0x18] sm:$0xff]
    %v171 = vld [vmem:[%s2] sm:$0x1]
    %v173 = vlaneseq
    %v174 = vshrl.u32 %v173, 7
    %v175 = vsub.s32 0, %v174
    %v176 = vrot.slane %v171, %v175
    %v178 = vadd.f32 %v167, %v176
    %v179 = vadd.f32 %v168, %v176
    %v180 = vadd.f32 %v169, %v176
    %v181 = vadd.f32 %v170, %v176
    %182 = vst [vmem:[%s3] sm:$0xff] %v178
    %183 = vst [vmem:[%s3 + $0x8] sm:$0xff] %v179
    %184 = vst [vmem:[%s3 + $0x10] sm:$0xff] %v180
    %185 = vst [vmem:[%s3 + $0x18] sm:$0xff] %v181
  $region21: #{pyramid_features_forward.8} parent=0 // pred_fallthru
    _
  // Predicated region
  $region22: #{pyramid_features_forward.8} parent=0 // pred_check
    _
  $region23: #{pyramid_features_forward.8} parent=0 // pred_check_branch
    %187 = sbr.rel (0) target = $region25
  $region24: #{pyramid_features_forward.8} parent=0 // pred_region
    _
  $region25: #{pyramid_features_forward.8} parent=0 // pred_fallthru
    _
  // Predicated region
  $region26: #{pyramid_features_forward.8} parent=0 // pred_check
    _
  $region27: #{pyramid_features_forward.8} parent=0 // pred_check_branch
    %189 = sbr.rel (0) target = $region29
  $region28: #{pyramid_features_forward.8} parent=0 // pred_region
    _
  $region29: #{pyramid_features_forward.8} parent=0 // pred_fallthru
    _

// kernel: pyramid_features_forward.10
$region0: #{pyramid_features_forward.10}
  #allocation0 [shape = 'u32[]', space=smem, size = 0x4, offset = 0x4, fixed_abs, tag = 'smem constant byte address 0x4 - core index']
  #allocation1 [shape = 'u32[144,128]{1,0:T(1,128)}', space=vmem, size = 0x12000, scoped, tag = 'internal scratch']
  #allocation2 [shape = 'f32[128,128]{1,0:T(8,128)}', space=vmem, size = 0x10000, scoped, tag = 'scratch operand']
  %s0 = inlined_call_operand.vmem [shape: bf16[128,128], index: 0, kind: input, shape index: {}]
  %s1 = inlined_call_operand.vmem [shape: bf16[128,128], index: 1, kind: input, shape index: {}]
  %s2 = inlined_call_operand.vmem [shape: f32[1,128], index: 2, kind: input, shape index: {}]
  %s3 = inlined_call_operand.vmem [shape: f32[128,128], index: 3, kind: input, shape index: {}]
  %s4 = inlined_call_operand.vmem [shape: f32[128,128], index: 4, kind: output, shape index: {}]
  %s5 = sld [smem:[#allocation0]]
  $region34: #{pyramid_features_forward.10} parent=0
    _
  %s7 = ssub.s32 1, %s5
  %s8 = scalar_select 0, %s7, %s5
  // Predicated region
  $region2: #{pyramid_features_forward.10} parent=0 // pred_check
    _
  $region3: #{pyramid_features_forward.10} parent=0 // pred_check_branch
    %10 = sbr.rel (0) target = $region5
  $region4: #{pyramid_features_forward.10} parent=0 // pred_region
    _
  $region5: #{pyramid_features_forward.10} parent=0 // pred_fallthru
    _
  // Predicated region
  $region6: #{pyramid_features_forward.10} parent=0 // pred_check
    _
  $region7: #{pyramid_features_forward.10} parent=0 // pred_check_branch
    %12 = sbr.rel (0) target = $region9
  $region8: #{pyramid_features_forward.10} parent=0 // pred_region
    _
  $region9: #{pyramid_features_forward.10} parent=0 // pred_fallthru
    _
  // Predicated region
  $region10: #{pyramid_features_forward.10} parent=0 // pred_check
    _
  $region11: #{pyramid_features_forward.10} parent=0 // pred_check_branch
    %14 = sbr.rel (0) target = $region13
  $region12: #{pyramid_features_forward.10} parent=0 // pred_region
    _
  $region13: #{pyramid_features_forward.10} parent=0 // pred_fallthru
    _
  // Predicated region
  $region14: #{pyramid_features_forward.10} parent=0 // pred_check
    _
  $region15: #{pyramid_features_forward.10} parent=0 // pred_check_branch
    %16 = sbr.rel (0) target = $region17
  $region16: #{pyramid_features_forward.10} parent=0 // pred_region
    _
  $region17: #{pyramid_features_forward.10} parent=0 // pred_fallthru
    _
  %p18 = scmp.eq.s32.totalorder 0, 0
  // Predicated region
  $region18: #{pyramid_features_forward.10} parent=0 // pred_check
    %p19 = pneg %p18
  $region19: #{pyramid_features_forward.10} parent=0 // pred_check_branch
    %21 = sbr.rel (%p19) target = $region21
  $region20: #{pyramid_features_forward.10} parent=0 // pred_region
    %22 = vst [vmem:[#allocation2] sm:$0xff] 0.0
    %23 = vst [vmem:[#allocation2 + $0x8] sm:$0xff] 0.0
    %24 = vst [vmem:[#allocation2 + $0x10] sm:$0xff] 0.0
    %25 = vst [vmem:[#allocation2 + $0x18] sm:$0xff] 0.0
    %26 = vst [vmem:[#allocation2 + $0x20] sm:$0xff] 0.0
    %27 = vst [vmem:[#allocation2 + $0x28] sm:$0xff] 0.0
    %28 = vst [vmem:[#allocation2 + $0x30] sm:$0xff] 0.0
    %29 = vst [vmem:[#allocation2 + $0x38] sm:$0xff] 0.0
    %30 = vst [vmem:[#allocation2 + $0x40] sm:$0xff] 0.0
    %31 = vst [vmem:[#allocation2 + $0x48] sm:$0xff] 0.0
    %32 = vst [vmem:[#allocation2 + $0x50] sm:$0xff] 0.0
    %33 = vst [vmem:[#allocation2 + $0x58] sm:$0xff] 0.0
    %34 = vst [vmem:[#allocation2 + $0x60] sm:$0xff] 0.0
    %35 = vst [vmem:[#allocation2 + $0x68] sm:$0xff] 0.0
    %36 = vst [vmem:[#allocation2 + $0x70] sm:$0xff] 0.0
    %37 = vst [vmem:[#allocation2 + $0x78] sm:$0xff] 0.0
  $region21: #{pyramid_features_forward.10} parent=0 // pred_fallthru
    _
  %v38 = vld [vmem:[%s0] sm:$0xf]
  %v39 = vld [vmem:[%s0 + $0x4] sm:$0xf]
  %v40 = vld [vmem:[%s0 + $0x8] sm:$0xf]
  %v41 = vld [vmem:[%s0 + $0xc] sm:$0xf]
  %v42 = vld [vmem:[%s0 + $0x10] sm:$0xf]
  %v43 = vld [vmem:[%s0 + $0x14] sm:$0xf]
  %v44 = vld [vmem:[%s0 + $0x18] sm:$0xf]
  %v45 = vld [vmem:[%s0 + $0x1c] sm:$0xf]
  %v46 = vld [vmem:[%s0 + $0x20] sm:$0xf]
  %v47 = vld [vmem:[%s0 + $0x24] sm:$0xf]
  %v48 = vld [vmem:[%s0 + $0x28] sm:$0xf]
  %v49 = vld [vmem:[%s0 + $0x2c] sm:$0xf]
  %v50 = vld [vmem:[%s0 + $0x30] sm:$0xf]
  %v51 = vld [vmem:[%s0 + $0x34] sm:$0xf]
  %v52 = vld [vmem:[%s0 + $0x38] sm:$0xf]
  %v53 = vld [vmem:[%s0 + $0x3c] sm:$0xf]
  %v54 = vld [vmem:[#allocation2] sm:$0xff]
  %v55 = vld [vmem:[#allocation2 + $0x8] sm:$0xff]
  %v56 = vld [vmem:[#allocation2 + $0x10] sm:$0xff]
  %v57 = vld [vmem:[#allocation2 + $0x18] sm:$0xff]
  %v58 = vld [vmem:[#allocation2 + $0x20] sm:$0xff]
  %v59 = vld [vmem:[#allocation2 + $0x28] sm:$0xff]
  %v60 = vld [vmem:[#allocation2 + $0x30] sm:$0xff]
  %v61 = vld [vmem:[#allocation2 + $0x38] sm:$0xff]
  %v62 = vld [vmem:[#allocation2 + $0x40] sm:$0xff]
  %v63 = vld [vmem:[#allocation2 + $0x48] sm:$0xff]
  %v64 = vld [vmem:[#allocation2 + $0x50] sm:$0xff]
  %v65 = vld [vmem:[#allocation2 + $0x58] sm:$0xff]
  %v66 = vld [vmem:[#allocation2 + $0x60] sm:$0xff]
  %v67 = vld [vmem:[#allocation2 + $0x68] sm:$0xff]
  %v68 = vld [vmem:[#allocation2 + $0x70] sm:$0xff]
  %v69 = vld [vmem:[#allocation2 + $0x78] sm:$0xff]
  %v70 = vld [vmem:[%s1] sm:$0xf]
  %v71 = vld [vmem:[%s1 + $0x4] sm:$0xf]
  %v72 = vld [vmem:[%s1 + $0x8] sm:$0xf]
  %v73 = vld [vmem:[%s1 + $0xc] sm:$0xf]
  %v74 = vld [vmem:[%s1 + $0x10] sm:$0xf]
  %v75 = vld [vmem:[%s1 + $0x14] sm:$0xf]
  %v76 = vld [vmem:[%s1 + $0x18] sm:$0xf]
  %v77 = vld [vmem:[%s1 + $0x1c] sm:$0xf]
  %v78 = vld [vmem:[%s1 + $0x20] sm:$0xf]
  %v79 = vld [vmem:[%s1 + $0x24] sm:$0xf]
  %v80 = vld [vmem:[%s1 + $0x28] sm:$0xf]
  %v81 = vld [vmem:[%s1 + $0x2c] sm:$0xf]
  %v82 = vld [vmem:[%s1 + $0x30] sm:$0xf]
  %v83 = vld [vmem:[%s1 + $0x34] sm:$0xf]
  %v84 = vld [vmem:[%s1 + $0x38] sm:$0xf]
  %v85 = vld [vmem:[%s1 + $0x3c] sm:$0xf]
  %v102 = vunpack.c.l.b16 %v38
  %v103 = vunpack.c.l.b16 %v39
  %v104 = vunpack.c.l.b16 %v40
  %v105 = vunpack.c.l.b16 %v41
  %v106 = vunpack.c.l.b16 %v42
  %v107 = vunpack.c.l.b16 %v43
  %v108 = vunpack.c.l.b16 %v44
  %v109 = vunpack.c.l.b16 %v45
  %v110 = vunpack.c.l.b16 %v46
  %v111 = vunpack.c.l.b16 %v47
  %v112 = vunpack.c.l.b16 %v48
  %v113 = vunpack.c.l.b16 %v49
  %v114 = vunpack.c.l.b16 %v50
  %v115 = vunpack.c.l.b16 %v51
  %v116 = vunpack.c.l.b16 %v52
  %v117 = vunpack.c.l.b16 %v53
  %v118 = vpack.c.b16 %v103, %v102
  %v119 = vpack.c.b16 %v105, %v104
  %v120 = vpack.c.b16 %v107, %v106
  %v121 = vpack.c.b16 %v109, %v108
  %v122 = vpack.c.b16 %v111, %v110
  %v123 = vpack.c.b16 %v113, %v112
  %v124 = vpack.c.b16 %v115, %v114
  %v125 = vpack.c.b16 %v117, %v116
  %v150 = vunpack.c.l.b16 %v70
  %v151 = vunpack.c.l.b16 %v71
  %v152 = vunpack.c.l.b16 %v72
  %v153 = vunpack.c.l.b16 %v73
  %v154 = vunpack.c.l.b16 %v74
  %v155 = vunpack.c.l.b16 %v75
  %v156 = vunpack.c.l.b16 %v76
  %v157 = vunpack.c.l.b16 %v77
  %v158 = vunpack.c.l.b16 %v78
  %v159 = vunpack.c.l.b16 %v79
  %v160 = vunpack.c.l.b16 %v80
  %v161 = vunpack.c.l.b16 %v81
  %v162 = vunpack.c.l.b16 %v82
  %v163 = vunpack.c.l.b16 %v83
  %v164 = vunpack.c.l.b16 %v84
  %v165 = vunpack.c.l.b16 %v85
  %v166 = vpack.c.b16 %v151, %v150
  %v167 = vpack.c.b16 %v153, %v152
  %v168 = vpack.c.b16 %v155, %v154
  %v169 = vpack.c.b16 %v157, %v156
  %v170 = vpack.c.b16 %v159, %v158
  %v171 = vpack.c.b16 %v161, %v160
  %v172 = vpack.c.b16 %v163, %v162
  %v173 = vpack.c.b16 %v165, %v164
  %182 = vmatprep.subr.bf16.mxu0 0
  %183 = vmatpush1.bf16.msra.mxu0 %v166
  %184 = vmatprep.subr.bf16.mxu0 0
  %185 = vmatpush1.bf16.msra.mxu0 %v167
  %186 = vmatprep.subr.bf16.mxu0 0
  %187 = vmatpush1.bf16.msra.mxu0 %v168
  %188 = vmatprep.subr.bf16.mxu0 0
  %189 = vmatpush1.bf16.msra.mxu0 %v169
  %190 = vmatprep.subr.bf16.mxu0 0
  %191 = vmatpush1.bf16.msra.mxu0 %v170
  %192 = vmatprep.subr.bf16.mxu0 0
  %193 = vmatpush1.bf16.msra.mxu0 %v171
  %194 = vmatprep.subr.bf16.mxu0 0
  %195 = vmatpush1.bf16.msra.mxu0 %v172
  %196 = vmatprep.subr.bf16.mxu0 0
  %197 = vmatpush1.bf16.msra.mxu0 %v173
  %198 = vmatprep.subr.bf16.mxu0 0
  %199 = vmatpush1.bf16.msra.mxu0 0
  %200 = vmatprep.subr.bf16.mxu0 0
  %201 = vmatpush1.bf16.msra.mxu0 0
  %202 = vmatprep.subr.bf16.mxu0 0
  %203 = vmatpush1.bf16.msra.mxu0 0
  %204 = vmatprep.subr.bf16.mxu0 0
  %205 = vmatpush1.bf16.msra.mxu0 0
  %206 = vmatprep.subr.bf16.mxu0 0
  %207 = vmatpush1.bf16.msra.mxu0 0
  %208 = vmatprep.subr.bf16.mxu0 0
  %209 = vmatpush1.bf16.msra.mxu0 0
  %210 = vmatprep.subr.bf16.mxu0 0
  %211 = vmatpush1.bf16.msra.mxu0 0
  %212 = vmatprep.subr.bf16.mxu0 0
  %213 = vmatpush1.bf16.msra.mxu0 0
  %214 = vmatprep.mubr.bf16.mxu0 0
  %215 = vmatmul.mubr.bf16.gmra.mrb[0].mxu0 %v118
  %v216 = vpop.f32.mrb[0].mxu0
  %v217 = vadd.f32 0.0, %v216
  %v218 = vpop.f32.mrb[0].mxu0
  %v219 = vpop.f32.mrb[0].mxu0
  %v220 = vadd.f32 0.0, %v219
  %v221 = vpop.f32.mrb[0].mxu0
  %222 = vmatprep.mubr.bf16.mxu0 0
  %223 = vmatmul.mubr.bf16.gmra.mrb[0].mxu0 %v119
  %v224 = vpop.f32.mrb[0].mxu0
  %v225 = vadd.f32 0.0, %v224
  %v226 = vpop.f32.mrb[0].mxu0
  %v227 = vpop.f32.mrb[0].mxu0
  %v228 = vadd.f32 0.0, %v227
  %v229 = vpop.f32.mrb[0].mxu0
  %230 = vmatprep.mubr.bf16.mxu0 0
  %231 = vmatmul.mubr.bf16.gmra.mrb[0].mxu0 %v120
  %v232 = vpop.f32.mrb[0].mxu0
  %v233 = vadd.f32 0.0, %v232
  %v234 = vpop.f32.mrb[0].mxu0
  %v235 = vpop.f32.mrb[0].mxu0
  %v236 = vadd.f32 0.0, %v235
  %v237 = vpop.f32.mrb[0].mxu0
  %238 = vmatprep.mubr.bf16.mxu0 0
  %239 = vmatmul.mubr.bf16.gmra.mrb[0].mxu0 %v121
  %v240 = vpop.f32.mrb[0].mxu0
  %v241 = vadd.f32 0.0, %v240
  %v242 = vpop.f32.mrb[0].mxu0
  %v243 = vpop.f32.mrb[0].mxu0
  %v244 = vadd.f32 0.0, %v243
  %v245 = vpop.f32.mrb[0].mxu0
  %246 = vmatprep.mubr.bf16.mxu0 0
  %247 = vmatmul.mubr.bf16.gmra.mrb[0].mxu0 %v122
  %v248 = vpop.f32.mrb[0].mxu0
  %v249 = vadd.f32 0.0, %v248
  %v250 = vpop.f32.mrb[0].mxu0
  %v251 = vpop.f32.mrb[0].mxu0
  %v252 = vadd.f32 0.0, %v251
  %v253 = vpop.f32.mrb[0].mxu0
  %254 = vmatprep.mubr.bf16.mxu0 0
  %255 = vmatmul.mubr.bf16.gmra.mrb[0].mxu0 %v123
  %v256 = vpop.f32.mrb[0].mxu0
  %v257 = vadd.f32 0.0, %v256
  %v258 = vpop.f32.mrb[0].mxu0
  %v259 = vpop.f32.mrb[0].mxu0
  %v260 = vadd.f32 0.0, %v259
  %v261 = vpop.f32.mrb[0].mxu0
  %262 = vmatprep.mubr.bf16.mxu0 0
  %263 = vmatmul.mubr.bf16.gmra.mrb[0].mxu0 %v124
  %v264 = vpop.f32.mrb[0].mxu0
  %v265 = vadd.f32 0.0, %v264
  %v266 = vpop.f32.mrb[0].mxu0
  %v267 = vpop.f32.mrb[0].mxu0
  %v268 = vadd.f32 0.0, %v267
  %v269 = vpop.f32.mrb[0].mxu0
  %270 = vmatprep.mubr.bf16.mxu0 0
  %271 = vmatmul.mubr.bf16.gmra.mrb[0].mxu0 %v125
  %v272 = vpop.f32.mrb[0].mxu0
  %v273 = vadd.f32 0.0, %v272
  %v274 = vpop.f32.mrb[0].mxu0
  %v275 = vpop.f32.mrb[0].mxu0
  %v276 = vadd.f32 0.0, %v275
  %v277 = vpop.f32.mrb[0].mxu0
  %278 = vdwg.mxu0
  %v279 = vadd.f32 %v54, %v217
  %v280 = vadd.f32 %v55, %v220
  %v281 = vadd.f32 %v56, %v225
  %v282 = vadd.f32 %v57, %v228
  %v283 = vadd.f32 %v58, %v233
  %v284 = vadd.f32 %v59, %v236
  %v285 = vadd.f32 %v60, %v241
  %v286 = vadd.f32 %v61, %v244
  %v287 = vadd.f32 %v62, %v249
  %v288 = vadd.f32 %v63, %v252
  %v289 = vadd.f32 %v64, %v257
  %v290 = vadd.f32 %v65, %v260
  %v291 = vadd.f32 %v66, %v265
  %v292 = vadd.f32 %v67, %v268
  %v293 = vadd.f32 %v68, %v273
  %v294 = vadd.f32 %v69, %v276
  %295 = vst [vmem:[#allocation2] sm:$0xff] %v279
  %296 = vst [vmem:[#allocation2 + $0x8] sm:$0xff] %v280
  %297 = vst [vmem:[#allocation2 + $0x10] sm:$0xff] %v281
  %298 = vst [vmem:[#allocation2 + $0x18] sm:$0xff] %v282
  %299 = vst [vmem:[#allocation2 + $0x20] sm:$0xff] %v283
  %300 = vst [vmem:[#allocation2 + $0x28] sm:$0xff] %v284
  %301 = vst [vmem:[#allocation2 + $0x30] sm:$0xff] %v285
  %302 = vst [vmem:[#allocation2 + $0x38] sm:$0xff] %v286
  %303 = vst [vmem:[#allocation2 + $0x40] sm:$0xff] %v287
  %304 = vst [vmem:[#allocation2 + $0x48] sm:$0xff] %v288
  %305 = vst [vmem:[#allocation2 + $0x50] sm:$0xff] %v289
  %306 = vst [vmem:[#allocation2 + $0x58] sm:$0xff] %v290
  %307 = vst [vmem:[#allocation2 + $0x60] sm:$0xff] %v291
  %308 = vst [vmem:[#allocation2 + $0x68] sm:$0xff] %v292
  %309 = vst [vmem:[#allocation2 + $0x70] sm:$0xff] %v293
  %310 = vst [vmem:[#allocation2 + $0x78] sm:$0xff] %v294
  // Predicated region
  $region22: #{pyramid_features_forward.10} parent=0 // pred_check
    %p311 = pneg %p18
  $region23: #{pyramid_features_forward.10} parent=0 // pred_check_branch
    %313 = sbr.rel (%p311) target = $region25
  $region24: #{pyramid_features_forward.10} parent=0 // pred_region
    %v314 = vld [vmem:[#allocation2] sm:$0xff]
    %v315 = vld [vmem:[#allocation2 + $0x8] sm:$0xff]
    %v316 = vld [vmem:[#allocation2 + $0x10] sm:$0xff]
    %v317 = vld [vmem:[#allocation2 + $0x18] sm:$0xff]
    %v318 = vld [vmem:[#allocation2 + $0x20] sm:$0xff]
    %v319 = vld [vmem:[#allocation2 + $0x28] sm:$0xff]
    %v320 = vld [vmem:[#allocation2 + $0x30] sm:$0xff]
    %v321 = vld [vmem:[#allocation2 + $0x38] sm:$0xff]
    %v322 = vld [vmem:[#allocation2 + $0x40] sm:$0xff]
    %v323 = vld [vmem:[#allocation2 + $0x48] sm:$0xff]
    %v324 = vld [vmem:[#allocation2 + $0x50] sm:$0xff]
    %v325 = vld [vmem:[#allocation2 + $0x58] sm:$0xff]
    %v326 = vld [vmem:[#allocation2 + $0x60] sm:$0xff]
    %v327 = vld [vmem:[#allocation2 + $0x68] sm:$0xff]
    %v328 = vld [vmem:[#allocation2 + $0x70] sm:$0xff]
    %v329 = vld [vmem:[#allocation2 + $0x78] sm:$0xff]
    %v330 = vld [vmem:[%s2] sm:$0x1]
    %v332 = vlaneseq
    %v333 = vshrl.u32 %v332, 7
    %v334 = vsub.s32 0, %v333
    %v335 = vrot.slane %v330, %v334
    %v337 = vadd.f32 %v314, %v335
    %v338 = vadd.f32 %v315, %v335
    %v339 = vadd.f32 %v316, %v335
    %v340 = vadd.f32 %v317, %v335
    %v341 = vadd.f32 %v318, %v335
    %v342 = vadd.f32 %v319, %v335
    %v343 = vadd.f32 %v320, %v335
    %v344 = vadd.f32 %v321, %v335
    %v345 = vadd.f32 %v322, %v335
    %v346 = vadd.f32 %v323, %v335
    %v347 = vadd.f32 %v324, %v335
    %v348 = vadd.f32 %v325, %v335
    %v349 = vadd.f32 %v326, %v335
    %v350 = vadd.f32 %v327, %v335
    %v351 = vadd.f32 %v328, %v335
    %v352 = vadd.f32 %v329, %v335
    %v353 = vld [vmem:[%s3] sm:$0xff]
    %v354 = vld [vmem:[%s3 + $0x8] sm:$0xff]
    %v355 = vld [vmem:[%s3 + $0x10] sm:$0xff]
    %v356 = vld [vmem:[%s3 + $0x18] sm:$0xff]
    %v357 = vld [vmem:[%s3 + $0x20] sm:$0xff]
    %v358 = vld [vmem:[%s3 + $0x28] sm:$0xff]
    %v359 = vld [vmem:[%s3 + $0x30] sm:$0xff]
    %v360 = vld [vmem:[%s3 + $0x38] sm:$0xff]
    %v361 = vld [vmem:[%s3 + $0x40] sm:$0xff]
    %v362 = vld [vmem:[%s3 + $0x48] sm:$0xff]
    %v363 = vld [vmem:[%s3 + $0x50] sm:$0xff]
    %v364 = vld [vmem:[%s3 + $0x58] sm:$0xff]
    %v365 = vld [vmem:[%s3 + $0x60] sm:$0xff]
    %v366 = vld [vmem:[%s3 + $0x68] sm:$0xff]
    %v367 = vld [vmem:[%s3 + $0x70] sm:$0xff]
    %v368 = vld [vmem:[%s3 + $0x78] sm:$0xff]
    %v369 = vadd.f32 %v337, %v353
    %v370 = vadd.f32 %v338, %v354
    %v371 = vadd.f32 %v339, %v355
    %v372 = vadd.f32 %v340, %v356
    %v373 = vadd.f32 %v341, %v357
    %v374 = vadd.f32 %v342, %v358
    %v375 = vadd.f32 %v343, %v359
    %v376 = vadd.f32 %v344, %v360
    %v377 = vadd.f32 %v345, %v361
    %v378 = vadd.f32 %v346, %v362
    %v379 = vadd.f32 %v347, %v363
    %v380 = vadd.f32 %v348, %v364
    %v381 = vadd.f32 %v349, %v365
    %v382 = vadd.f32 %v350, %v366
    %v383 = vadd.f32 %v351, %v367
    %v384 = vadd.f32 %v352, %v368
    %385 = vst [vmem:[%s4] sm:$0xff] %v369
    %386 = vst [vmem:[%s4 + $0x8] sm:$0xff] %v370
    %387 = vst [vmem:[%s4 + $0x10] sm:$0xff] %v371
    %388 = vst [vmem:[%s4 + $0x18] sm:$0xff] %v372
    %389 = vst [vmem:[%s4 + $0x20] sm:$0xff] %v373
    %390 = vst [vmem:[%s4 + $0x28] sm:$0xff] %v374
    %391 = vst [vmem:[%s4 + $0x30] sm:$0xff] %v375
    %392 = vst [vmem:[%s4 + $0x38] sm:$0xff] %v376
    %393 = vst [vmem:[%s4 + $0x40] sm:$0xff] %v377
    %394 = vst [vmem:[%s4 + $0x48] sm:$0xff] %v378
    %395 = vst [vmem:[%s4 + $0x50] sm:$0xff] %v379
    %396 = vst [vmem:[%s4 + $0x58] sm:$0xff] %v380
    %397 = vst [vmem:[%s4 + $0x60] sm:$0xff] %v381
    %398 = vst [vmem:[%s4 + $0x68] sm:$0xff] %v382
    %399 = vst [vmem:[%s4 + $0x70] sm:$0xff] %v383
    %400 = vst [vmem:[%s4 + $0x78] sm:$0xff] %v384
  $region25: #{pyramid_features_forward.10} parent=0 // pred_fallthru
    _
  // Predicated region
  $region26: #{pyramid_features_forward.10} parent=0 // pred_check
    _
  $region27: #{pyramid_features_forward.10} parent=0 // pred_check_branch
    %402 = sbr.rel (0) target = $region29
  $region28: #{pyramid_features_forward.10} parent=0 // pred_region
    _
  $region29: #{pyramid_features_forward.10} parent=0 // pred_fallthru
    _
  // Predicated region
  $region30: #{pyramid_features_forward.10} parent=0 // pred_check
    _
  $region31: #{pyramid_features_forward.10} parent=0 // pred_check_branch
    %404 = sbr.rel (0) target = $region33
  $region32: #{pyramid_features_forward.10} parent=0 // pred_region
    _
  $region33: #{pyramid_features_forward.10} parent=0 // pred_fallthru
    _

// kernel: pyramid_features_forward.11
$region0: #{pyramid_features_forward.11}
  #allocation0 [shape = 'u32[]', space=smem, size = 0x4, offset = 0x4, fixed_abs, tag = 'smem constant byte address 0x4 - core index']
  #allocation1 [shape = 'u32[144,128]{1,0:T(1,128)}', space=vmem, size = 0x12000, scoped, tag = 'internal scratch']
  #allocation2 [shape = 'f32[128,128]{1,0:T(8,128)}', space=vmem, size = 0x10000, scoped, tag = 'scratch operand']
  %s0 = inlined_call_operand.vmem [shape: bf16[128,384], index: 0, kind: input, shape index: {}]
  %s1 = inlined_call_operand.vmem [shape: bf16[384,128], index: 1, kind: input, shape index: {}]
  %s2 = inlined_call_operand.vmem [shape: f32[1,128], index: 2, kind: input, shape index: {}]
  %s3 = inlined_call_operand.hbm [shape: f32[128,128], index: 3, kind: output, shape index: {}]
  %s4 = sld [smem:[#allocation0]]
  $region30: #{pyramid_features_forward.11} parent=0
    _
  %s6 = ssub.s32 1, %s4
  %s7 = scalar_select 0, %s6, %s4
  $region1: #{pyramid_features_forward.11} parent=0
    #allocation3 [shape = 'u8[65536]{0}', space=vmem, size = 0x10000, scoped, tag = 'output window, operand 0, single buffered']
    #allocation4 [shape = 's32[1]{0}', space=sflag, size = 0x4, scoped, tag = 'scoped memory for pyramid_features_forward.11']
    %8 = vsyncpa [#allocation4], 0
    // Predicated region
    $region2: #{pyramid_features_forward.11} parent=1 // pred_check
      _
    $region3: #{pyramid_features_forward.11} parent=1 // pred_check_branch
      %10 = sbr.rel (0) target = $region5
    $region4: #{pyramid_features_forward.11} parent=1 // pred_region
      _
    $region5: #{pyramid_features_forward.11} parent=1 // pred_fallthru
      _
    // Predicated region
    $region6: #{pyramid_features_forward.11} parent=1 // pred_check
      _
    $region7: #{pyramid_features_forward.11} parent=1 // pred_check_branch
      %12 = sbr.rel (0) target = $region9
    $region8: #{pyramid_features_forward.11} parent=1 // pred_region
      _
    $region9: #{pyramid_features_forward.11} parent=1 // pred_fallthru
      _
    // Predicated region
    $region10: #{pyramid_features_forward.11} parent=1 // pred_check
      _
    $region11: #{pyramid_features_forward.11} parent=1 // pred_check_branch
      %14 = sbr.rel (0) target = $region13
    $region12: #{pyramid_features_forward.11} parent=1 // pred_region
      _
    $region13: #{pyramid_features_forward.11} parent=1 // pred_fallthru
      _
    %p16 = scmp.eq.s32.totalorder 0, 0
    // Predicated region
    $region14: #{pyramid_features_forward.11} parent=1 // pred_check
      %p17 = pneg %p16
    $region15: #{pyramid_features_forward.11} parent=1 // pred_check_branch
      %19 = sbr.rel (%p17) target = $region17
    $region16: #{pyramid_features_forward.11} parent=1 // pred_region
      %20 = vst [vmem:[#allocation2] sm:$0xff] 0.0
      %21 = vst [vmem:[#allocation2 + $0x8] sm:$0xff] 0.0
      %22 = vst [vmem:[#allocation2 + $0x10] sm:$0xff] 0.0
      %23 = vst [vmem:[#allocation2 + $0x18] sm:$0xff] 0.0
      %24 = vst [vmem:[#allocation2 + $0x20] sm:$0xff] 0.0
      %25 = vst [vmem:[#allocation2 + $0x28] sm:$0xff] 0.0
      %26 = vst [vmem:[#allocation2 + $0x30] sm:$0xff] 0.0
      %27 = vst [vmem:[#allocation2 + $0x38] sm:$0xff] 0.0
      %28 = vst [vmem:[#allocation2 + $0x40] sm:$0xff] 0.0
      %29 = vst [vmem:[#allocation2 + $0x48] sm:$0xff] 0.0
      %30 = vst [vmem:[#allocation2 + $0x50] sm:$0xff] 0.0
      %31 = vst [vmem:[#allocation2 + $0x58] sm:$0xff] 0.0
      %32 = vst [vmem:[#allocation2 + $0x60] sm:$0xff] 0.0
      %33 = vst [vmem:[#allocation2 + $0x68] sm:$0xff] 0.0
      %34 = vst [vmem:[#allocation2 + $0x70] sm:$0xff] 0.0
      %35 = vst [vmem:[#allocation2 + $0x78] sm:$0xff] 0.0
    $region17: #{pyramid_features_forward.11} parent=1 // pred_fallthru
      _
    %v36 = vld [vmem:[%s0] sm:$0xff]
    %v37 = vld [vmem:[%s0 + $0x8] sm:$0xf]
    %v38 = vld [vmem:[%s0 + $0xc] sm:$0xff]
    %v39 = vld [vmem:[%s0 + $0x14] sm:$0xf]
    %v40 = vld [vmem:[%s0 + $0x18] sm:$0xff]
    %v41 = vld [vmem:[%s0 + $0x20] sm:$0xf]
    %v42 = vld [vmem:[%s0 + $0x24] sm:$0xff]
    %v43 = vld [vmem:[%s0 + $0x2c] sm:$0xf]
    %v44 = vld [vmem:[%s0 + $0x30] sm:$0xff]
    %v45 = vld [vmem:[%s0 + $0x38] sm:$0xf]
    %v46 = vld [vmem:[%s0 + $0x3c] sm:$0xff]
    %v47 = vld [vmem:[%s0 + $0x44] sm:$0xf]
    %v48 = vld [vmem:[%s0 + $0x48] sm:$0xff]
    %v49 = vld [vmem:[%s0 + $0x50] sm:$0xf]
    %v50 = vld [vmem:[%s0 + $0x54] sm:$0xff]
    %v51 = vld [vmem:[%s0 + $0x5c] sm:$0xf]
    %v52 = vld [vmem:[%s0 + $0x60] sm:$0xff]
    %v53 = vld [vmem:[%s0 + $0x68] sm:$0xf]
    %v54 = vld [vmem:[%s0 + $0x6c] sm:$0xff]
    %v55 = vld [vmem:[%s0 + $0x74] sm:$0xf]
    %v56 = vld [vmem:[%s0 + $0x78] sm:$0xff]
    %v57 = vld [vmem:[%s0 + $0x80] sm:$0xf]
    %v58 = vld [vmem:[%s0 + $0x84] sm:$0xff]
    %v59 = vld [vmem:[%s0 + $0x8c] sm:$0xf]
    %v60 = vld [vmem:[%s0 + $0x90] sm:$0xff]
    %v61 = vld [vmem:[%s0 + $0x98] sm:$0xf]
    %v62 = vld [vmem:[%s0 + $0x9c] sm:$0xff]
    %v63 = vld [vmem:[%s0 + $0xa4] sm:$0xf]
    %v64 = vld [vmem:[%s0 + $0xa8] sm:$0xff]
    %v65 = vld [vmem:[%s0 + $0xb0] sm:$0xf]
    %v66 = vld [vmem:[%s0 + $0xb4] sm:$0xff]
    %v67 = vld [vmem:[%s0 + $0xbc] sm:$0xf]
    %v68 = vld [vmem:[#allocation2] sm:$0xff]
    %v69 = vld [vmem:[#allocation2 + $0x8] sm:$0xff]
    %v70 = vld [vmem:[#allocation2 + $0x10] sm:$0xff]
    %v71 = vld [vmem:[#allocation2 + $0x18] sm:$0xff]
    %v72 = vld [vmem:[#allocation2 + $0x20] sm:$0xff]
    %v73 = vld [vmem:[#allocation2 + $0x28] sm:$0xff]
    %v74 = vld [vmem:[#allocation2 + $0x30] sm:$0xff]
    %v75 = vld [vmem:[#allocation2 + $0x38] sm:$0xff]
    %v76 = vld [vmem:[#allocation2 + $0x40] sm:$0xff]
    %v77 = vld [vmem:[#allocation2 + $0x48] sm:$0xff]
    %v78 = vld [vmem:[#allocation2 + $0x50] sm:$0xff]
    %v79 = vld [vmem:[#allocation2 + $0x58] sm:$0xff]
    %v80 = vld [vmem:[#allocation2 + $0x60] sm:$0xff]
    %v81 = vld [vmem:[#allocation2 + $0x68] sm:$0xff]
    %v82 = vld [vmem:[#allocation2 + $0x70] sm:$0xff]
    %v83 = vld [vmem:[#allocation2 + $0x78] sm:$0xff]
    %v84 = vld [vmem:[%s1] sm:$0xf]
    %v85 = vld [vmem:[%s1 + $0x4] sm:$0xf]
    %v86 = vld [vmem:[%s1 + $0x8] sm:$0xf]
    %v87 = vld [vmem:[%s1 + $0xc] sm:$0xf]
    %v88 = vld [vmem:[%s1 + $0x10] sm:$0xf]
    %v89 = vld [vmem:[%s1 + $0x14] sm:$0xf]
    %v90 = vld [vmem:[%s1 + $0x18] sm:$0xf]
    %v91 = vld [vmem:[%s1 + $0x1c] sm:$0xf]
    %v92 = vld [vmem:[%s1 + $0x20] sm:$0xf]
    %v93 = vld [vmem:[%s1 + $0x24] sm:$0xf]
    %v94 = vld [vmem:[%s1 + $0x28] sm:$0xf]
    %v95 = vld [vmem:[%s1 + $0x2c] sm:$0xf]
    %v96 = vld [vmem:[%s1 + $0x30] sm:$0xf]
    %v97 = vld [vmem:[%s1 + $0x34] sm:$0xf]
    %v98 = vld [vmem:[%s1 + $0x38] sm:$0xf]
    %v99 = vld [vmem:[%s1 + $0x3c] sm:$0xf]
    %v100 = vld [vmem:[%s1 + $0x40] sm:$0xf]
    %v101 = vld [vmem:[%s1 + $0x44] sm:$0xf]
    %v102 = vld [vmem:[%s1 + $0x48] sm:$0xf]
    %v103 = vld [vmem:[%s1 + $0x4c] sm:$0xf]
    %v104 = vld [vmem:[%s1 + $0x50] sm:$0xf]
    %v105 = vld [vmem:[%s1 + $0x54] sm:$0xf]
    %v106 = vld [vmem:[%s1 + $0x58] sm:$0xf]
    %v107 = vld [vmem:[%s1 + $0x5c] sm:$0xf]
    %v108 = vld [vmem:[%s1 + $0x60] sm:$0xf]
    %v109 = vld [vmem:[%s1 + $0x64] sm:$0xf]
    %v110 = vld [vmem:[%s1 + $0x68] sm:$0xf]
    %v111 = vld [vmem:[%s1 + $0x6c] sm:$0xf]
    %v112 = vld [vmem:[%s1 + $0x70] sm:$0xf]
    %v113 = vld [vmem:[%s1 + $0x74] sm:$0xf]
    %v114 = vld [vmem:[%s1 + $0x78] sm:$0xf]
    %v115 = vld [vmem:[%s1 + $0x7c] sm:$0xf]
    %v116 = vld [vmem:[%s1 + $0x80] sm:$0xf]
    %v117 = vld [vmem:[%s1 + $0x84] sm:$0xf]
    %v118 = vld [vmem:[%s1 + $0x88] sm:$0xf]
    %v119 = vld [vmem:[%s1 + $0x8c] sm:$0xf]
    %v120 = vld [vmem:[%s1 + $0x90] sm:$0xf]
    %v121 = vld [vmem:[%s1 + $0x94] sm:$0xf]
    %v122 = vld [vmem:[%s1 + $0x98] sm:$0xf]
    %v123 = vld [vmem:[%s1 + $0x9c] sm:$0xf]
    %v124 = vld [vmem:[%s1 + $0xa0] sm:$0xf]
    %v125 = vld [vmem:[%s1 + $0xa4] sm:$0xf]
    %v126 = vld [vmem:[%s1 + $0xa8] sm:$0xf]
    %v127 = vld [vmem:[%s1 + $0xac] sm:$0xf]
    %v128 = vld [vmem:[%s1 + $0xb0] sm:$0xf]
    %v129 = vld [vmem:[%s1 + $0xb4] sm:$0xf]
    %v130 = vld [vmem:[%s1 + $0xb8] sm:$0xf]
    %v131 = vld [vmem:[%s1 + $0xbc] sm:$0xf]
    %v164 = vunpack.c.l.b16 %v36
    %v165 = vunpack.c.h.b16 %v36
    %v166 = vunpack.c.l.b16 %v37
    %v167 = vunpack.c.l.b16 %v38
    %v168 = vunpack.c.h.b16 %v38
    %v169 = vunpack.c.l.b16 %v39
    %v170 = vunpack.c.l.b16 %v40
    %v171 = vunpack.c.h.b16 %v40
    %v172 = vunpack.c.l.b16 %v41
    %v173 = vunpack.c.l.b16 %v42
    %v174 = vunpack.c.h.b16 %v42
    %v175 = vunpack.c.l.b16 %v43
    %v176 = vunpack.c.l.b16 %v44
    %v177 = vunpack.c.h.b16 %v44
    %v178 = vunpack.c.l.b16 %v45
    %v179 = vunpack.c.l.b16 %v46
    %v180 = vunpack.c.h.b16 %v46
    %v181 = vunpack.c.l.b16 %v47
    %v182 = vunpack.c.l.b16 %v48
    %v183 = vunpack.c.h.b16 %v48
    %v184 = vunpack.c.l.b16 %v49
    %v185 = vunpack.c.l.b16 %v50
    %v186 = vunpack.c.h.b16 %v50
    %v187 = vunpack.c.l.b16 %v51
    %v188 = vunpack.c.l.b16 %v52
    %v189 = vunpack.c.h.b16 %v52
    %v190 = vunpack.c.l.b16 %v53
    %v191 = vunpack.c.l.b16 %v54
    %v192 = vunpack.c.h.b16 %v54
    %v193 = vunpack.c.l.b16 %v55
    %v194 = vunpack.c.l.b16 %v56
    %v195 = vunpack.c.h.b16 %v56
    %v196 = vunpack.c.l.b16 %v57
    %v197 = vunpack.c.l.b16 %v58
    %v198 = vunpack.c.h.b16 %v58
    %v199 = vunpack.c.l.b16 %v59
    %v200 = vunpack.c.l.b16 %v60
    %v201 = vunpack.c.h.b16 %v60
    %v202 = vunpack.c.l.b16 %v61
    %v203 = vunpack.c.l.b16 %v62
    %v204 = vunpack.c.h.b16 %v62
    %v205 = vunpack.c.l.b16 %v63
    %v206 = vunpack.c.l.b16 %v64
    %v207 = vunpack.c.h.b16 %v64
    %v208 = vunpack.c.l.b16 %v65
    %v209 = vunpack.c.l.b16 %v66
    %v210 = vunpack.c.h.b16 %v66
    %v211 = vunpack.c.l.b16 %v67
    %v212 = vpack.c.b16 %v167, %v164
    %v213 = vpack.c.b16 %v168, %v165
    %v214 = vpack.c.b16 %v169, %v166
    %v215 = vpack.c.b16 %v173, %v170
    %v216 = vpack.c.b16 %v174, %v171
    %v217 = vpack.c.b16 %v175, %v172
    %v218 = vpack.c.b16 %v179, %v176
    %v219 = vpack.c.b16 %v180, %v177
    %v220 = vpack.c.b16 %v181, %v178
    %v221 = vpack.c.b16 %v185, %v182
    %v222 = vpack.c.b16 %v186, %v183
    %v223 = vpack.c.b16 %v187, %v184
    %v224 = vpack.c.b16 %v191, %v188
    %v225 = vpack.c.b16 %v192, %v189
    %v226 = vpack.c.b16 %v193, %v190
    %v227 = vpack.c.b16 %v197, %v194
    %v228 = vpack.c.b16 %v198, %v195
    %v229 = vpack.c.b16 %v199, %v196
    %v230 = vpack.c.b16 %v203, %v200
    %v231 = vpack.c.b16 %v204, %v201
    %v232 = vpack.c.b16 %v205, %v202
    %v233 = vpack.c.b16 %v209, %v206
    %v234 = vpack.c.b16 %v210, %v207
    %v235 = vpack.c.b16 %v211, %v208
    %v308 = vunpack.c.l.b16 %v84
    %v309 = vunpack.c.l.b16 %v85
    %v310 = vunpack.c.l.b16 %v86
    %v311 = vunpack.c.l.b16 %v87
    %v312 = vunpack.c.l.b16 %v88
    %v313 = vunpack.c.l.b16 %v89
    %v314 = vunpack.c.l.b16 %v90
    %v315 = vunpack.c.l.b16 %v91
    %v316 = vunpack.c.l.b16 %v92
    %v317 = vunpack.c.l.b16 %v93
    %v318 = vunpack.c.l.b16 %v94
    %v319 = vunpack.c.l.b16 %v95
    %v320 = vunpack.c.l.b16 %v96
    %v321 = vunpack.c.l.b16 %v97
    %v322 = vunpack.c.l.b16 %v98
    %v323 = vunpack.c.l.b16 %v99
    %v324 = vunpack.c.l.b16 %v100
    %v325 = vunpack.c.l.b16 %v101
    %v326 = vunpack.c.l.b16 %v102
    %v327 = vunpack.c.l.b16 %v103
    %v328 = vunpack.c.l.b16 %v104
    %v329 = vunpack.c.l.b16 %v105
    %v330 = vunpack.c.l.b16 %v106
    %v331 = vunpack.c.l.b16 %v107
    %v332 = vunpack.c.l.b16 %v108
    %v333 = vunpack.c.l.b16 %v109
    %v334 = vunpack.c.l.b16 %v110
    %v335 = vunpack.c.l.b16 %v111
    %v336 = vunpack.c.l.b16 %v112
    %v337 = vunpack.c.l.b16 %v113
    %v338 = vunpack.c.l.b16 %v114
    %v339 = vunpack.c.l.b16 %v115
    %v340 = vunpack.c.l.b16 %v116
    %v341 = vunpack.c.l.b16 %v117
    %v342 = vunpack.c.l.b16 %v118
    %v343 = vunpack.c.l.b16 %v119
    %v344 = vunpack.c.l.b16 %v120
    %v345 = vunpack.c.l.b16 %v121
    %v346 = vunpack.c.l.b16 %v122
    %v347 = vunpack.c.l.b16 %v123
    %v348 = vunpack.c.l.b16 %v124
    %v349 = vunpack.c.l.b16 %v125
    %v350 = vunpack.c.l.b16 %v126
    %v351 = vunpack.c.l.b16 %v127
    %v352 = vunpack.c.l.b16 %v128
    %v353 = vunpack.c.l.b16 %v129
    %v354 = vunpack.c.l.b16 %v130
    %v355 = vunpack.c.l.b16 %v131
    %v356 = vpack.c.b16 %v309, %v308
    %v357 = vpack.c.b16 %v311, %v310
    %v358 = vpack.c.b16 %v313, %v312
    %v359 = vpack.c.b16 %v315, %v314
    %v360 = vpack.c.b16 %v317, %v316
    %v361 = vpack.c.b16 %v319, %v318
    %v362 = vpack.c.b16 %v321, %v320
    %v363 = vpack.c.b16 %v323, %v322
    %v364 = vpack.c.b16 %v325, %v324
    %v365 = vpack.c.b16 %v327, %v326
    %v366 = vpack.c.b16 %v329, %v328
    %v367 = vpack.c.b16 %v331, %v330
    %v368 = vpack.c.b16 %v333, %v332
    %v369 = vpack.c.b16 %v335, %v334
    %v370 = vpack.c.b16 %v337, %v336
    %v371 = vpack.c.b16 %v339, %v338
    %v372 = vpack.c.b16 %v341, %v340
    %v373 = vpack.c.b16 %v343, %v342
    %v374 = vpack.c.b16 %v345, %v344
    %v375 = vpack.c.b16 %v347, %v346
    %v376 = vpack.c.b16 %v349, %v348
    %v377 = vpack.c.b16 %v351, %v350
    %v378 = vpack.c.b16 %v353, %v352
    %v379 = vpack.c.b16 %v355, %v354
    %404 = vmatprep.subr.bf16.mxu0 0
    %405 = vmatpush1.bf16.msra.mxu0 %v356
    %406 = vmatprep.subr.bf16.mxu0 0
    %407 = vmatpush1.bf16.msra.mxu0 %v357
    %408 = vmatprep.subr.bf16.mxu0 0
    %409 = vmatpush1.bf16.msra.mxu0 %v358
    %410 = vmatprep.subr.bf16.mxu0 0
    %411 = vmatpush1.bf16.msra.mxu0 %v359
    %412 = vmatprep.subr.bf16.mxu0 0
    %413 = vmatpush1.bf16.msra.mxu0 %v360
    %414 = vmatprep.subr.bf16.mxu0 0
    %415 = vmatpush1.bf16.msra.mxu0 %v361
    %416 = vmatprep.subr.bf16.mxu0 0
    %417 = vmatpush1.bf16.msra.mxu0 %v362
    %418 = vmatprep.subr.bf16.mxu0 0
    %419 = vmatpush1.bf16.msra.mxu0 %v363
    %420 = vmatprep.subr.bf16.mxu0 0
    %421 = vmatpush1.bf16.msra.mxu0 %v364
    %422 = vmatprep.subr.bf16.mxu0 0
    %423 = vmatpush1.bf16.msra.mxu0 %v365
    %424 = vmatprep.subr.bf16.mxu0 0
    %425 = vmatpush1.bf16.msra.mxu0 %v366
    %426 = vmatprep.subr.bf16.mxu0 0
    %427 = vmatpush1.bf16.msra.mxu0 %v367
    %428 = vmatprep.subr.bf16.mxu0 0
    %429 = vmatpush1.bf16.msra.mxu0 %v368
    %430 = vmatprep.subr.bf16.mxu0 0
    %431 = vmatpush1.bf16.msra.mxu0 %v369
    %432 = vmatprep.subr.bf16.mxu0 0
    %433 = vmatpush1.bf16.msra.mxu0 %v370
    %434 = vmatprep.subr.bf16.mxu0 0
    %435 = vmatpush1.bf16.msra.mxu0 %v371
    %436 = vmatprep.mubr.bf16.mxu0 %v213
    %437 = vmatmul.mubr.bf16.gmra.mrb[0].mxu0 %v212
    %v438 = vpop.f32.mrb[0].mxu0
    %v439 = vadd.f32 0.0, %v438
    %v440 = vpop.f32.mrb[0].mxu0
    %v441 = vpop.f32.mrb[0].mxu0
    %v442 = vadd.f32 0.0, %v441
    %v443 = vpop.f32.mrb[0].mxu0
    %444 = vmatprep.mubr.bf16.mxu0 %v216
    %445 = vmatmul.mubr.bf16.gmra.mrb[0].mxu0 %v215
    %v446 = vpop.f32.mrb[0].mxu0
    %v447 = vadd.f32 0.0, %v446
    %v448 = vpop.f32.mrb[0].mxu0
    %v449 = vpop.f32.mrb[0].mxu0
    %v450 = vadd.f32 0.0, %v449
    %v451 = vpop.f32.mrb[0].mxu0
    %452 = vmatprep.mubr.bf16.mxu0 %v219
    %453 = vmatmul.mubr.bf16.gmra.mrb[0].mxu0 %v218
    %v454 = vpop.f32.mrb[0].mxu0
    %v455 = vadd.f32 0.0, %v454
    %v456 = vpop.f32.mrb[0].mxu0
    %v457 = vpop.f32.mrb[0].mxu0
    %v458 = vadd.f32 0.0, %v457
    %v459 = vpop.f32.mrb[0].mxu0
    %460 = vmatprep.mubr.bf16.mxu0 %v222
    %461 = vmatmul.mubr.bf16.gmra.mrb[0].mxu0 %v221
    %v462 = vpop.f32.mrb[0].mxu0
    %v463 = vadd.f32 0.0, %v462
    %v464 = vpop.f32.mrb[0].mxu0
    %v465 = vpop.f32.mrb[0].mxu0
    %v466 = vadd.f32 0.0, %v465
    %v467 = vpop.f32.mrb[0].mxu0
    %468 = vmatprep.mubr.bf16.mxu0 %v225
    %469 = vmatmul.mubr.bf16.gmra.mrb[0].mxu0 %v224
    %v470 = vpop.f32.mrb[0].mxu0
    %v471 = vadd.f32 0.0, %v470
    %v472 = vpop.f32.mrb[0].mxu0
    %v473 = vpop.f32.mrb[0].mxu0
    %v474 = vadd.f32 0.0, %v473
    %v475 = vpop.f32.mrb[0].mxu0
    %476 = vmatprep.mubr.bf16.mxu0 %v228
    %477 = vmatmul.mubr.bf16.gmra.mrb[0].mxu0 %v227
    %v478 = vpop.f32.mrb[0].mxu0
    %v479 = vadd.f32 0.0, %v478
    %v480 = vpop.f32.mrb[0].mxu0
    %v481 = vpop.f32.mrb[0].mxu0
    %v482 = vadd.f32 0.0, %v481
    %v483 = vpop.f32.mrb[0].mxu0
    %484 = vmatprep.mubr.bf16.mxu0 %v231
    %485 = vmatmul.mubr.bf16.gmra.mrb[0].mxu0 %v230
    %v486 = vpop.f32.mrb[0].mxu0
    %v487 = vadd.f32 0.0, %v486
    %v488 = vpop.f32.mrb[0].mxu0
    %v489 = vpop.f32.mrb[0].mxu0
    %v490 = vadd.f32 0.0, %v489
    %v491 = vpop.f32.mrb[0].mxu0
    %492 = vmatprep.mubr.bf16.mxu0 %v234
    %493 = vmatmul.mubr.bf16.gmra.mrb[0].mxu0 %v233
    %v494 = vpop.f32.mrb[0].mxu0
    %v495 = vadd.f32 0.0, %v494
    %v496 = vpop.f32.mrb[0].mxu0
    %v497 = vpop.f32.mrb[0].mxu0
    %v498 = vadd.f32 0.0, %v497
    %v499 = vpop.f32.mrb[0].mxu0
    %500 = vdwg.mxu0
    %501 = vmatprep.subr.bf16.mxu0 0
    %502 = vmatpush1.bf16.msra.mxu0 %v372
    %503 = vmatprep.subr.bf16.mxu0 0
    %504 = vmatpush1.bf16.msra.mxu0 %v373
    %505 = vmatprep.subr.bf16.mxu0 0
    %506 = vmatpush1.bf16.msra.mxu0 %v374
    %507 = vmatprep.subr.bf16.mxu0 0
    %508 = vmatpush1.bf16.msra.mxu0 %v375
    %509 = vmatprep.subr.bf16.mxu0 0
    %510 = vmatpush1.bf16.msra.mxu0 %v376
    %511 = vmatprep.subr.bf16.mxu0 0
    %512 = vmatpush1.bf16.msra.mxu0 %v377
    %513 = vmatprep.subr.bf16.mxu0 0
    %514 = vmatpush1.bf16.msra.mxu0 %v378
    %515 = vmatprep.subr.bf16.mxu0 0
    %516 = vmatpush1.bf16.msra.mxu0 %v379
    %517 = vmatprep.subr.bf16.mxu0 0
    %518 = vmatpush1.bf16.msra.mxu0 0
    %519 = vmatprep.subr.bf16.mxu0 0
    %520 = vmatpush1.bf16.msra.mxu0 0
    %521 = vmatprep.subr.bf16.mxu0 0
    %522 = vmatpush1.bf16.msra.mxu0 0
    %523 = vmatprep.subr.bf16.mxu0 0
    %524 = vmatpush1.bf16.msra.mxu0 0
    %525 = vmatprep.subr.bf16.mxu0 0
    %526 = vmatpush1.bf16.msra.mxu0 0
    %527 = vmatprep.subr.bf16.mxu0 0
    %528 = vmatpush1.bf16.msra.mxu0 0
    %529 = vmatprep.subr.bf16.mxu0 0
    %530 = vmatpush1.bf16.msra.mxu0 0
    %531 = vmatprep.subr.bf16.mxu0 0
    %532 = vmatpush1.bf16.msra.mxu0 0
    %533 = vmatprep.mubr.bf16.mxu0 0
    %534 = vmatmul.mubr.bf16.gmra.mrb[0].mxu0 %v214
    %v535 = vpop.f32.mrb[0].mxu0
    %v536 = vadd.f32 %v439, %v535
    %v537 = vpop.f32.mrb[0].mxu0
    %v538 = vpop.f32.mrb[0].mxu0
    %v539 = vadd.f32 %v442, %v538
    %v540 = vpop.f32.mrb[0].mxu0
    %541 = vmatprep.mubr.bf16.mxu0 0
    %542 = vmatmul.mubr.bf16.gmra.mrb[0].mxu0 %v217
    %v543 = vpop.f32.mrb[0].mxu0
    %v544 = vadd.f32 %v447, %v543
    %v545 = vpop.f32.mrb[0].mxu0
    %v546 = vpop.f32.mrb[0].mxu0
    %v547 = vadd.f32 %v450, %v546
    %v548 = vpop.f32.mrb[0].mxu0
    %549 = vmatprep.mubr.bf16.mxu0 0
    %550 = vmatmul.mubr.bf16.gmra.mrb[0].mxu0 %v220
    %v551 = vpop.f32.mrb[0].mxu0
    %v552 = vadd.f32 %v455, %v551
    %v553 = vpop.f32.mrb[0].mxu0
    %v554 = vpop.f32.mrb[0].mxu0
    %v555 = vadd.f32 %v458, %v554
    %v556 = vpop.f32.mrb[0].mxu0
    %557 = vmatprep.mubr.bf16.mxu0 0
    %558 = vmatmul.mubr.bf16.gmra.mrb[0].mxu0 %v223
    %v559 = vpop.f32.mrb[0].mxu0
    %v560 = vadd.f32 %v463, %v559
    %v561 = vpop.f32.mrb[0].mxu0
    %v562 = vpop.f32.mrb[0].mxu0
    %v563 = vadd.f32 %v466, %v562
    %v564 = vpop.f32.mrb[0].mxu0
    %565 = vmatprep.mubr.bf16.mxu0 0
    %566 = vmatmul.mubr.bf16.gmra.mrb[0].mxu0 %v226
    %v567 = vpop.f32.mrb[0].mxu0
    %v568 = vadd.f32 %v471, %v567
    %v569 = vpop.f32.mrb[0].mxu0
    %v570 = vpop.f32.mrb[0].mxu0
    %v571 = vadd.f32 %v474, %v570
    %v572 = vpop.f32.mrb[0].mxu0
    %573 = vmatprep.mubr.bf16.mxu0 0
    %574 = vmatmul.mubr.bf16.gmra.mrb[0].mxu0 %v229
    %v575 = vpop.f32.mrb[0].mxu0
    %v576 = vadd.f32 %v479, %v575
    %v577 = vpop.f32.mrb[0].mxu0
    %v578 = vpop.f32.mrb[0].mxu0
    %v579 = vadd.f32 %v482, %v578
    %v580 = vpop.f32.mrb[0].mxu0
    %581 = vmatprep.mubr.bf16.mxu0 0
    %582 = vmatmul.mubr.bf16.gmra.mrb[0].mxu0 %v232
    %v583 = vpop.f32.mrb[0].mxu0
    %v584 = vadd.f32 %v487, %v583
    %v585 = vpop.f32.mrb[0].mxu0
    %v586 = vpop.f32.mrb[0].mxu0
    %v587 = vadd.f32 %v490, %v586
    %v588 = vpop.f32.mrb[0].mxu0
    %589 = vmatprep.mubr.bf16.mxu0 0
    %590 = vmatmul.mubr.bf16.gmra.mrb[0].mxu0 %v235
    %v591 = vpop.f32.mrb[0].mxu0
    %v592 = vadd.f32 %v495, %v591
    %v593 = vpop.f32.mrb[0].mxu0
    %v594 = vpop.f32.mrb[0].mxu0
    %v595 = vadd.f32 %v498, %v594
    %v596 = vpop.f32.mrb[0].mxu0
    %597 = vdwg.mxu0
    %v598 = vadd.f32 %v68, %v536
    %v599 = vadd.f32 %v69, %v539
    %v600 = vadd.f32 %v70, %v544
    %v601 = vadd.f32 %v71, %v547
    %v602 = vadd.f32 %v72, %v552
    %v603 = vadd.f32 %v73, %v555
    %v604 = vadd.f32 %v74, %v560
    %v605 = vadd.f32 %v75, %v563
    %v606 = vadd.f32 %v76, %v568
    %v607 = vadd.f32 %v77, %v571
    %v608 = vadd.f32 %v78, %v576
    %v609 = vadd.f32 %v79, %v579
    %v610 = vadd.f32 %v80, %v584
    %v611 = vadd.f32 %v81, %v587
    %v612 = vadd.f32 %v82, %v592
    %v613 = vadd.f32 %v83, %v595
    %614 = vst [vmem:[#allocation2] sm:$0xff] %v598
    %615 = vst [vmem:[#allocation2 + $0x8] sm:$0xff] %v599
    %616 = vst [vmem:[#allocation2 + $0x10] sm:$0xff] %v600
    %617 = vst [vmem:[#allocation2 + $0x18] sm:$0xff] %v601
    %618 = vst [vmem:[#allocation2 + $0x20] sm:$0xff] %v602
    %619 = vst [vmem:[#allocation2 + $0x28] sm:$0xff] %v603
    %620 = vst [vmem:[#allocation2 + $0x30] sm:$0xff] %v604
    %621 = vst [vmem:[#allocation2 + $0x38] sm:$0xff] %v605
    %622 = vst [vmem:[#allocation2 + $0x40] sm:$0xff] %v606
    %623 = vst [vmem:[#allocation2 + $0x48] sm:$0xff] %v607
    %624 = vst [vmem:[#allocation2 + $0x50] sm:$0xff] %v608
    %625 = vst [vmem:[#allocation2 + $0x58] sm:$0xff] %v609
    %626 = vst [vmem:[#allocation2 + $0x60] sm:$0xff] %v610
    %627 = vst [vmem:[#allocation2 + $0x68] sm:$0xff] %v611
    %628 = vst [vmem:[#allocation2 + $0x70] sm:$0xff] %v612
    %629 = vst [vmem:[#allocation2 + $0x78] sm:$0xff] %v613
    // Predicated region
    $region18: #{pyramid_features_forward.11} parent=1 // pred_check
      %p630 = pneg %p16
    $region19: #{pyramid_features_forward.11} parent=1 // pred_check_branch
      %632 = sbr.rel (%p630) target = $region21
    $region20: #{pyramid_features_forward.11} parent=1 // pred_region
      %v633 = vld [vmem:[#allocation2] sm:$0xff]
      %v634 = vld [vmem:[#allocation2 + $0x8] sm:$0xff]
      %v635 = vld [vmem:[#allocation2 + $0x10] sm:$0xff]
      %v636 = vld [vmem:[#allocation2 + $0x18] sm:$0xff]
      %v637 = vld [vmem:[#allocation2 + $0x20] sm:$0xff]
      %v638 = vld [vmem:[#allocation2 + $0x28] sm:$0xff]
      %v639 = vld [vmem:[#allocation2 + $0x30] sm:$0xff]
      %v640 = vld [vmem:[#allocation2 + $0x38] sm:$0xff]
      %v641 = vld [vmem:[#allocation2 + $0x40] sm:$0xff]
      %v642 = vld [vmem:[#allocation2 + $0x48] sm:$0xff]
      %v643 = vld [vmem:[#allocation2 + $0x50] sm:$0xff]
      %v644 = vld [vmem:[#allocation2 + $0x58] sm:$0xff]
      %v645 = vld [vmem:[#allocation2 + $0x60] sm:$0xff]
      %v646 = vld [vmem:[#allocation2 + $0x68] sm:$0xff]
      %v647 = vld [vmem:[#allocation2 + $0x70] sm:$0xff]
      %v648 = vld [vmem:[#allocation2 + $0x78] sm:$0xff]
      %v649 = vld [vmem:[%s2] sm:$0x1]
      %v651 = vlaneseq
      %v652 = vshrl.u32 %v651, 7
      %v653 = vsub.s32 0, %v652
      %v654 = vrot.slane %v649, %v653
      %v656 = vadd.f32 %v633, %v654
      %v657 = vadd.f32 %v634, %v654
      %v658 = vadd.f32 %v635, %v654
      %v659 = vadd.f32 %v636, %v654
      %v660 = vadd.f32 %v637, %v654
      %v661 = vadd.f32 %v638, %v654
      %v662 = vadd.f32 %v639, %v654
      %v663 = vadd.f32 %v640, %v654
      %v664 = vadd.f32 %v641, %v654
      %v665 = vadd.f32 %v642, %v654
      %v666 = vadd.f32 %v643, %v654
      %v667 = vadd.f32 %v644, %v654
      %v668 = vadd.f32 %v645, %v654
      %v669 = vadd.f32 %v646, %v654
      %v670 = vadd.f32 %v647, %v654
      %v671 = vadd.f32 %v648, %v654
      %672 = vst [vmem:[#allocation3] sm:$0xff] %v656
      %673 = vst [vmem:[#allocation3 + $0x8] sm:$0xff] %v657
      %674 = vst [vmem:[#allocation3 + $0x10] sm:$0xff] %v658
      %675 = vst [vmem:[#allocation3 + $0x18] sm:$0xff] %v659
      %676 = vst [vmem:[#allocation3 + $0x20] sm:$0xff] %v660
      %677 = vst [vmem:[#allocation3 + $0x28] sm:$0xff] %v661
      %678 = vst [vmem:[#allocation3 + $0x30] sm:$0xff] %v662
      %679 = vst [vmem:[#allocation3 + $0x38] sm:$0xff] %v663
      %680 = vst [vmem:[#allocation3 + $0x40] sm:$0xff] %v664
      %681 = vst [vmem:[#allocation3 + $0x48] sm:$0xff] %v665
      %682 = vst [vmem:[#allocation3 + $0x50] sm:$0xff] %v666
      %683 = vst [vmem:[#allocation3 + $0x58] sm:$0xff] %v667
      %684 = vst [vmem:[#allocation3 + $0x60] sm:$0xff] %v668
      %685 = vst [vmem:[#allocation3 + $0x68] sm:$0xff] %v669
      %686 = vst [vmem:[#allocation3 + $0x70] sm:$0xff] %v670
      %687 = vst [vmem:[#allocation3 + $0x78] sm:$0xff] %v671
    $region21: #{pyramid_features_forward.11} parent=1 // pred_fallthru
      _
    // Predicated region
    $region22: #{pyramid_features_forward.11} parent=1 // pred_check
      _
    $region23: #{pyramid_features_forward.11} parent=1 // pred_check_branch
      %689 = sbr.rel (0) target = $region25
    $region24: #{pyramid_features_forward.11} parent=1 // pred_region
      %s691 = ssub.s32 2048, 2048
      %692 = vsyncadd [#allocation4], %s691
      %s693 = sshll.u32 [#allocation3], 4
      %s694 = int_to_ptr.vmem [resolvable:$true] %s693
      %699 = dma.vmem_to_hbm [thread:$0]  %s694, 2048, %s3, [#allocation4], 128, 128, 8
    $region25: #{pyramid_features_forward.11} parent=1 // pred_fallthru
      _
    // Predicated region
    $region26: #{pyramid_features_forward.11} parent=1 // pred_check
      _
    $region27: #{pyramid_features_forward.11} parent=1 // pred_check_branch
      %701 = sbr.rel (0) target = $region29
    $region28: #{pyramid_features_forward.11} parent=1 // pred_region
      %702 = dma.done [#allocation4], 2048
    $region29: #{pyramid_features_forward.11} parent=1 // pred_fallthru
      _
    %703 = vsyncpa [#allocation4], 1

// kernel: pyramid_features_forward.12
$region0: #{pyramid_features_forward.12}
  #allocation0 [shape = 'u32[]', space=smem, size = 0x4, offset = 0x4, fixed_abs, tag = 'smem constant byte address 0x4 - core index']
  #allocation1 [shape = 'u32[144,128]{1,0:T(1,128)}', space=vmem, size = 0x12000, scoped, tag = 'internal scratch']
  #allocation2 [shape = 'f32[256,128]{1,0:T(8,128)}', space=vmem, size = 0x20000, scoped, tag = 'scratch operand']
  %s0 = inlined_call_operand.vmem [shape: bf16[512,128], index: 0, kind: input, shape index: {}]
  %s1 = inlined_call_operand.vmem [shape: bf16[128,128], index: 1, kind: input, shape index: {}]
  %s2 = inlined_call_operand.vmem [shape: f32[1,128], index: 2, kind: input, shape index: {}]
  %s3 = inlined_call_operand.vmem [shape: f32[512,128], index: 3, kind: input, shape index: {}]
  %s4 = inlined_call_operand.vmem [shape: f32[512,128], index: 4, kind: output, shape index: {}]
  %s5 = sld [smem:[#allocation0]]
  $region57: #{pyramid_features_forward.12} parent=0
    _
  %s7 = ssub.s32 1, %s5
  %s8 = scalar_select 0, %s7, %s5
  loop: start=0, step=1, limit=4
  $region2: #{pyramid_features_forward.12} parent=0 // loop_pre_header
    _
  $region3: #{pyramid_features_forward.12} parent=0 // loop_header
    %s10 = sphi 0, %s14
    %p11 = scmp.ge.s32.totalorder %s10, 4
    %s17 = sphi 0, %s36
    %s18 = sphi 0, %s32
    %s19 = sphi 0, %s28
    %s20 = sphi 0, %s17
    %s21 = sphi 0, %s18
    %s22 = sphi 0, %s19
    %s23 = sphi 0, %s20
    %s24 = sphi 0, %s21
    %s25 = sphi 0, %s22
    %s41 = sphi 0, %s43
    %s44 = sphi 0, %s41
    %s45 = sphi 0, %s44
    %s61 = sphi 0, %s45
    %s69 = sphi 0, %s71
    %s72 = sphi 0, %s69
    %s73 = sphi 0, %s72
    %s89 = sphi 0, %s73
    %s95 = sphi 0, %s97
    %s98 = sphi 0, %s95
    %s99 = sphi 0, %s98
    %s115 = sphi 0, %s99
    %s123 = sphi 0, %s125
    %s126 = sphi 0, %s123
    %s127 = sphi 0, %s126
    %s143 = sphi 0, %s127
    %s151 = sphi 0, %s153
    %s154 = sphi 0, %s151
    %s155 = sphi 0, %s154
    %s171 = sphi 0, %s155
  $region4: #{pyramid_features_forward.12} parent=0 // loop_header_branch
    %13 = sbr.rel (%p11) target = $region8
  $region5: #{pyramid_features_forward.12} parent=0 // loop_body
    %s15 = ssub.s32 %s10, 1
    %s16 = ssub.s32 %s10, 2
    %s26 = sadd.s32 1, %s19
    %p27 = scmp.ge.s32.totalorder %s26, 1
    %s28 = scalar_select %p27, 0, %s26
    %s29 = sadd.s32 1, %s18
    %s30 = scalar_select %p27, %s29, %s18
    %p31 = scmp.ge.s32.totalorder %s30, 1
    %s32 = scalar_select %p31, 0, %s30
    %s33 = sadd.s32 1, %s17
    %s34 = scalar_select %p31, %s33, %s17
    %p35 = scmp.ge.s32.totalorder %s34, 2
    %s36 = scalar_select %p35, 0, %s34
    %s37 = ssub.s32 %s17, %s36
    %s38 = ssub.s32 %s19, %s28
    %s39 = sor.u32 %s37, %s38
    %p40 = scmp.eq.s32.totalorder %s39, 0
    %s42 = sadd.s32 %s41, 1
    %s43 = scalar_select %p40, %s41, %s42
    %p46 = pneg %p40
    %p47 = scmp.eq.s32.totalorder %s10, 1
    %p48 = por %p46, %p47
    %p49 = scmp.ne.s32.totalorder %s41, %s44
    %p50 = scmp.eq.s32.totalorder %s10, 0
    %p51 = por %p49, %p50
    %p52 = scmp.ne.s32.totalorder %s41, %s44
    %p53 = scmp.eq.s32.totalorder %s15, 1
    %p54 = por %p52, %p53
    %p55 = scmp.ne.s32.totalorder %s44, %s45
    %p56 = scmp.eq.s32.totalorder %s15, 0
    %p57 = por %p55, %p56
    %p58 = scmp.ne.s32.totalorder %s44, %s45
    %p59 = scmp.eq.s32.totalorder %s16, 1
    %p60 = por %p58, %p59
    %p62 = scmp.ne.s32.totalorder %s45, %s61
    %p63 = scmp.eq.s32.totalorder %s16, 0
    %p64 = por %p62, %p63
    %s65 = ssub.s32 %s19, %s28
    %s66 = ssub.s32 %s18, %s32
    %s67 = sor.u32 %s65, %s66
    %p68 = scmp.eq.s32.totalorder %s67, 0
    %s70 = sadd.s32 %s69, 1
    %s71 = scalar_select %p68, %s69, %s70
    %p74 = pneg %p68
    %p75 = scmp.eq.s32.totalorder %s10, 1
    %p76 = por %p74, %p75
    %p77 = scmp.ne.s32.totalorder %s69, %s72
    %p78 = scmp.eq.s32.totalorder %s10, 0
    %p79 = por %p77, %p78
    %p80 = scmp.ne.s32.totalorder %s69, %s72
    %p81 = scmp.eq.s32.totalorder %s15, 1
    %p82 = por %p80, %p81
    %p83 = scmp.ne.s32.totalorder %s72, %s73
    %p84 = scmp.eq.s32.totalorder %s15, 0
    %p85 = por %p83, %p84
    %p86 = scmp.ne.s32.totalorder %s72, %s73
    %p87 = scmp.eq.s32.totalorder %s16, 1
    %p88 = por %p86, %p87
    %p90 = scmp.ne.s32.totalorder %s73, %s89
    %p91 = scmp.eq.s32.totalorder %s16, 0
    %p92 = por %p90, %p91
    %s93 = ssub.s32 %s18, %s32
    %p94 = scmp.eq.s32.totalorder %s93, 0
    %s96 = sadd.s32 %s95, 1
    %s97 = scalar_select %p94, %s95, %s96
    %p100 = pneg %p94
    %p101 = scmp.eq.s32.totalorder %s10, 1
    %p102 = por %p100, %p101
    %p103 = scmp.ne.s32.totalorder %s95, %s98
    %p104 = scmp.eq.s32.totalorder %s10, 0
    %p105 = por %p103, %p104
    %p106 = scmp.ne.s32.totalorder %s95, %s98
    %p107 = scmp.eq.s32.totalorder %s15, 1
    %p108 = por %p106, %p107
    %p109 = scmp.ne.s32.totalorder %s98, %s99
    %p110 = scmp.eq.s32.totalorder %s15, 0
    %p111 = por %p109, %p110
    %p112 = scmp.ne.s32.totalorder %s98, %s99
    %p113 = scmp.eq.s32.totalorder %s16, 1
    %p114 = por %p112, %p113
    %p116 = scmp.ne.s32.totalorder %s99, %s115
    %p117 = scmp.eq.s32.totalorder %s16, 0
    %p118 = por %p116, %p117
    %s119 = ssub.s32 %s17, %s36
    %s120 = ssub.s32 %s18, %s32
    %s121 = sor.u32 %s119, %s120
    %p122 = scmp.eq.s32.totalorder %s121, 0
    %s124 = sadd.s32 %s123, 1
    %s125 = scalar_select %p122, %s123, %s124
    %p128 = pneg %p122
    %p129 = scmp.eq.s32.totalorder %s10, 1
    %p130 = por %p128, %p129
    %p131 = scmp.ne.s32.totalorder %s123, %s126
    %p132 = scmp.eq.s32.totalorder %s10, 0
    %p133 = por %p131, %p132
    %p134 = scmp.ne.s32.totalorder %s123, %s126
    %p135 = scmp.eq.s32.totalorder %s15, 1
    %p136 = por %p134, %p135
    %p137 = scmp.ne.s32.totalorder %s126, %s127
    %p138 = scmp.eq.s32.totalorder %s15, 0
    %p139 = por %p137, %p138
    %p140 = scmp.ne.s32.totalorder %s126, %s127
    %p141 = scmp.eq.s32.totalorder %s16, 1
    %p142 = por %p140, %p141
    %p144 = scmp.ne.s32.totalorder %s127, %s143
    %p145 = scmp.eq.s32.totalorder %s16, 0
    %p146 = por %p144, %p145
    %s147 = ssub.s32 %s17, %s36
    %s148 = ssub.s32 %s18, %s32
    %s149 = sor.u32 %s147, %s148
    %p150 = scmp.eq.s32.totalorder %s149, 0
    %s152 = sadd.s32 %s151, 1
    %s153 = scalar_select %p150, %s151, %s152
    %p156 = pneg %p150
    %p157 = scmp.eq.s32.totalorder %s10, 1
    %p158 = por %p156, %p157
    %p159 = scmp.ne.s32.totalorder %s151, %s154
    %p160 = scmp.eq.s32.totalorder %s10, 0
    %p161 = por %p159, %p160
    %p162 = scmp.ne.s32.totalorder %s151, %s154
    %p163 = scmp.eq.s32.totalorder %s15, 1
    %p164 = por %p162, %p163
    %p165 = scmp.ne.s32.totalorder %s154, %s155
    %p166 = scmp.eq.s32.totalorder %s15, 0
    %p167 = por %p165, %p166
    %p168 = scmp.ne.s32.totalorder %s154, %s155
    %p169 = scmp.eq.s32.totalorder %s16, 1
    %p170 = por %p168, %p169
    %p172 = scmp.ne.s32.totalorder %s155, %s171
    %p173 = scmp.eq.s32.totalorder %s16, 0
    %p174 = por %p172, %p173
    %p175 = scmp.le.s32.totalorder 1, %s10
    %p176 = scmp.lt.s32.totalorder %s10, 3
    %p177 = pnand %p175, %p176
    %p178 = pneg %p177
    // Predicated region
    $region9: #{pyramid_features_forward.12} parent=5 // pred_check
      _
    $region10: #{pyramid_features_forward.12} parent=5 // pred_check_branch
      %180 = sbr.rel (%p177) target = $region12
    $region11: #{pyramid_features_forward.12} parent=5 // pred_region
      %s181 = ssub.s32 %s10, 1
      // Predicated region
      $region13: #{pyramid_features_forward.12} parent=11 // pred_check
        %p182 = pneg %p85
      $region14: #{pyramid_features_forward.12} parent=11 // pred_check_branch
        %184 = sbr.rel (%p182) target = $region16
      $region15: #{pyramid_features_forward.12} parent=11 // pred_region
        %s185 = smul.u32 16, %s22
        %p186 = scmp.lt.s32.totalorder %s185, 15
        %s187 = scalar_select %p186, %s185, 15
        %p188 = scmp.lt.s32.totalorder %s21, 0
        %s189 = scalar_select %p188, %s21, 0
        %s190 = sadd.s32 %s189, %s187
        %s191 = smul.addr %s190, 4
        %s192 = scalar_lea.vmem %s1, %s191
        %s193 = smul.u32 16, %s22
      $region16: #{pyramid_features_forward.12} parent=11 // pred_fallthru
        _
      // Predicated region
      $region17: #{pyramid_features_forward.12} parent=11 // pred_check
        %p194 = pneg %p111
      $region18: #{pyramid_features_forward.12} parent=11 // pred_check_branch
        %196 = sbr.rel (%p194) target = $region20
      $region19: #{pyramid_features_forward.12} parent=11 // pred_region
        %p197 = scmp.lt.s32.totalorder %s21, 0
        %s198 = scalar_select %p197, %s21, 0
        %s199 = scalar_lea.vmem %s2, %s198
      $region20: #{pyramid_features_forward.12} parent=11 // pred_fallthru
        _
    $region12: #{pyramid_features_forward.12} parent=5 // pred_fallthru
      _
    %p200 = scmp.lt.s32.totalorder %s10, 2
    // Predicated region
    $region21: #{pyramid_features_forward.12} parent=5 // pred_check
      %p201 = pneg %p200
    $region22: #{pyramid_features_forward.12} parent=5 // pred_check_branch
      %203 = sbr.rel (%p201) target = $region24
    $region23: #{pyramid_features_forward.12} parent=5 // pred_region
      // Predicated region
      $region25: #{pyramid_features_forward.12} parent=23 // pred_check
        %p204 = pneg %p51
      $region26: #{pyramid_features_forward.12} parent=23 // pred_check_branch
        %206 = sbr.rel (%p204) target = $region28
      $region27: #{pyramid_features_forward.12} parent=23 // pred_region
        %s207 = smul.u32 32, %s17
        %p208 = scmp.lt.s32.totalorder %s207, 63
        %s209 = scalar_select %p208, %s207, 63
        %p210 = scmp.lt.s32.totalorder %s19, 0
        %s211 = scalar_select %p210, %s19, 0
        %s212 = sadd.s32 %s211, %s209
        %s213 = smul.addr %s212, 4
        %s214 = scalar_lea.vmem %s0, %s213
        %s215 = smul.u32 32, %s17
      $region28: #{pyramid_features_forward.12} parent=23 // pred_fallthru
        _
      // Predicated region
      $region29: #{pyramid_features_forward.12} parent=23 // pred_check
        %p216 = pneg %p133
      $region30: #{pyramid_features_forward.12} parent=23 // pred_check_branch
        %218 = sbr.rel (%p216) target = $region32
      $region31: #{pyramid_features_forward.12} parent=23 // pred_region
        %s219 = smul.u32 32, %s17
        %p220 = scmp.lt.s32.totalorder %s219, 63
        %s221 = scalar_select %p220, %s219, 63
        %p222 = scmp.lt.s32.totalorder %s18, 0
        %s223 = scalar_select %p222, %s18, 0
        %s224 = sadd.s32 %s223, %s221
        %s225 = smul.addr %s224, 8
        %s226 = scalar_lea.vmem %s3, %s225
        %s227 = smul.u32 32, %s17
      $region32: #{pyramid_features_forward.12} parent=23 // pred_fallthru
        _
    $region24: #{pyramid_features_forward.12} parent=5 // pred_fallthru
      _
    %p228 = scmp.le.s32.totalorder 1, %s10
    %p229 = scmp.lt.s32.totalorder %s10, 3
    %p230 = pnand %p228, %p229
    %p231 = pneg %p230
    // Predicated region
    $region33: #{pyramid_features_forward.12} parent=5 // pred_check
      _
    $region34: #{pyramid_features_forward.12} parent=5 // pred_check_branch
      %233 = sbr.rel (%p230) target = $region36
    $region35: #{pyramid_features_forward.12} parent=5 // pred_region
      %s234 = ssub.s32 %s10, 1
      %s235 = smul.u32 32, %s20
      %p236 = scmp.lt.s32.totalorder %s235, 63
      %s237 = scalar_select %p236, %s235, 63
      %p238 = scmp.lt.s32.totalorder %s22, 0
      %s239 = scalar_select %p238, %s22, 0
      %s240 = sadd.s32 %s239, %s237
      %s241 = smul.addr %s240, 4
      %s242 = scalar_lea.vmem %s0, %s241
      %p243 = pneg %p57
      %p244 = pneg %p54
      %s245 = smul.u32 16, %s22
      %p246 = scmp.lt.s32.totalorder %s245, 15
      %s247 = scalar_select %p246, %s245, 15
      %p248 = scmp.lt.s32.totalorder %s21, 0
      %s249 = scalar_select %p248, %s21, 0
      %s250 = sadd.s32 %s249, %s247
      %s251 = smul.addr %s250, 4
      %s252 = scalar_lea.vmem %s1, %s251
      %p253 = pneg %p85
      %p254 = pneg %p82
      %p255 = scmp.lt.s32.totalorder %s21, 0
      %s256 = scalar_select %p255, %s21, 0
      %s257 = scalar_lea.vmem %s2, %s256
      %p258 = pneg %p111
      %p259 = pneg %p108
      %s260 = smul.u32 32, %s20
      %p261 = scmp.lt.s32.totalorder %s260, 63
      %s262 = scalar_select %p261, %s260, 63
      %p263 = scmp.lt.s32.totalorder %s21, 0
      %s264 = scalar_select %p263, %s21, 0
      %s265 = sadd.s32 %s264, %s262
      %s266 = smul.addr %s265, 8
      %s267 = scalar_lea.vmem %s3, %s266
      %p268 = pneg %p139
      %p269 = pneg %p136
      %p270 = pneg %p167
      %p271 = pneg %p164
      %s272 = smul.u32 32, %s20
      %p273 = scmp.lt.s32.totalorder %s272, 63
      %s274 = scalar_select %p273, %s272, 63
      %p275 = scmp.lt.s32.totalorder %s21, 0
      %s276 = scalar_select %p275, %s21, 0
      %s277 = sadd.s32 %s276, %s274
      %s278 = smul.addr %s277, 8
      %s279 = scalar_lea.vmem %s4, %s278
      %s280 = smul.u32 32, %s20
      %p281 = scmp.lt.s32.totalorder %s280, 63
      %s282 = scalar_select %p281, %s280, 63
      %p283 = scmp.lt.s32.totalorder %s22, 0
      %s284 = scalar_select %p283, %s22, 0
      %s285 = sadd.s32 %s284, %s282
      %s286 = smul.addr %s285, 4
      %s287 = scalar_lea.vmem %s0, %s286
      %s288 = smul.u32 32, %s20
      %s289 = smul.u32 16, %s22
      %p290 = scmp.lt.s32.totalorder %s289, 15
      %s291 = scalar_select %p290, %s289, 15
      %p292 = scmp.lt.s32.totalorder %s21, 0
      %s293 = scalar_select %p292, %s21, 0
      %s294 = sadd.s32 %s293, %s291
      %s295 = smul.addr %s294, 4
      %s296 = scalar_lea.vmem %s1, %s295
      %s297 = smul.u32 16, %s22
      %p298 = scmp.lt.s32.totalorder %s21, 0
      %s299 = scalar_select %p298, %s21, 0
      %s300 = scalar_lea.vmem %s2, %s299
      %s301 = smul.u32 32, %s20
      %p302 = scmp.lt.s32.totalorder %s301, 63
      %s303 = scalar_select %p302, %s301, 63
      %p304 = scmp.lt.s32.totalorder %s21, 0
      %s305 = scalar_select %p304, %s21, 0
      %s306 = sadd.s32 %s305, %s303
      %s307 = smul.addr %s306, 8
      %s308 = scalar_lea.vmem %s3, %s307
      %s309 = smul.u32 32, %s20
      %s310 = smul.u32 32, %s20
      %p311 = scmp.lt.s32.totalorder %s310, 63
      %s312 = scalar_select %p311, %s310, 63
      %p313 = scmp.lt.s32.totalorder %s21, 0
      %s314 = scalar_select %p313, %s21, 0
      %s315 = sadd.s32 %s314, %s312
      %s316 = smul.addr %s315, 8
      %s317 = scalar_lea.vmem %s4, %s316
      %s318 = smul.u32 32, %s20
      %p320 = scmp.eq.s32.totalorder %s22, 0
      // Predicated region
      $region37: #{pyramid_features_forward.12} parent=35 // pred_check
        %p321 = pneg %p320
      $region38: #{pyramid_features_forward.12} parent=35 // pred_check_branch
        %323 = sbr.rel (%p321) target = $region40
      $region39: #{pyramid_features_forward.12} parent=35 // pred_region
        %324 = vst [vmem:[#allocation2] sm:$0xff] 0.0
        %325 = vst [vmem:[#allocation2 + $0x8] sm:$0xff] 0.0
        %326 = vst [vmem:[#allocation2 + $0x10] sm:$0xff] 0.0
        %327 = vst [vmem:[#allocation2 + $0x18] sm:$0xff] 0.0
        %328 = vst [vmem:[#allocation2 + $0x20] sm:$0xff] 0.0
        %329 = vst [vmem:[#allocation2 + $0x28] sm:$0xff] 0.0
        %330 = vst [vmem:[#allocation2 + $0x30] sm:$0xff] 0.0
        %331 = vst [vmem:[#allocation2 + $0x38] sm:$0xff] 0.0
        %332 = vst [vmem:[#allocation2 + $0x40] sm:$0xff] 0.0
        %333 = vst [vmem:[#allocation2 + $0x48] sm:$0xff] 0.0
        %334 = vst [vmem:[#allocation2 + $0x50] sm:$0xff] 0.0
        %335 = vst [vmem:[#allocation2 + $0x58] sm:$0xff] 0.0
        %336 = vst [vmem:[#allocation2 + $0x60] sm:$0xff] 0.0
        %337 = vst [vmem:[#allocation2 + $0x68] sm:$0xff] 0.0
        %338 = vst [vmem:[#allocation2 + $0x70] sm:$0xff] 0.0
        %339 = vst [vmem:[#allocation2 + $0x78] sm:$0xff] 0.0
        %340 = vst [vmem:[#allocation2 + $0x80] sm:$0xff] 0.0
        %341 = vst [vmem:[#allocation2 + $0x88] sm:$0xff] 0.0
        %342 = vst [vmem:[#allocation2 + $0x90] sm:$0xff] 0.0
        %343 = vst [vmem:[#allocation2 + $0x98] sm:$0xff] 0.0
        %344 = vst [vmem:[#allocation2 + $0xa0] sm:$0xff] 0.0
        %345 = vst [vmem:[#allocation2 + $0xa8] sm:$0xff] 0.0
        %346 = vst [vmem:[#allocation2 + $0xb0] sm:$0xff] 0.0
        %347 = vst [vmem:[#allocation2 + $0xb8] sm:$0xff] 0.0
        %348 = vst [vmem:[#allocation2 + $0xc0] sm:$0xff] 0.0
        %349 = vst [vmem:[#allocation2 + $0xc8] sm:$0xff] 0.0
        %350 = vst [vmem:[#allocation2 + $0xd0] sm:$0xff] 0.0
        %351 = vst [vmem:[#allocation2 + $0xd8] sm:$0xff] 0.0
        %352 = vst [vmem:[#allocation2 + $0xe0] sm:$0xff] 0.0
        %353 = vst [vmem:[#allocation2 + $0xe8] sm:$0xff] 0.0
        %354 = vst [vmem:[#allocation2 + $0xf0] sm:$0xff] 0.0
        %355 = vst [vmem:[#allocation2 + $0xf8] sm:$0xff] 0.0
      $region40: #{pyramid_features_forward.12} parent=35 // pred_fallthru
        _
      %v356 = vld [vmem:[%s287] sm:$0xf]
      %v357 = vld [vmem:[%s287 + $0x4] sm:$0xf]
      %v358 = vld [vmem:[%s287 + $0x8] sm:$0xf]
      %v359 = vld [vmem:[%s287 + $0xc] sm:$0xf]
      %v360 = vld [vmem:[%s287 + $0x10] sm:$0xf]
      %v361 = vld [vmem:[%s287 + $0x14] sm:$0xf]
      %v362 = vld [vmem:[%s287 + $0x18] sm:$0xf]
      %v363 = vld [vmem:[%s287 + $0x1c] sm:$0xf]
      %v364 = vld [vmem:[%s287 + $0x20] sm:$0xf]
      %v365 = vld [vmem:[%s287 + $0x24] sm:$0xf]
      %v366 = vld [vmem:[%s287 + $0x28] sm:$0xf]
      %v367 = vld [vmem:[%s287 + $0x2c] sm:$0xf]
      %v368 = vld [vmem:[%s287 + $0x30] sm:$0xf]
      %v369 = vld [vmem:[%s287 + $0x34] sm:$0xf]
      %v370 = vld [vmem:[%s287 + $0x38] sm:$0xf]
      %v371 = vld [vmem:[%s287 + $0x3c] sm:$0xf]
      %v372 = vld [vmem:[%s287 + $0x40] sm:$0xf]
      %v373 = vld [vmem:[%s287 + $0x44] sm:$0xf]
      %v374 = vld [vmem:[%s287 + $0x48] sm:$0xf]
      %v375 = vld [vmem:[%s287 + $0x4c] sm:$0xf]
      %v376 = vld [vmem:[%s287 + $0x50] sm:$0xf]
      %v377 = vld [vmem:[%s287 + $0x54] sm:$0xf]
      %v378 = vld [vmem:[%s287 + $0x58] sm:$0xf]
      %v379 = vld [vmem:[%s287 + $0x5c] sm:$0xf]
      %v380 = vld [vmem:[%s287 + $0x60] sm:$0xf]
      %v381 = vld [vmem:[%s287 + $0x64] sm:$0xf]
      %v382 = vld [vmem:[%s287 + $0x68] sm:$0xf]
      %v383 = vld [vmem:[%s287 + $0x6c] sm:$0xf]
      %v384 = vld [vmem:[%s287 + $0x70] sm:$0xf]
      %v385 = vld [vmem:[%s287 + $0x74] sm:$0xf]
      %v386 = vld [vmem:[%s287 + $0x78] sm:$0xf]
      %v387 = vld [vmem:[%s287 + $0x7c] sm:$0xf]
      %v388 = vld [vmem:[#allocation2] sm:$0xff]
      %v389 = vld [vmem:[#allocation2 + $0x8] sm:$0xff]
      %v390 = vld [vmem:[#allocation2 + $0x10] sm:$0xff]
      %v391 = vld [vmem:[#allocation2 + $0x18] sm:$0xff]
      %v392 = vld [vmem:[#allocation2 + $0x20] sm:$0xff]
      %v393 = vld [vmem:[#allocation2 + $0x28] sm:$0xff]
      %v394 = vld [vmem:[#allocation2 + $0x30] sm:$0xff]
      %v395 = vld [vmem:[#allocation2 + $0x38] sm:$0xff]
      %v396 = vld [vmem:[#allocation2 + $0x40] sm:$0xff]
      %v397 = vld [vmem:[#allocation2 + $0x48] sm:$0xff]
      %v398 = vld [vmem:[#allocation2 + $0x50] sm:$0xff]
      %v399 = vld [vmem:[#allocation2 + $0x58] sm:$0xff]
      %v400 = vld [vmem:[#allocation2 + $0x60] sm:$0xff]
      %v401 = vld [vmem:[#allocation2 + $0x68] sm:$0xff]
      %v402 = vld [vmem:[#allocation2 + $0x70] sm:$0xff]
      %v403 = vld [vmem:[#allocation2 + $0x78] sm:$0xff]
      %v404 = vld [vmem:[#allocation2 + $0x80] sm:$0xff]
      %v405 = vld [vmem:[#allocation2 + $0x88] sm:$0xff]
      %v406 = vld [vmem:[#allocation2 + $0x90] sm:$0xff]
      %v407 = vld [vmem:[#allocation2 + $0x98] sm:$0xff]
      %v408 = vld [vmem:[#allocation2 + $0xa0] sm:$0xff]
      %v409 = vld [vmem:[#allocation2 + $0xa8] sm:$0xff]
      %v410 = vld [vmem:[#allocation2 + $0xb0] sm:$0xff]
      %v411 = vld [vmem:[#allocation2 + $0xb8] sm:$0xff]
      %v412 = vld [vmem:[#allocation2 + $0xc0] sm:$0xff]
      %v413 = vld [vmem:[#allocation2 + $0xc8] sm:$0xff]
      %v414 = vld [vmem:[#allocation2 + $0xd0] sm:$0xff]
      %v415 = vld [vmem:[#allocation2 + $0xd8] sm:$0xff]
      %v416 = vld [vmem:[#allocation2 + $0xe0] sm:$0xff]
      %v417 = vld [vmem:[#allocation2 + $0xe8] sm:$0xff]
      %v418 = vld [vmem:[#allocation2 + $0xf0] sm:$0xff]
      %v419 = vld [vmem:[#allocation2 + $0xf8] sm:$0xff]
      %v420 = vld [vmem:[%s296] sm:$0xf]
      %v421 = vld [vmem:[%s296 + $0x4] sm:$0xf]
      %v422 = vld [vmem:[%s296 + $0x8] sm:$0xf]
      %v423 = vld [vmem:[%s296 + $0xc] sm:$0xf]
      %v424 = vld [vmem:[%s296 + $0x10] sm:$0xf]
      %v425 = vld [vmem:[%s296 + $0x14] sm:$0xf]
      %v426 = vld [vmem:[%s296 + $0x18] sm:$0xf]
      %v427 = vld [vmem:[%s296 + $0x1c] sm:$0xf]
      %v428 = vld [vmem:[%s296 + $0x20] sm:$0xf]
      %v429 = vld [vmem:[%s296 + $0x24] sm:$0xf]
      %v430 = vld [vmem:[%s296 + $0x28] sm:$0xf]
      %v431 = vld [vmem:[%s296 + $0x2c] sm:$0xf]
      %v432 = vld [vmem:[%s296 + $0x30] sm:$0xf]
      %v433 = vld [vmem:[%s296 + $0x34] sm:$0xf]
      %v434 = vld [vmem:[%s296 + $0x38] sm:$0xf]
      %v435 = vld [vmem:[%s296 + $0x3c] sm:$0xf]
      %v468 = vunpack.c.l.b16 %v356
      %v469 = vunpack.c.l.b16 %v357
      %v470 = vunpack.c.l.b16 %v358
      %v471 = vunpack.c.l.b16 %v359
      %v472 = vunpack.c.l.b16 %v360
      %v473 = vunpack.c.l.b16 %v361
      %v474 = vunpack.c.l.b16 %v362
      %v475 = vunpack.c.l.b16 %v363
      %v476 = vunpack.c.l.b16 %v364
      %v477 = vunpack.c.l.b16 %v365
      %v478 = vunpack.c.l.b16 %v366
      %v479 = vunpack.c.l.b16 %v367
      %v480 = vunpack.c.l.b16 %v368
      %v481 = vunpack.c.l.b16 %v369
      %v482 = vunpack.c.l.b16 %v370
      %v483 = vunpack.c.l.b16 %v371
      %v484 = vunpack.c.l.b16 %v372
      %v485 = vunpack.c.l.b16 %v373
      %v486 = vunpack.c.l.b16 %v374
      %v487 = vunpack.c.l.b16 %v375
      %v488 = vunpack.c.l.b16 %v376
      %v489 = vunpack.c.l.b16 %v377
      %v490 = vunpack.c.l.b16 %v378
      %v491 = vunpack.c.l.b16 %v379
      %v492 = vunpack.c.l.b16 %v380
      %v493 = vunpack.c.l.b16 %v381
      %v494 = vunpack.c.l.b16 %v382
      %v495 = vunpack.c.l.b16 %v383
      %v496 = vunpack.c.l.b16 %v384
      %v497 = vunpack.c.l.b16 %v385
      %v498 = vunpack.c.l.b16 %v386
      %v499 = vunpack.c.l.b16 %v387
      %v500 = vpack.c.b16 %v469, %v468
      %v501 = vpack.c.b16 %v471, %v470
      %v502 = vpack.c.b16 %v473, %v472
      %v503 = vpack.c.b16 %v475, %v474
      %v504 = vpack.c.b16 %v477, %v476
      %v505 = vpack.c.b16 %v479, %v478
      %v506 = vpack.c.b16 %v481, %v480
      %v507 = vpack.c.b16 %v483, %v482
      %v508 = vpack.c.b16 %v485, %v484
      %v509 = vpack.c.b16 %v487, %v486
      %v510 = vpack.c.b16 %v489, %v488
      %v511 = vpack.c.b16 %v491, %v490
      %v512 = vpack.c.b16 %v493, %v492
      %v513 = vpack.c.b16 %v495, %v494
      %v514 = vpack.c.b16 %v497, %v496
      %v515 = vpack.c.b16 %v499, %v498
      %v548 = vunpack.c.l.b16 %v420
      %v549 = vunpack.c.l.b16 %v421
      %v550 = vunpack.c.l.b16 %v422
      %v551 = vunpack.c.l.b16 %v423
      %v552 = vunpack.c.l.b16 %v424
      %v553 = vunpack.c.l.b16 %v425
      %v554 = vunpack.c.l.b16 %v426
      %v555 = vunpack.c.l.b16 %v427
      %v556 = vunpack.c.l.b16 %v428
      %v557 = vunpack.c.l.b16 %v429
      %v558 = vunpack.c.l.b16 %v430
      %v559 = vunpack.c.l.b16 %v431
      %v560 = vunpack.c.l.b16 %v432
      %v561 = vunpack.c.l.b16 %v433
      %v562 = vunpack.c.l.b16 %v434
      %v563 = vunpack.c.l.b16 %v435
      %v564 = vpack.c.b16 %v549, %v548
      %v565 = vpack.c.b16 %v551, %v550
      %v566 = vpack.c.b16 %v553, %v552
      %v567 = vpack.c.b16 %v555, %v554
      %v568 = vpack.c.b16 %v557, %v556
      %v569 = vpack.c.b16 %v559, %v558
      %v570 = vpack.c.b16 %v561, %v560
      %v571 = vpack.c.b16 %v563, %v562
      %580 = vmatprep.subr.bf16.mxu0 0
      %581 = vmatpush1.bf16.msra.mxu0 %v564
      %582 = vmatprep.subr.bf16.mxu0 0
      %583 = vmatpush1.bf16.msra.mxu0 %v565
      %584 = vmatprep.subr.bf16.mxu0 0
      %585 = vmatpush1.bf16.msra.mxu0 %v566
      %586 = vmatprep.subr.bf16.mxu0 0
      %587 = vmatpush1.bf16.msra.mxu0 %v567
      %588 = vmatprep.subr.bf16.mxu0 0
      %589 = vmatpush1.bf16.msra.mxu0 %v568
      %590 = vmatprep.subr.bf16.mxu0 0
      %591 = vmatpush1.bf16.msra.mxu0 %v569
      %592 = vmatprep.subr.bf16.mxu0 0
      %593 = vmatpush1.bf16.msra.mxu0 %v570
      %594 = vmatprep.subr.bf16.mxu0 0
      %595 = vmatpush1.bf16.msra.mxu0 %v571
      %596 = vmatprep.subr.bf16.mxu0 0
      %597 = vmatpush1.bf16.msra.mxu0 0
      %598 = vmatprep.subr.bf16.mxu0 0
      %599 = vmatpush1.bf16.msra.mxu0 0
      %600 = vmatprep.subr.bf16.mxu0 0
      %601 = vmatpush1.bf16.msra.mxu0 0
      %602 = vmatprep.subr.bf16.mxu0 0
      %603 = vmatpush1.bf16.msra.mxu0 0
      %604 = vmatprep.subr.bf16.mxu0 0
      %605 = vmatpush1.bf16.msra.mxu0 0
      %606 = vmatprep.subr.bf16.mxu0 0
      %607 = vmatpush1.bf16.msra.mxu0 0
      %608 = vmatprep.subr.bf16.mxu0 0
      %609 = vmatpush1.bf16.msra.mxu0 0
      %610 = vmatprep.subr.bf16.mxu0 0
      %611 = vmatpush1.bf16.msra.mxu0 0
      %612 = vmatprep.mubr.bf16.mxu0 0
      %613 = vmatmul.mubr.bf16.gmra.mrb[0].mxu0 %v500
      %v614 = vpop.f32.mrb[0].mxu0
      %v615 = vadd.f32 0.0, %v614
      %v616 = vpop.f32.mrb[0].mxu0
      %v617 = vpop.f32.mrb[0].mxu0
      %v618 = vadd.f32 0.0, %v617
      %v619 = vpop.f32.mrb[0].mxu0
      %620 = vmatprep.mubr.bf16.mxu0 0
      %621 = vmatmul.mubr.bf16.gmra.mrb[0].mxu0 %v501
      %v622 = vpop.f32.mrb[0].mxu0
      %v623 = vadd.f32 0.0, %v622
      %v624 = vpop.f32.mrb[0].mxu0
      %v625 = vpop.f32.mrb[0].mxu0
      %v626 = vadd.f32 0.0, %v625
      %v627 = vpop.f32.mrb[0].mxu0
      %628 = vmatprep.mubr.bf16.mxu0 0
      %629 = vmatmul.mubr.bf16.gmra.mrb[0].mxu0 %v502
      %v630 = vpop.f32.mrb[0].mxu0
      %v631 = vadd.f32 0.0, %v630
      %v632 = vpop.f32.mrb[0].mxu0
      %v633 = vpop.f32.mrb[0].mxu0
      %v634 = vadd.f32 0.0, %v633
      %v635 = vpop.f32.mrb[0].mxu0
      %636 = vmatprep.mubr.bf16.mxu0 0
      %637 = vmatmul.mubr.bf16.gmra.mrb[0].mxu0 %v503
      %v638 = vpop.f32.mrb[0].mxu0
      %v639 = vadd.f32 0.0, %v638
      %v640 = vpop.f32.mrb[0].mxu0
      %v641 = vpop.f32.mrb[0].mxu0
      %v642 = vadd.f32 0.0, %v641
      %v643 = vpop.f32.mrb[0].mxu0
      %644 = vmatprep.mubr.bf16.mxu0 0
      %645 = vmatmul.mubr.bf16.gmra.mrb[0].mxu0 %v504
      %v646 = vpop.f32.mrb[0].mxu0
      %v647 = vadd.f32 0.0, %v646
      %v648 = vpop.f32.mrb[0].mxu0
      %v649 = vpop.f32.mrb[0].mxu0
      %v650 = vadd.f32 0.0, %v649
      %v651 = vpop.f32.mrb[0].mxu0
      %652 = vmatprep.mubr.bf16.mxu0 0
      %653 = vmatmul.mubr.bf16.gmra.mrb[0].mxu0 %v505
      %v654 = vpop.f32.mrb[0].mxu0
      %v655 = vadd.f32 0.0, %v654
      %v656 = vpop.f32.mrb[0].mxu0
      %v657 = vpop.f32.mrb[0].mxu0
      %v658 = vadd.f32 0.0, %v657
      %v659 = vpop.f32.mrb[0].mxu0
      %660 = vmatprep.mubr.bf16.mxu0 0
      %661 = vmatmul.mubr.bf16.gmra.mrb[0].mxu0 %v506
      %v662 = vpop.f32.mrb[0].mxu0
      %v663 = vadd.f32 0.0, %v662
      %v664 = vpop.f32.mrb[0].mxu0
      %v665 = vpop.f32.mrb[0].mxu0
      %v666 = vadd.f32 0.0, %v665
      %v667 = vpop.f32.mrb[0].mxu0
      %668 = vmatprep.mubr.bf16.mxu0 0
      %669 = vmatmul.mubr.bf16.gmra.mrb[0].mxu0 %v507
      %v670 = vpop.f32.mrb[0].mxu0
      %v671 = vadd.f32 0.0, %v670
      %v672 = vpop.f32.mrb[0].mxu0
      %v673 = vpop.f32.mrb[0].mxu0
      %v674 = vadd.f32 0.0, %v673
      %v675 = vpop.f32.mrb[0].mxu0
      %676 = vmatprep.mubr.bf16.mxu0 0
      %677 = vmatmul.mubr.bf16.gmra.mrb[0].mxu0 %v508
      %v678 = vpop.f32.mrb[0].mxu0
      %v679 = vadd.f32 0.0, %v678
      %v680 = vpop.f32.mrb[0].mxu0
      %v681 = vpop.f32.mrb[0].mxu0
      %v682 = vadd.f32 0.0, %v681
      %v683 = vpop.f32.mrb[0].mxu0
      %684 = vmatprep.mubr.bf16.mxu0 0
      %685 = vmatmul.mubr.bf16.gmra.mrb[0].mxu0 %v509
      %v686 = vpop.f32.mrb[0].mxu0
      %v687 = vadd.f32 0.0, %v686
      %v688 = vpop.f32.mrb[0].mxu0
      %v689 = vpop.f32.mrb[0].mxu0
      %v690 = vadd.f32 0.0, %v689
      %v691 = vpop.f32.mrb[0].mxu0
      %692 = vmatprep.mubr.bf16.mxu0 0
      %693 = vmatmul.mubr.bf16.gmra.mrb[0].mxu0 %v510
      %v694 = vpop.f32.mrb[0].mxu0
      %v695 = vadd.f32 0.0, %v694
      %v696 = vpop.f32.mrb[0].mxu0
      %v697 = vpop.f32.mrb[0].mxu0
      %v698 = vadd.f32 0.0, %v697
      %v699 = vpop.f32.mrb[0].mxu0
      %700 = vmatprep.mubr.bf16.mxu0 0
      %701 = vmatmul.mubr.bf16.gmra.mrb[0].mxu0 %v511
      %v702 = vpop.f32.mrb[0].mxu0
      %v703 = vadd.f32 0.0, %v702
      %v704 = vpop.f32.mrb[0].mxu0
      %v705 = vpop.f32.mrb[0].mxu0
      %v706 = vadd.f32 0.0, %v705
      %v707 = vpop.f32.mrb[0].mxu0
      %708 = vmatprep.mubr.bf16.mxu0 0
      %709 = vmatmul.mubr.bf16.gmra.mrb[0].mxu0 %v512
      %v710 = vpop.f32.mrb[0].mxu0
      %v711 = vadd.f32 0.0, %v710
      %v712 = vpop.f32.mrb[0].mxu0
      %v713 = vpop.f32.mrb[0].mxu0
      %v714 = vadd.f32 0.0, %v713
      %v715 = vpop.f32.mrb[0].mxu0
      %716 = vmatprep.mubr.bf16.mxu0 0
      %717 = vmatmul.mubr.bf16.gmra.mrb[0].mxu0 %v513
      %v718 = vpop.f32.mrb[0].mxu0
      %v719 = vadd.f32 0.0, %v718
      %v720 = vpop.f32.mrb[0].mxu0
      %v721 = vpop.f32.mrb[0].mxu0
      %v722 = vadd.f32 0.0, %v721
      %v723 = vpop.f32.mrb[0].mxu0
      %724 = vmatprep.mubr.bf16.mxu0 0
      %725 = vmatmul.mubr.bf16.gmra.mrb[0].mxu0 %v514
      %v726 = vpop.f32.mrb[0].mxu0
      %v727 = vadd.f32 0.0, %v726
      %v728 = vpop.f32.mrb[0].mxu0
      %v729 = vpop.f32.mrb[0].mxu0
      %v730 = vadd.f32 0.0, %v729
      %v731 = vpop.f32.mrb[0].mxu0
      %732 = vmatprep.mubr.bf16.mxu0 0
      %733 = vmatmul.mubr.bf16.gmra.mrb[0].mxu0 %v515
      %v734 = vpop.f32.mrb[0].mxu0
      %v735 = vadd.f32 0.0, %v734
      %v736 = vpop.f32.mrb[0].mxu0
      %v737 = vpop.f32.mrb[0].mxu0
      %v738 = vadd.f32 0.0, %v737
      %v739 = vpop.f32.mrb[0].mxu0
      %740 = vdwg.mxu0
      %v741 = vadd.f32 %v388, %v615
      %v742 = vadd.f32 %v389, %v618
      %v743 = vadd.f32 %v390, %v623
      %v744 = vadd.f32 %v391, %v626
      %v745 = vadd.f32 %v392, %v631
      %v746 = vadd.f32 %v393, %v634
      %v747 = vadd.f32 %v394, %v639
      %v748 = vadd.f32 %v395, %v642
      %v749 = vadd.f32 %v396, %v647
      %v750 = vadd.f32 %v397, %v650
      %v751 = vadd.f32 %v398, %v655
      %v752 = vadd.f32 %v399, %v658
      %v753 = vadd.f32 %v400, %v663
      %v754 = vadd.f32 %v401, %v666
      %v755 = vadd.f32 %v402, %v671
      %v756 = vadd.f32 %v403, %v674
      %v757 = vadd.f32 %v404, %v679
      %v758 = vadd.f32 %v405, %v682
      %v759 = vadd.f32 %v406, %v687
      %v760 = vadd.f32 %v407, %v690
      %v761 = vadd.f32 %v408, %v695
      %v762 = vadd.f32 %v409, %v698
      %v763 = vadd.f32 %v410, %v703
      %v764 = vadd.f32 %v411, %v706
      %v765 = vadd.f32 %v412, %v711
      %v766 = vadd.f32 %v413, %v714
      %v767 = vadd.f32 %v414, %v719
      %v768 = vadd.f32 %v415, %v722
      %v769 = vadd.f32 %v416, %v727
      %v770 = vadd.f32 %v417, %v730
      %v771 = vadd.f32 %v418, %v735
      %v772 = vadd.f32 %v419, %v738
      %773 = vst [vmem:[#allocation2] sm:$0xff] %v741
      %774 = vst [vmem:[#allocation2 + $0x8] sm:$0xff] %v742
      %775 = vst [vmem:[#allocation2 + $0x10] sm:$0xff] %v743
      %776 = vst [vmem:[#allocation2 + $0x18] sm:$0xff] %v744
      %777 = vst [vmem:[#allocation2 + $0x20] sm:$0xff] %v745
      %778 = vst [vmem:[#allocation2 + $0x28] sm:$0xff] %v746
      %779 = vst [vmem:[#allocation2 + $0x30] sm:$0xff] %v747
      %780 = vst [vmem:[#allocation2 + $0x38] sm:$0xff] %v748
      %781 = vst [vmem:[#allocation2 + $0x40] sm:$0xff] %v749
      %782 = vst [vmem:[#allocation2 + $0x48] sm:$0xff] %v750
      %783 = vst [vmem:[#allocation2 + $0x50] sm:$0xff] %v751
      %784 = vst [vmem:[#allocation2 + $0x58] sm:$0xff] %v752
      %785 = vst [vmem:[#allocation2 + $0x60] sm:$0xff] %v753
      %786 = vst [vmem:[#allocation2 + $0x68] sm:$0xff] %v754
      %787 = vst [vmem:[#allocation2 + $0x70] sm:$0xff] %v755
      %788 = vst [vmem:[#allocation2 + $0x78] sm:$0xff] %v756
      %789 = vst [vmem:[#allocation2 + $0x80] sm:$0xff] %v757
      %790 = vst [vmem:[#allocation2 + $0x88] sm:$0xff] %v758
      %791 = vst [vmem:[#allocation2 + $0x90] sm:$0xff] %v759
      %792 = vst [vmem:[#allocation2 + $0x98] sm:$0xff] %v760
      %793 = vst [vmem:[#allocation2 + $0xa0] sm:$0xff] %v761
      %794 = vst [vmem:[#allocation2 + $0xa8] sm:$0xff] %v762
      %795 = vst [vmem:[#allocation2 + $0xb0] sm:$0xff] %v763
      %796 = vst [vmem:[#allocation2 + $0xb8] sm:$0xff] %v764
      %797 = vst [vmem:[#allocation2 + $0xc0] sm:$0xff] %v765
      %798 = vst [vmem:[#allocation2 + $0xc8] sm:$0xff] %v766
      %799 = vst [vmem:[#allocation2 + $0xd0] sm:$0xff] %v767
      %800 = vst [vmem:[#allocation2 + $0xd8] sm:$0xff] %v768
      %801 = vst [vmem:[#allocation2 + $0xe0] sm:$0xff] %v769
      %802 = vst [vmem:[#allocation2 + $0xe8] sm:$0xff] %v770
      %803 = vst [vmem:[#allocation2 + $0xf0] sm:$0xff] %v771
      %804 = vst [vmem:[#allocation2 + $0xf8] sm:$0xff] %v772
      // Predicated region
      $region41: #{pyramid_features_forward.12} parent=35 // pred_check
        %p805 = pneg %p320
      $region42: #{pyramid_features_forward.12} parent=35 // pred_check_branch
        %807 = sbr.rel (%p805) target = $region44
      $region43: #{pyramid_features_forward.12} parent=35 // pred_region
        %v808 = vld [vmem:[#allocation2] sm:$0xff]
        %v809 = vld [vmem:[#allocation2 + $0x8] sm:$0xff]
        %v810 = vld [vmem:[#allocation2 + $0x10] sm:$0xff]
        %v811 = vld [vmem:[#allocation2 + $0x18] sm:$0xff]
        %v812 = vld [vmem:[#allocation2 + $0x20] sm:$0xff]
        %v813 = vld [vmem:[#allocation2 + $0x28] sm:$0xff]
        %v814 = vld [vmem:[#allocation2 + $0x30] sm:$0xff]
        %v815 = vld [vmem:[#allocation2 + $0x38] sm:$0xff]
        %v816 = vld [vmem:[#allocation2 + $0x40] sm:$0xff]
        %v817 = vld [vmem:[#allocation2 + $0x48] sm:$0xff]
        %v818 = vld [vmem:[#allocation2 + $0x50] sm:$0xff]
        %v819 = vld [vmem:[#allocation2 + $0x58] sm:$0xff]
        %v820 = vld [vmem:[#allocation2 + $0x60] sm:$0xff]
        %v821 = vld [vmem:[#allocation2 + $0x68] sm:$0xff]
        %v822 = vld [vmem:[#allocation2 + $0x70] sm:$0xff]
        %v823 = vld [vmem:[#allocation2 + $0x78] sm:$0xff]
        %v824 = vld [vmem:[#allocation2 + $0x80] sm:$0xff]
        %v825 = vld [vmem:[#allocation2 + $0x88] sm:$0xff]
        %v826 = vld [vmem:[#allocation2 + $0x90] sm:$0xff]
        %v827 = vld [vmem:[#allocation2 + $0x98] sm:$0xff]
        %v828 = vld [vmem:[#allocation2 + $0xa0] sm:$0xff]
        %v829 = vld [vmem:[#allocation2 + $0xa8] sm:$0xff]
        %v830 = vld [vmem:[#allocation2 + $0xb0] sm:$0xff]
        %v831 = vld [vmem:[#allocation2 + $0xb8] sm:$0xff]
        %v832 = vld [vmem:[#allocation2 + $0xc0] sm:$0xff]
        %v833 = vld [vmem:[#allocation2 + $0xc8] sm:$0xff]
        %v834 = vld [vmem:[#allocation2 + $0xd0] sm:$0xff]
        %v835 = vld [vmem:[#allocation2 + $0xd8] sm:$0xff]
        %v836 = vld [vmem:[#allocation2 + $0xe0] sm:$0xff]
        %v837 = vld [vmem:[#allocation2 + $0xe8] sm:$0xff]
        %v838 = vld [vmem:[#allocation2 + $0xf0] sm:$0xff]
        %v839 = vld [vmem:[#allocation2 + $0xf8] sm:$0xff]
        %v840 = vld [vmem:[%s300] sm:$0x1]
        %v842 = vlaneseq
        %v843 = vshrl.u32 %v842, 7
        %v844 = vsub.s32 0, %v843
        %v845 = vrot.slane %v840, %v844
        %v847 = vadd.f32 %v808, %v845
        %v848 = vadd.f32 %v809, %v845
        %v849 = vadd.f32 %v810, %v845
        %v850 = vadd.f32 %v811, %v845
        %v851 = vadd.f32 %v812, %v845
        %v852 = vadd.f32 %v813, %v845
        %v853 = vadd.f32 %v814, %v845
        %v854 = vadd.f32 %v815, %v845
        %v855 = vadd.f32 %v816, %v845
        %v856 = vadd.f32 %v817, %v845
        %v857 = vadd.f32 %v818, %v845
        %v858 = vadd.f32 %v819, %v845
        %v859 = vadd.f32 %v820, %v845
        %v860 = vadd.f32 %v821, %v845
        %v861 = vadd.f32 %v822, %v845
        %v862 = vadd.f32 %v823, %v845
        %v863 = vadd.f32 %v824, %v845
        %v864 = vadd.f32 %v825, %v845
        %v865 = vadd.f32 %v826, %v845
        %v866 = vadd.f32 %v827, %v845
        %v867 = vadd.f32 %v828, %v845
        %v868 = vadd.f32 %v829, %v845
        %v869 = vadd.f32 %v830, %v845
        %v870 = vadd.f32 %v831, %v845
        %v871 = vadd.f32 %v832, %v845
        %v872 = vadd.f32 %v833, %v845
        %v873 = vadd.f32 %v834, %v845
        %v874 = vadd.f32 %v835, %v845
        %v875 = vadd.f32 %v836, %v845
        %v876 = vadd.f32 %v837, %v845
        %v877 = vadd.f32 %v838, %v845
        %v878 = vadd.f32 %v839, %v845
        %v879 = vld [vmem:[%s308] sm:$0xff]
        %v880 = vld [vmem:[%s308 + $0x8] sm:$0xff]
        %v881 = vld [vmem:[%s308 + $0x10] sm:$0xff]
        %v882 = vld [vmem:[%s308 + $0x18] sm:$0xff]
        %v883 = vld [vmem:[%s308 + $0x20] sm:$0xff]
        %v884 = vld [vmem:[%s308 + $0x28] sm:$0xff]
        %v885 = vld [vmem:[%s308 + $0x30] sm:$0xff]
        %v886 = vld [vmem:[%s308 + $0x38] sm:$0xff]
        %v887 = vld [vmem:[%s308 + $0x40] sm:$0xff]
        %v888 = vld [vmem:[%s308 + $0x48] sm:$0xff]
        %v889 = vld [vmem:[%s308 + $0x50] sm:$0xff]
        %v890 = vld [vmem:[%s308 + $0x58] sm:$0xff]
        %v891 = vld [vmem:[%s308 + $0x60] sm:$0xff]
        %v892 = vld [vmem:[%s308 + $0x68] sm:$0xff]
        %v893 = vld [vmem:[%s308 + $0x70] sm:$0xff]
        %v894 = vld [vmem:[%s308 + $0x78] sm:$0xff]
        %v895 = vld [vmem:[%s308 + $0x80] sm:$0xff]
        %v896 = vld [vmem:[%s308 + $0x88] sm:$0xff]
        %v897 = vld [vmem:[%s308 + $0x90] sm:$0xff]
        %v898 = vld [vmem:[%s308 + $0x98] sm:$0xff]
        %v899 = vld [vmem:[%s308 + $0xa0] sm:$0xff]
        %v900 = vld [vmem:[%s308 + $0xa8] sm:$0xff]
        %v901 = vld [vmem:[%s308 + $0xb0] sm:$0xff]
        %v902 = vld [vmem:[%s308 + $0xb8] sm:$0xff]
        %v903 = vld [vmem:[%s308 + $0xc0] sm:$0xff]
        %v904 = vld [vmem:[%s308 + $0xc8] sm:$0xff]
        %v905 = vld [vmem:[%s308 + $0xd0] sm:$0xff]
        %v906 = vld [vmem:[%s308 + $0xd8] sm:$0xff]
        %v907 = vld [vmem:[%s308 + $0xe0] sm:$0xff]
        %v908 = vld [vmem:[%s308 + $0xe8] sm:$0xff]
        %v909 = vld [vmem:[%s308 + $0xf0] sm:$0xff]
        %v910 = vld [vmem:[%s308 + $0xf8] sm:$0xff]
        %v911 = vadd.f32 %v847, %v879
        %v912 = vadd.f32 %v848, %v880
        %v913 = vadd.f32 %v849, %v881
        %v914 = vadd.f32 %v850, %v882
        %v915 = vadd.f32 %v851, %v883
        %v916 = vadd.f32 %v852, %v884
        %v917 = vadd.f32 %v853, %v885
        %v918 = vadd.f32 %v854, %v886
        %v919 = vadd.f32 %v855, %v887
        %v920 = vadd.f32 %v856, %v888
        %v921 = vadd.f32 %v857, %v889
        %v922 = vadd.f32 %v858, %v890
        %v923 = vadd.f32 %v859, %v891
        %v924 = vadd.f32 %v860, %v892
        %v925 = vadd.f32 %v861, %v893
        %v926 = vadd.f32 %v862, %v894
        %v927 = vadd.f32 %v863, %v895
        %v928 = vadd.f32 %v864, %v896
        %v929 = vadd.f32 %v865, %v897
        %v930 = vadd.f32 %v866, %v898
        %v931 = vadd.f32 %v867, %v899
        %v932 = vadd.f32 %v868, %v900
        %v933 = vadd.f32 %v869, %v901
        %v934 = vadd.f32 %v870, %v902
        %v935 = vadd.f32 %v871, %v903
        %v936 = vadd.f32 %v872, %v904
        %v937 = vadd.f32 %v873, %v905
        %v938 = vadd.f32 %v874, %v906
        %v939 = vadd.f32 %v875, %v907
        %v940 = vadd.f32 %v876, %v908
        %v941 = vadd.f32 %v877, %v909
        %v942 = vadd.f32 %v878, %v910
        %943 = vst [vmem:[%s317] sm:$0xff] %v911
        %944 = vst [vmem:[%s317 + $0x8] sm:$0xff] %v912
        %945 = vst [vmem:[%s317 + $0x10] sm:$0xff] %v913
        %946 = vst [vmem:[%s317 + $0x18] sm:$0xff] %v914
        %947 = vst [vmem:[%s317 + $0x20] sm:$0xff] %v915
        %948 = vst [vmem:[%s317 + $0x28] sm:$0xff] %v916
        %949 = vst [vmem:[%s317 + $0x30] sm:$0xff] %v917
        %950 = vst [vmem:[%s317 + $0x38] sm:$0xff] %v918
        %951 = vst [vmem:[%s317 + $0x40] sm:$0xff] %v919
        %952 = vst [vmem:[%s317 + $0x48] sm:$0xff] %v920
        %953 = vst [vmem:[%s317 + $0x50] sm:$0xff] %v921
        %954 = vst [vmem:[%s317 + $0x58] sm:$0xff] %v922
        %955 = vst [vmem:[%s317 + $0x60] sm:$0xff] %v923
        %956 = vst [vmem:[%s317 + $0x68] sm:$0xff] %v924
        %957 = vst [vmem:[%s317 + $0x70] sm:$0xff] %v925
        %958 = vst [vmem:[%s317 + $0x78] sm:$0xff] %v926
        %959 = vst [vmem:[%s317 + $0x80] sm:$0xff] %v927
        %960 = vst [vmem:[%s317 + $0x88] sm:$0xff] %v928
        %961 = vst [vmem:[%s317 + $0x90] sm:$0xff] %v929
        %962 = vst [vmem:[%s317 + $0x98] sm:$0xff] %v930
        %963 = vst [vmem:[%s317 + $0xa0] sm:$0xff] %v931
        %964 = vst [vmem:[%s317 + $0xa8] sm:$0xff] %v932
        %965 = vst [vmem:[%s317 + $0xb0] sm:$0xff] %v933
        %966 = vst [vmem:[%s317 + $0xb8] sm:$0xff] %v934
        %967 = vst [vmem:[%s317 + $0xc0] sm:$0xff] %v935
        %968 = vst [vmem:[%s317 + $0xc8] sm:$0xff] %v936
        %969 = vst [vmem:[%s317 + $0xd0] sm:$0xff] %v937
        %970 = vst [vmem:[%s317 + $0xd8] sm:$0xff] %v938
        %971 = vst [vmem:[%s317 + $0xe0] sm:$0xff] %v939
        %972 = vst [vmem:[%s317 + $0xe8] sm:$0xff] %v940
        %973 = vst [vmem:[%s317 + $0xf0] sm:$0xff] %v941
        %974 = vst [vmem:[%s317 + $0xf8] sm:$0xff] %v942
      $region44: #{pyramid_features_forward.12} parent=35 // pred_fallthru
        _
      %s975 = smul.u32 32, %s20
      %p976 = scmp.lt.s32.totalorder %s975, 63
      %s977 = scalar_select %p976, %s975, 63
      %p978 = scmp.lt.s32.totalorder %s21, 0
      %s979 = scalar_select %p978, %s21, 0
      %s980 = sadd.s32 %s979, %s977
      %s981 = smul.addr %s980, 8
      %s982 = scalar_lea.vmem %s4, %s981
      // Predicated region
      $region45: #{pyramid_features_forward.12} parent=35 // pred_check
        %p983 = pneg %p164
      $region46: #{pyramid_features_forward.12} parent=35 // pred_check_branch
        %985 = sbr.rel (%p983) target = $region48
      $region47: #{pyramid_features_forward.12} parent=35 // pred_region
        %s986 = smul.u32 32, %s20
      $region48: #{pyramid_features_forward.12} parent=35 // pred_fallthru
        _
    $region36: #{pyramid_features_forward.12} parent=5 // pred_fallthru
      _
    %p987 = scmp.le.s32.totalorder 2, %s10
    // Predicated region
    $region49: #{pyramid_features_forward.12} parent=5 // pred_check
      %p988 = pneg %p987
    $region50: #{pyramid_features_forward.12} parent=5 // pred_check_branch
      %990 = sbr.rel (%p988) target = $region52
    $region51: #{pyramid_features_forward.12} parent=5 // pred_region
      %s991 = ssub.s32 %s10, 2
      // Predicated region
      $region53: #{pyramid_features_forward.12} parent=51 // pred_check
        %p992 = pneg %p170
      $region54: #{pyramid_features_forward.12} parent=51 // pred_check_branch
        %994 = sbr.rel (%p992) target = $region56
      $region55: #{pyramid_features_forward.12} parent=51 // pred_region
        %s995 = smul.u32 32, %s23
        %p996 = scmp.lt.s32.totalorder %s995, 63
        %s997 = scalar_select %p996, %s995, 63
        %p998 = scmp.lt.s32.totalorder %s24, 0
        %s999 = scalar_select %p998, %s24, 0
        %s1000 = sadd.s32 %s999, %s997
        %s1001 = smul.addr %s1000, 8
        %s1002 = scalar_lea.vmem %s4, %s1001
      $region56: #{pyramid_features_forward.12} parent=51 // pred_fallthru
        _
    $region52: #{pyramid_features_forward.12} parent=5 // pred_fallthru
      _
  $region6: #{pyramid_features_forward.12} parent=0 // loop_footer
    %s14 = sadd.s32 1, %s10
  $region7: #{pyramid_features_forward.12} parent=0 // loop_footer_branch
    %9 = sbr.rel target = $region3
  $region8: #{pyramid_features_forward.12} parent=0 // loop_exit
    _

// kernel: pyramid_features_forward.13
$region0: #{pyramid_features_forward.13}
  #allocation0 [shape = 'u32[]', space=smem, size = 0x4, offset = 0x4, fixed_abs, tag = 'smem constant byte address 0x4 - core index']
  #allocation1 [shape = 'u32[144,128]{1,0:T(1,128)}', space=vmem, size = 0x12000, scoped, tag = 'internal scratch']
  #allocation2 [shape = 'f32[256,128]{1,0:T(8,128)}', space=vmem, size = 0x20000, scoped, tag = 'scratch operand']
  %s0 = inlined_call_operand.vmem [shape: bf16[512,384], index: 0, kind: input, shape index: {}]
  %s1 = inlined_call_operand.vmem [shape: bf16[384,128], index: 1, kind: input, shape index: {}]
  %s2 = inlined_call_operand.vmem [shape: f32[1,128], index: 2, kind: input, shape index: {}]
  %s3 = inlined_call_operand.hbm [shape: f32[512,128], index: 3, kind: output, shape index: {}]
  %s4 = sld [smem:[#allocation0]]
  $region53: #{pyramid_features_forward.13} parent=0
    _
  %s6 = ssub.s32 1, %s4
  %s7 = scalar_select 0, %s6, %s4
  $region1: #{pyramid_features_forward.13} parent=0
    #allocation3 [shape = 'u8[262144]{0}', space=vmem, size = 0x40000, scoped, tag = 'output window, operand 0']
    #allocation4 [shape = 's32[2]{0}', space=sflag, size = 0x8, scoped, tag = 'scoped memory for pyramid_features_forward.13']
    %8 = vsyncpa [#allocation4], 0
    %s9 = scalar_lea.sflag [#allocation4], 1
    %10 = vsyncpa %s9, 0
    loop: start=0, step=1, limit=4
    $region2: #{pyramid_features_forward.13} parent=1 // loop_pre_header
      _
    $region3: #{pyramid_features_forward.13} parent=1 // loop_header
      %s12 = sphi 0, %s16
      %p13 = scmp.ge.s32.totalorder %s12, 4
      %s19 = sphi 0, %s38
      %s20 = sphi 0, %s34
      %s21 = sphi 0, %s30
      %s22 = sphi 0, %s19
      %s23 = sphi 0, %s20
      %s24 = sphi 0, %s21
      %s25 = sphi 0, %s22
      %s26 = sphi 0, %s23
      %s27 = sphi 0, %s24
      %s43 = sphi 0, %s45
      %s46 = sphi 0, %s43
      %s47 = sphi 0, %s46
      %s63 = sphi 0, %s47
      %s71 = sphi 0, %s73
      %s74 = sphi 0, %s71
      %s75 = sphi 0, %s74
      %s91 = sphi 0, %s75
      %s97 = sphi 0, %s99
      %s100 = sphi 0, %s97
      %s101 = sphi 0, %s100
      %s117 = sphi 0, %s101
      %s125 = sphi 0, %s127
      %s128 = sphi 0, %s125
      %s129 = sphi 0, %s128
      %s145 = sphi 0, %s129
    $region4: #{pyramid_features_forward.13} parent=1 // loop_header_branch
      %15 = sbr.rel (%p13) target = $region8
    $region5: #{pyramid_features_forward.13} parent=1 // loop_body
      %s17 = ssub.s32 %s12, 1
      %s18 = ssub.s32 %s12, 2
      %s28 = sadd.s32 1, %s21
      %p29 = scmp.ge.s32.totalorder %s28, 1
      %s30 = scalar_select %p29, 0, %s28
      %s31 = sadd.s32 1, %s20
      %s32 = scalar_select %p29, %s31, %s20
      %p33 = scmp.ge.s32.totalorder %s32, 1
      %s34 = scalar_select %p33, 0, %s32
      %s35 = sadd.s32 1, %s19
      %s36 = scalar_select %p33, %s35, %s19
      %p37 = scmp.ge.s32.totalorder %s36, 2
      %s38 = scalar_select %p37, 0, %s36
      %s39 = ssub.s32 %s19, %s38
      %s40 = ssub.s32 %s21, %s30
      %s41 = sor.u32 %s39, %s40
      %p42 = scmp.eq.s32.totalorder %s41, 0
      %s44 = sadd.s32 %s43, 1
      %s45 = scalar_select %p42, %s43, %s44
      %p48 = pneg %p42
      %p49 = scmp.eq.s32.totalorder %s12, 1
      %p50 = por %p48, %p49
      %p51 = scmp.ne.s32.totalorder %s43, %s46
      %p52 = scmp.eq.s32.totalorder %s12, 0
      %p53 = por %p51, %p52
      %p54 = scmp.ne.s32.totalorder %s43, %s46
      %p55 = scmp.eq.s32.totalorder %s17, 1
      %p56 = por %p54, %p55
      %p57 = scmp.ne.s32.totalorder %s46, %s47
      %p58 = scmp.eq.s32.totalorder %s17, 0
      %p59 = por %p57, %p58
      %p60 = scmp.ne.s32.totalorder %s46, %s47
      %p61 = scmp.eq.s32.totalorder %s18, 1
      %p62 = por %p60, %p61
      %p64 = scmp.ne.s32.totalorder %s47, %s63
      %p65 = scmp.eq.s32.totalorder %s18, 0
      %p66 = por %p64, %p65
      %s67 = ssub.s32 %s21, %s30
      %s68 = ssub.s32 %s20, %s34
      %s69 = sor.u32 %s67, %s68
      %p70 = scmp.eq.s32.totalorder %s69, 0
      %s72 = sadd.s32 %s71, 1
      %s73 = scalar_select %p70, %s71, %s72
      %p76 = pneg %p70
      %p77 = scmp.eq.s32.totalorder %s12, 1
      %p78 = por %p76, %p77
      %p79 = scmp.ne.s32.totalorder %s71, %s74
      %p80 = scmp.eq.s32.totalorder %s12, 0
      %p81 = por %p79, %p80
      %p82 = scmp.ne.s32.totalorder %s71, %s74
      %p83 = scmp.eq.s32.totalorder %s17, 1
      %p84 = por %p82, %p83
      %p85 = scmp.ne.s32.totalorder %s74, %s75
      %p86 = scmp.eq.s32.totalorder %s17, 0
      %p87 = por %p85, %p86
      %p88 = scmp.ne.s32.totalorder %s74, %s75
      %p89 = scmp.eq.s32.totalorder %s18, 1
      %p90 = por %p88, %p89
      %p92 = scmp.ne.s32.totalorder %s75, %s91
      %p93 = scmp.eq.s32.totalorder %s18, 0
      %p94 = por %p92, %p93
      %s95 = ssub.s32 %s20, %s34
      %p96 = scmp.eq.s32.totalorder %s95, 0
      %s98 = sadd.s32 %s97, 1
      %s99 = scalar_select %p96, %s97, %s98
      %p102 = pneg %p96
      %p103 = scmp.eq.s32.totalorder %s12, 1
      %p104 = por %p102, %p103
      %p105 = scmp.ne.s32.totalorder %s97, %s100
      %p106 = scmp.eq.s32.totalorder %s12, 0
      %p107 = por %p105, %p106
      %p108 = scmp.ne.s32.totalorder %s97, %s100
      %p109 = scmp.eq.s32.totalorder %s17, 1
      %p110 = por %p108, %p109
      %p111 = scmp.ne.s32.totalorder %s100, %s101
      %p112 = scmp.eq.s32.totalorder %s17, 0
      %p113 = por %p111, %p112
      %p114 = scmp.ne.s32.totalorder %s100, %s101
      %p115 = scmp.eq.s32.totalorder %s18, 1
      %p116 = por %p114, %p115
      %p118 = scmp.ne.s32.totalorder %s101, %s117
      %p119 = scmp.eq.s32.totalorder %s18, 0
      %p120 = por %p118, %p119
      %s121 = ssub.s32 %s19, %s38
      %s122 = ssub.s32 %s20, %s34
      %s123 = sor.u32 %s121, %s122
      %p124 = scmp.eq.s32.totalorder %s123, 0
      %s126 = sadd.s32 %s125, 1
      %s127 = scalar_select %p124, %s125, %s126
      %p130 = pneg %p124
      %p131 = scmp.eq.s32.totalorder %s12, 1
      %p132 = por %p130, %p131
      %p133 = scmp.ne.s32.totalorder %s125, %s128
      %p134 = scmp.eq.s32.totalorder %s12, 0
      %p135 = por %p133, %p134
      %p136 = scmp.ne.s32.totalorder %s125, %s128
      %p137 = scmp.eq.s32.totalorder %s17, 1
      %p138 = por %p136, %p137
      %p139 = scmp.ne.s32.totalorder %s128, %s129
      %p140 = scmp.eq.s32.totalorder %s17, 0
      %p141 = por %p139, %p140
      %p142 = scmp.ne.s32.totalorder %s128, %s129
      %p143 = scmp.eq.s32.totalorder %s18, 1
      %p144 = por %p142, %p143
      %p146 = scmp.ne.s32.totalorder %s129, %s145
      %p147 = scmp.eq.s32.totalorder %s18, 0
      %p148 = por %p146, %p147
      %p149 = scmp.le.s32.totalorder 1, %s12
      %p150 = scmp.lt.s32.totalorder %s12, 3
      %p151 = pnand %p149, %p150
      %p152 = pneg %p151
      // Predicated region
      $region9: #{pyramid_features_forward.13} parent=5 // pred_check
        _
      $region10: #{pyramid_features_forward.13} parent=5 // pred_check_branch
        %154 = sbr.rel (%p151) target = $region12
      $region11: #{pyramid_features_forward.13} parent=5 // pred_region
        %s155 = ssub.s32 %s12, 1
        // Predicated region
        $region13: #{pyramid_features_forward.13} parent=11 // pred_check
          %p156 = pneg %p87
        $region14: #{pyramid_features_forward.13} parent=11 // pred_check_branch
          %158 = sbr.rel (%p156) target = $region16
        $region15: #{pyramid_features_forward.13} parent=11 // pred_region
          %s159 = smul.u32 48, %s24
          %p160 = scmp.lt.s32.totalorder %s159, 47
          %s161 = scalar_select %p160, %s159, 47
          %p162 = scmp.lt.s32.totalorder %s23, 0
          %s163 = scalar_select %p162, %s23, 0
          %s164 = sadd.s32 %s163, %s161
          %s165 = smul.addr %s164, 4
          %s166 = scalar_lea.vmem %s1, %s165
          %s167 = smul.u32 48, %s24
        $region16: #{pyramid_features_forward.13} parent=11 // pred_fallthru
          _
        // Predicated region
        $region17: #{pyramid_features_forward.13} parent=11 // pred_check
          %p168 = pneg %p113
        $region18: #{pyramid_features_forward.13} parent=11 // pred_check_branch
          %170 = sbr.rel (%p168) target = $region20
        $region19: #{pyramid_features_forward.13} parent=11 // pred_region
          %p171 = scmp.lt.s32.totalorder %s23, 0
          %s172 = scalar_select %p171, %s23, 0
          %s173 = scalar_lea.vmem %s2, %s172
        $region20: #{pyramid_features_forward.13} parent=11 // pred_fallthru
          _
      $region12: #{pyramid_features_forward.13} parent=5 // pred_fallthru
        _
      %p174 = scmp.lt.s32.totalorder %s12, 2
      // Predicated region
      $region21: #{pyramid_features_forward.13} parent=5 // pred_check
        %p175 = pneg %p174
      $region22: #{pyramid_features_forward.13} parent=5 // pred_check_branch
        %177 = sbr.rel (%p175) target = $region24
      $region23: #{pyramid_features_forward.13} parent=5 // pred_region
        // Predicated region
        $region25: #{pyramid_features_forward.13} parent=23 // pred_check
          %p178 = pneg %p53
        $region26: #{pyramid_features_forward.13} parent=23 // pred_check_branch
          %180 = sbr.rel (%p178) target = $region28
        $region27: #{pyramid_features_forward.13} parent=23 // pred_region
          %s181 = smul.u32 32, %s19
          %s182 = smul.u32 3, %s21
          %p183 = scmp.lt.s32.totalorder %s181, 63
          %s184 = scalar_select %p183, %s181, 63
          %p185 = scmp.lt.s32.totalorder %s182, 2
          %s186 = scalar_select %p185, %s182, 2
          %s187 = smul.addr %s184, 3
          %s188 = sadd.s32 %s186, %s187
          %s189 = smul.addr %s188, 4
          %s190 = scalar_lea.vmem %s0, %s189
          %s191 = smul.u32 32, %s19
          %s192 = smul.u32 3, %s21
        $region28: #{pyramid_features_forward.13} parent=23 // pred_fallthru
          _
      $region24: #{pyramid_features_forward.13} parent=5 // pred_fallthru
        _
      %p193 = scmp.le.s32.totalorder 1, %s12
      %p194 = scmp.lt.s32.totalorder %s12, 3
      %p195 = pnand %p193, %p194
      %p196 = pneg %p195
      // Predicated region
      $region29: #{pyramid_features_forward.13} parent=5 // pred_check
        _
      $region30: #{pyramid_features_forward.13} parent=5 // pred_check_branch
        %198 = sbr.rel (%p195) target = $region32
      $region31: #{pyramid_features_forward.13} parent=5 // pred_region
        %s199 = ssub.s32 %s12, 1
        %s200 = smul.u32 32, %s22
        %s201 = smul.u32 3, %s24
        %p202 = scmp.lt.s32.totalorder %s200, 63
        %s203 = scalar_select %p202, %s200, 63
        %p204 = scmp.lt.s32.totalorder %s201, 2
        %s205 = scalar_select %p204, %s201, 2
        %s206 = smul.addr %s203, 3
        %s207 = sadd.s32 %s205, %s206
        %s208 = smul.addr %s207, 4
        %s209 = scalar_lea.vmem %s0, %s208
        %p210 = pneg %p59
        %p211 = pneg %p56
        %s212 = smul.u32 48, %s24
        %p213 = scmp.lt.s32.totalorder %s212, 47
        %s214 = scalar_select %p213, %s212, 47
        %p215 = scmp.lt.s32.totalorder %s23, 0
        %s216 = scalar_select %p215, %s23, 0
        %s217 = sadd.s32 %s216, %s214
        %s218 = smul.addr %s217, 4
        %s219 = scalar_lea.vmem %s1, %s218
        %p220 = pneg %p87
        %p221 = pneg %p84
        %p222 = scmp.lt.s32.totalorder %s23, 0
        %s223 = scalar_select %p222, %s23, 0
        %s224 = scalar_lea.vmem %s2, %s223
        %p225 = pneg %p113
        %p226 = pneg %p110
        %p227 = pneg %p141
        %p228 = pneg %p138
        %s229 = sand.u32 %s128, 1
        %s230 = scalar_lea.sflag [#allocation4], %s229
        %s231 = sand.u32 %s128, 1
        %s232 = smul.addr %s231, 256
        %s233 = scalar_lea.vmem [#allocation3], %s232
        %s234 = smul.u32 32, %s22
        %s235 = smul.u32 3, %s24
        %p236 = scmp.lt.s32.totalorder %s234, 63
        %s237 = scalar_select %p236, %s234, 63
        %p238 = scmp.lt.s32.totalorder %s235, 2
        %s239 = scalar_select %p238, %s235, 2
        %s240 = smul.addr %s237, 3
        %s241 = sadd.s32 %s239, %s240
        %s242 = smul.addr %s241, 4
        %s243 = scalar_lea.vmem %s0, %s242
        %s244 = smul.u32 32, %s22
        %s245 = smul.u32 3, %s24
        %s246 = smul.u32 48, %s24
        %p247 = scmp.lt.s32.totalorder %s246, 47
        %s248 = scalar_select %p247, %s246, 47
        %p249 = scmp.lt.s32.totalorder %s23, 0
        %s250 = scalar_select %p249, %s23, 0
        %s251 = sadd.s32 %s250, %s248
        %s252 = smul.addr %s251, 4
        %s253 = scalar_lea.vmem %s1, %s252
        %s254 = smul.u32 48, %s24
        %p255 = scmp.lt.s32.totalorder %s23, 0
        %s256 = scalar_select %p255, %s23, 0
        %s257 = scalar_lea.vmem %s2, %s256
        %s258 = smul.u32 32, %s22
        %p260 = scmp.eq.s32.totalorder %s24, 0
        // Predicated region
        $region33: #{pyramid_features_forward.13} parent=31 // pred_check
          %p261 = pneg %p260
        $region34: #{pyramid_features_forward.13} parent=31 // pred_check_branch
          %263 = sbr.rel (%p261) target = $region36
        $region35: #{pyramid_features_forward.13} parent=31 // pred_region
          %264 = vst [vmem:[#allocation2] sm:$0xff] 0.0
          %265 = vst [vmem:[#allocation2 + $0x8] sm:$0xff] 0.0
          %266 = vst [vmem:[#allocation2 + $0x10] sm:$0xff] 0.0
          %267 = vst [vmem:[#allocation2 + $0x18] sm:$0xff] 0.0
          %268 = vst [vmem:[#allocation2 + $0x20] sm:$0xff] 0.0
          %269 = vst [vmem:[#allocation2 + $0x28] sm:$0xff] 0.0
          %270 = vst [vmem:[#allocation2 + $0x30] sm:$0xff] 0.0
          %271 = vst [vmem:[#allocation2 + $0x38] sm:$0xff] 0.0
          %272 = vst [vmem:[#allocation2 + $0x40] sm:$0xff] 0.0
          %273 = vst [vmem:[#allocation2 + $0x48] sm:$0xff] 0.0
          %274 = vst [vmem:[#allocation2 + $0x50] sm:$0xff] 0.0
          %275 = vst [vmem:[#allocation2 + $0x58] sm:$0xff] 0.0
          %276 = vst [vmem:[#allocation2 + $0x60] sm:$0xff] 0.0
          %277 = vst [vmem:[#allocation2 + $0x68] sm:$0xff] 0.0
          %278 = vst [vmem:[#allocation2 + $0x70] sm:$0xff] 0.0
          %279 = vst [vmem:[#allocation2 + $0x78] sm:$0xff] 0.0
          %280 = vst [vmem:[#allocation2 + $0x80] sm:$0xff] 0.0
          %281 = vst [vmem:[#allocation2 + $0x88] sm:$0xff] 0.0
          %282 = vst [vmem:[#allocation2 + $0x90] sm:$0xff] 0.0
          %283 = vst [vmem:[#allocation2 + $0x98] sm:$0xff] 0.0
          %284 = vst [vmem:[#allocation2 + $0xa0] sm:$0xff] 0.0
          %285 = vst [vmem:[#allocation2 + $0xa8] sm:$0xff] 0.0
          %286 = vst [vmem:[#allocation2 + $0xb0] sm:$0xff] 0.0
          %287 = vst [vmem:[#allocation2 + $0xb8] sm:$0xff] 0.0
          %288 = vst [vmem:[#allocation2 + $0xc0] sm:$0xff] 0.0
          %289 = vst [vmem:[#allocation2 + $0xc8] sm:$0xff] 0.0
          %290 = vst [vmem:[#allocation2 + $0xd0] sm:$0xff] 0.0
          %291 = vst [vmem:[#allocation2 + $0xd8] sm:$0xff] 0.0
          %292 = vst [vmem:[#allocation2 + $0xe0] sm:$0xff] 0.0
          %293 = vst [vmem:[#allocation2 + $0xe8] sm:$0xff] 0.0
          %294 = vst [vmem:[#allocation2 + $0xf0] sm:$0xff] 0.0
          %295 = vst [vmem:[#allocation2 + $0xf8] sm:$0xff] 0.0
        $region36: #{pyramid_features_forward.13} parent=31 // pred_fallthru
          _
        %v296 = vld [vmem:[%s243] sm:$0xff]
        %v297 = vld [vmem:[%s243 + $0x8] sm:$0xf]
        %v298 = vld [vmem:[%s243 + $0xc] sm:$0xff]
        %v299 = vld [vmem:[%s243 + $0x14] sm:$0xf]
        %v300 = vld [vmem:[%s243 + $0x18] sm:$0xff]
        %v301 = vld [vmem:[%s243 + $0x20] sm:$0xf]
        %v302 = vld [vmem:[%s243 + $0x24] sm:$0xff]
        %v303 = vld [vmem:[%s243 + $0x2c] sm:$0xf]
        %v304 = vld [vmem:[%s243 + $0x30] sm:$0xff]
        %v305 = vld [vmem:[%s243 + $0x38] sm:$0xf]
        %v306 = vld [vmem:[%s243 + $0x3c] sm:$0xff]
        %v307 = vld [vmem:[%s243 + $0x44] sm:$0xf]
        %v308 = vld [vmem:[%s243 + $0x48] sm:$0xff]
        %v309 = vld [vmem:[%s243 + $0x50] sm:$0xf]
        %v310 = vld [vmem:[%s243 + $0x54] sm:$0xff]
        %v311 = vld [vmem:[%s243 + $0x5c] sm:$0xf]
        %v312 = vld [vmem:[%s243 + $0x60] sm:$0xff]
        %v313 = vld [vmem:[%s243 + $0x68] sm:$0xf]
        %v314 = vld [vmem:[%s243 + $0x6c] sm:$0xff]
        %v315 = vld [vmem:[%s243 + $0x74] sm:$0xf]
        %v316 = vld [vmem:[%s243 + $0x78] sm:$0xff]
        %v317 = vld [vmem:[%s243 + $0x80] sm:$0xf]
        %v318 = vld [vmem:[%s243 + $0x84] sm:$0xff]
        %v319 = vld [vmem:[%s243 + $0x8c] sm:$0xf]
        %v320 = vld [vmem:[%s243 + $0x90] sm:$0xff]
        %v321 = vld [vmem:[%s243 + $0x98] sm:$0xf]
        %v322 = vld [vmem:[%s243 + $0x9c] sm:$0xff]
        %v323 = vld [vmem:[%s243 + $0xa4] sm:$0xf]
        %v324 = vld [vmem:[%s243 + $0xa8] sm:$0xff]
        %v325 = vld [vmem:[%s243 + $0xb0] sm:$0xf]
        %v326 = vld [vmem:[%s243 + $0xb4] sm:$0xff]
        %v327 = vld [vmem:[%s243 + $0xbc] sm:$0xf]
        %v328 = vld [vmem:[%s243 + $0xc0] sm:$0xff]
        %v329 = vld [vmem:[%s243 + $0xc8] sm:$0xf]
        %v330 = vld [vmem:[%s243 + $0xcc] sm:$0xff]
        %v331 = vld [vmem:[%s243 + $0xd4] sm:$0xf]
        %v332 = vld [vmem:[%s243 + $0xd8] sm:$0xff]
        %v333 = vld [vmem:[%s243 + $0xe0] sm:$0xf]
        %v334 = vld [vmem:[%s243 + $0xe4] sm:$0xff]
        %v335 = vld [vmem:[%s243 + $0xec] sm:$0xf]
        %v336 = vld [vmem:[%s243 + $0xf0] sm:$0xff]
        %v337 = vld [vmem:[%s243 + $0xf8] sm:$0xf]
        %v338 = vld [vmem:[%s243 + $0xfc] sm:$0xff]
        %v339 = vld [vmem:[%s243 + $0x104] sm:$0xf]
        %v340 = vld [vmem:[%s243 + $0x108] sm:$0xff]
        %v341 = vld [vmem:[%s243 + $0x110] sm:$0xf]
        %v342 = vld [vmem:[%s243 + $0x114] sm:$0xff]
        %v343 = vld [vmem:[%s243 + $0x11c] sm:$0xf]
        %v344 = vld [vmem:[%s243 + $0x120] sm:$0xff]
        %v345 = vld [vmem:[%s243 + $0x128] sm:$0xf]
        %v346 = vld [vmem:[%s243 + $0x12c] sm:$0xff]
        %v347 = vld [vmem:[%s243 + $0x134] sm:$0xf]
        %v348 = vld [vmem:[%s243 + $0x138] sm:$0xff]
        %v349 = vld [vmem:[%s243 + $0x140] sm:$0xf]
        %v350 = vld [vmem:[%s243 + $0x144] sm:$0xff]
        %v351 = vld [vmem:[%s243 + $0x14c] sm:$0xf]
        %v352 = vld [vmem:[%s243 + $0x150] sm:$0xff]
        %v353 = vld [vmem:[%s243 + $0x158] sm:$0xf]
        %v354 = vld [vmem:[%s243 + $0x15c] sm:$0xff]
        %v355 = vld [vmem:[%s243 + $0x164] sm:$0xf]
        %v356 = vld [vmem:[%s243 + $0x168] sm:$0xff]
        %v357 = vld [vmem:[%s243 + $0x170] sm:$0xf]
        %v358 = vld [vmem:[%s243 + $0x174] sm:$0xff]
        %v359 = vld [vmem:[%s243 + $0x17c] sm:$0xf]
        %v360 = vld [vmem:[#allocation2] sm:$0xff]
        %v361 = vld [vmem:[#allocation2 + $0x8] sm:$0xff]
        %v362 = vld [vmem:[#allocation2 + $0x10] sm:$0xff]
        %v363 = vld [vmem:[#allocation2 + $0x18] sm:$0xff]
        %v364 = vld [vmem:[#allocation2 + $0x20] sm:$0xff]
        %v365 = vld [vmem:[#allocation2 + $0x28] sm:$0xff]
        %v366 = vld [vmem:[#allocation2 + $0x30] sm:$0xff]
        %v367 = vld [vmem:[#allocation2 + $0x38] sm:$0xff]
        %v368 = vld [vmem:[#allocation2 + $0x40] sm:$0xff]
        %v369 = vld [vmem:[#allocation2 + $0x48] sm:$0xff]
        %v370 = vld [vmem:[#allocation2 + $0x50] sm:$0xff]
        %v371 = vld [vmem:[#allocation2 + $0x58] sm:$0xff]
        %v372 = vld [vmem:[#allocation2 + $0x60] sm:$0xff]
        %v373 = vld [vmem:[#allocation2 + $0x68] sm:$0xff]
        %v374 = vld [vmem:[#allocation2 + $0x70] sm:$0xff]
        %v375 = vld [vmem:[#allocation2 + $0x78] sm:$0xff]
        %v376 = vld [vmem:[#allocation2 + $0x80] sm:$0xff]
        %v377 = vld [vmem:[#allocation2 + $0x88] sm:$0xff]
        %v378 = vld [vmem:[#allocation2 + $0x90] sm:$0xff]
        %v379 = vld [vmem:[#allocation2 + $0x98] sm:$0xff]
        %v380 = vld [vmem:[#allocation2 + $0xa0] sm:$0xff]
        %v381 = vld [vmem:[#allocation2 + $0xa8] sm:$0xff]
        %v382 = vld [vmem:[#allocation2 + $0xb0] sm:$0xff]
        %v383 = vld [vmem:[#allocation2 + $0xb8] sm:$0xff]
        %v384 = vld [vmem:[#allocation2 + $0xc0] sm:$0xff]
        %v385 = vld [vmem:[#allocation2 + $0xc8] sm:$0xff]
        %v386 = vld [vmem:[#allocation2 + $0xd0] sm:$0xff]
        %v387 = vld [vmem:[#allocation2 + $0xd8] sm:$0xff]
        %v388 = vld [vmem:[#allocation2 + $0xe0] sm:$0xff]
        %v389 = vld [vmem:[#allocation2 + $0xe8] sm:$0xff]
        %v390 = vld [vmem:[#allocation2 + $0xf0] sm:$0xff]
        %v391 = vld [vmem:[#allocation2 + $0xf8] sm:$0xff]
        %v392 = vld [vmem:[%s253] sm:$0xf]
        %v393 = vld [vmem:[%s253 + $0x4] sm:$0xf]
        %v394 = vld [vmem:[%s253 + $0x8] sm:$0xf]
        %v395 = vld [vmem:[%s253 + $0xc] sm:$0xf]
        %v396 = vld [vmem:[%s253 + $0x10] sm:$0xf]
        %v397 = vld [vmem:[%s253 + $0x14] sm:$0xf]
        %v398 = vld [vmem:[%s253 + $0x18] sm:$0xf]
        %v399 = vld [vmem:[%s253 + $0x1c] sm:$0xf]
        %v400 = vld [vmem:[%s253 + $0x20] sm:$0xf]
        %v401 = vld [vmem:[%s253 + $0x24] sm:$0xf]
        %v402 = vld [vmem:[%s253 + $0x28] sm:$0xf]
        %v403 = vld [vmem:[%s253 + $0x2c] sm:$0xf]
        %v404 = vld [vmem:[%s253 + $0x30] sm:$0xf]
        %v405 = vld [vmem:[%s253 + $0x34] sm:$0xf]
        %v406 = vld [vmem:[%s253 + $0x38] sm:$0xf]
        %v407 = vld [vmem:[%s253 + $0x3c] sm:$0xf]
        %v408 = vld [vmem:[%s253 + $0x40] sm:$0xf]
        %v409 = vld [vmem:[%s253 + $0x44] sm:$0xf]
        %v410 = vld [vmem:[%s253 + $0x48] sm:$0xf]
        %v411 = vld [vmem:[%s253 + $0x4c] sm:$0xf]
        %v412 = vld [vmem:[%s253 + $0x50] sm:$0xf]
        %v413 = vld [vmem:[%s253 + $0x54] sm:$0xf]
        %v414 = vld [vmem:[%s253 + $0x58] sm:$0xf]
        %v415 = vld [vmem:[%s253 + $0x5c] sm:$0xf]
        %v416 = vld [vmem:[%s253 + $0x60] sm:$0xf]
        %v417 = vld [vmem:[%s253 + $0x64] sm:$0xf]
        %v418 = vld [vmem:[%s253 + $0x68] sm:$0xf]
        %v419 = vld [vmem:[%s253 + $0x6c] sm:$0xf]
        %v420 = vld [vmem:[%s253 + $0x70] sm:$0xf]
        %v421 = vld [vmem:[%s253 + $0x74] sm:$0xf]
        %v422 = vld [vmem:[%s253 + $0x78] sm:$0xf]
        %v423 = vld [vmem:[%s253 + $0x7c] sm:$0xf]
        %v424 = vld [vmem:[%s253 + $0x80] sm:$0xf]
        %v425 = vld [vmem:[%s253 + $0x84] sm:$0xf]
        %v426 = vld [vmem:[%s253 + $0x88] sm:$0xf]
        %v427 = vld [vmem:[%s253 + $0x8c] sm:$0xf]
        %v428 = vld [vmem:[%s253 + $0x90] sm:$0xf]
        %v429 = vld [vmem:[%s253 + $0x94] sm:$0xf]
        %v430 = vld [vmem:[%s253 + $0x98] sm:$0xf]
        %v431 = vld [vmem:[%s253 + $0x9c] sm:$0xf]
        %v432 = vld [vmem:[%s253 + $0xa0] sm:$0xf]
        %v433 = vld [vmem:[%s253 + $0xa4] sm:$0xf]
        %v434 = vld [vmem:[%s253 + $0xa8] sm:$0xf]
        %v435 = vld [vmem:[%s253 + $0xac] sm:$0xf]
        %v436 = vld [vmem:[%s253 + $0xb0] sm:$0xf]
        %v437 = vld [vmem:[%s253 + $0xb4] sm:$0xf]
        %v438 = vld [vmem:[%s253 + $0xb8] sm:$0xf]
        %v439 = vld [vmem:[%s253 + $0xbc] sm:$0xf]
        %v504 = vunpack.c.l.b16 %v296
        %v505 = vunpack.c.h.b16 %v296
        %v506 = vunpack.c.l.b16 %v297
        %v507 = vunpack.c.l.b16 %v298
        %v508 = vunpack.c.h.b16 %v298
        %v509 = vunpack.c.l.b16 %v299
        %v510 = vunpack.c.l.b16 %v300
        %v511 = vunpack.c.h.b16 %v300
        %v512 = vunpack.c.l.b16 %v301
        %v513 = vunpack.c.l.b16 %v302
        %v514 = vunpack.c.h.b16 %v302
        %v515 = vunpack.c.l.b16 %v303
        %v516 = vunpack.c.l.b16 %v304
        %v517 = vunpack.c.h.b16 %v304
        %v518 = vunpack.c.l.b16 %v305
        %v519 = vunpack.c.l.b16 %v306
        %v520 = vunpack.c.h.b16 %v306
        %v521 = vunpack.c.l.b16 %v307
        %v522 = vunpack.c.l.b16 %v308
        %v523 = vunpack.c.h.b16 %v308
        %v524 = vunpack.c.l.b16 %v309
        %v525 = vunpack.c.l.b16 %v310
        %v526 = vunpack.c.h.b16 %v310
        %v527 = vunpack.c.l.b16 %v311
        %v528 = vunpack.c.l.b16 %v312
        %v529 = vunpack.c.h.b16 %v312
        %v530 = vunpack.c.l.b16 %v313
        %v531 = vunpack.c.l.b16 %v314
        %v532 = vunpack.c.h.b16 %v314
        %v533 = vunpack.c.l.b16 %v315
        %v534 = vunpack.c.l.b16 %v316
        %v535 = vunpack.c.h.b16 %v316
        %v536 = vunpack.c.l.b16 %v317
        %v537 = vunpack.c.l.b16 %v318
        %v538 = vunpack.c.h.b16 %v318
        %v539 = vunpack.c.l.b16 %v319
        %v540 = vunpack.c.l.b16 %v320
        %v541 = vunpack.c.h.b16 %v320
        %v542 = vunpack.c.l.b16 %v321
        %v543 = vunpack.c.l.b16 %v322
        %v544 = vunpack.c.h.b16 %v322
        %v545 = vunpack.c.l.b16 %v323
        %v546 = vunpack.c.l.b16 %v324
        %v547 = vunpack.c.h.b16 %v324
        %v548 = vunpack.c.l.b16 %v325
        %v549 = vunpack.c.l.b16 %v326
        %v550 = vunpack.c.h.b16 %v326
        %v551 = vunpack.c.l.b16 %v327
        %v552 = vunpack.c.l.b16 %v328
        %v553 = vunpack.c.h.b16 %v328
        %v554 = vunpack.c.l.b16 %v329
        %v555 = vunpack.c.l.b16 %v330
        %v556 = vunpack.c.h.b16 %v330
        %v557 = vunpack.c.l.b16 %v331
        %v558 = vunpack.c.l.b16 %v332
        %v559 = vunpack.c.h.b16 %v332
        %v560 = vunpack.c.l.b16 %v333
        %v561 = vunpack.c.l.b16 %v334
        %v562 = vunpack.c.h.b16 %v334
        %v563 = vunpack.c.l.b16 %v335
        %v564 = vunpack.c.l.b16 %v336
        %v565 = vunpack.c.h.b16 %v336
        %v566 = vunpack.c.l.b16 %v337
        %v567 = vunpack.c.l.b16 %v338
        %v568 = vunpack.c.h.b16 %v338
        %v569 = vunpack.c.l.b16 %v339
        %v570 = vunpack.c.l.b16 %v340
        %v571 = vunpack.c.h.b16 %v340
        %v572 = vunpack.c.l.b16 %v341
        %v573 = vunpack.c.l.b16 %v342
        %v574 = vunpack.c.h.b16 %v342
        %v575 = vunpack.c.l.b16 %v343
        %v576 = vunpack.c.l.b16 %v344
        %v577 = vunpack.c.h.b16 %v344
        %v578 = vunpack.c.l.b16 %v345
        %v579 = vunpack.c.l.b16 %v346
        %v580 = vunpack.c.h.b16 %v346
        %v581 = vunpack.c.l.b16 %v347
        %v582 = vunpack.c.l.b16 %v348
        %v583 = vunpack.c.h.b16 %v348
        %v584 = vunpack.c.l.b16 %v349
        %v585 = vunpack.c.l.b16 %v350
        %v586 = vunpack.c.h.b16 %v350
        %v587 = vunpack.c.l.b16 %v351
        %v588 = vunpack.c.l.b16 %v352
        %v589 = vunpack.c.h.b16 %v352
        %v590 = vunpack.c.l.b16 %v353
        %v591 = vunpack.c.l.b16 %v354
        %v592 = vunpack.c.h.b16 %v354
        %v593 = vunpack.c.l.b16 %v355
        %v594 = vunpack.c.l.b16 %v356
        %v595 = vunpack.c.h.b16 %v356
        %v596 = vunpack.c.l.b16 %v357
        %v597 = vunpack.c.l.b16 %v358
        %v598 = vunpack.c.h.b16 %v358
        %v599 = vunpack.c.l.b16 %v359
        %v600 = vpack.c.b16 %v507, %v504
        %v601 = vpack.c.b16 %v508, %v505
        %v602 = vpack.c.b16 %v509, %v506
        %v603 = vpack.c.b16 %v513, %v510
        %v604 = vpack.c.b16 %v514, %v511
        %v605 = vpack.c.b16 %v515, %v512
        %v606 = vpack.c.b16 %v519, %v516
        %v607 = vpack.c.b16 %v520, %v517
        %v608 = vpack.c.b16 %v521, %v518
        %v609 = vpack.c.b16 %v525, %v522
        %v610 = vpack.c.b16 %v526, %v523
        %v611 = vpack.c.b16 %v527, %v524
        %v612 = vpack.c.b16 %v531, %v528
        %v613 = vpack.c.b16 %v532, %v529
        %v614 = vpack.c.b16 %v533, %v530
        %v615 = vpack.c.b16 %v537, %v534
        %v616 = vpack.c.b16 %v538, %v535
        %v617 = vpack.c.b16 %v539, %v536
        %v618 = vpack.c.b16 %v543, %v540
        %v619 = vpack.c.b16 %v544, %v541
        %v620 = vpack.c.b16 %v545, %v542
        %v621 = vpack.c.b16 %v549, %v546
        %v622 = vpack.c.b16 %v550, %v547
        %v623 = vpack.c.b16 %v551, %v548
        %v624 = vpack.c.b16 %v555, %v552
        %v625 = vpack.c.b16 %v556, %v553
        %v626 = vpack.c.b16 %v557, %v554
        %v627 = vpack.c.b16 %v561, %v558
        %v628 = vpack.c.b16 %v562, %v559
        %v629 = vpack.c.b16 %v563, %v560
        %v630 = vpack.c.b16 %v567, %v564
        %v631 = vpack.c.b16 %v568, %v565
        %v632 = vpack.c.b16 %v569, %v566
        %v633 = vpack.c.b16 %v573, %v570
        %v634 = vpack.c.b16 %v574, %v571
        %v635 = vpack.c.b16 %v575, %v572
        %v636 = vpack.c.b16 %v579, %v576
        %v637 = vpack.c.b16 %v580, %v577
        %v638 = vpack.c.b16 %v581, %v578
        %v639 = vpack.c.b16 %v585, %v582
        %v640 = vpack.c.b16 %v586, %v583
        %v641 = vpack.c.b16 %v587, %v584
        %v642 = vpack.c.b16 %v591, %v588
        %v643 = vpack.c.b16 %v592, %v589
        %v644 = vpack.c.b16 %v593, %v590
        %v645 = vpack.c.b16 %v597, %v594
        %v646 = vpack.c.b16 %v598, %v595
        %v647 = vpack.c.b16 %v599, %v596
        %v744 = vunpack.c.l.b16 %v392
        %v745 = vunpack.c.l.b16 %v393
        %v746 = vunpack.c.l.b16 %v394
        %v747 = vunpack.c.l.b16 %v395
        %v748 = vunpack.c.l.b16 %v396
        %v749 = vunpack.c.l.b16 %v397
        %v750 = vunpack.c.l.b16 %v398
        %v751 = vunpack.c.l.b16 %v399
        %v752 = vunpack.c.l.b16 %v400
        %v753 = vunpack.c.l.b16 %v401
        %v754 = vunpack.c.l.b16 %v402
        %v755 = vunpack.c.l.b16 %v403
        %v756 = vunpack.c.l.b16 %v404
        %v757 = vunpack.c.l.b16 %v405
        %v758 = vunpack.c.l.b16 %v406
        %v759 = vunpack.c.l.b16 %v407
        %v760 = vunpack.c.l.b16 %v408
        %v761 = vunpack.c.l.b16 %v409
        %v762 = vunpack.c.l.b16 %v410
        %v763 = vunpack.c.l.b16 %v411
        %v764 = vunpack.c.l.b16 %v412
        %v765 = vunpack.c.l.b16 %v413
        %v766 = vunpack.c.l.b16 %v414
        %v767 = vunpack.c.l.b16 %v415
        %v768 = vunpack.c.l.b16 %v416
        %v769 = vunpack.c.l.b16 %v417
        %v770 = vunpack.c.l.b16 %v418
        %v771 = vunpack.c.l.b16 %v419
        %v772 = vunpack.c.l.b16 %v420
        %v773 = vunpack.c.l.b16 %v421
        %v774 = vunpack.c.l.b16 %v422
        %v775 = vunpack.c.l.b16 %v423
        %v776 = vunpack.c.l.b16 %v424
        %v777 = vunpack.c.l.b16 %v425
        %v778 = vunpack.c.l.b16 %v426
        %v779 = vunpack.c.l.b16 %v427
        %v780 = vunpack.c.l.b16 %v428
        %v781 = vunpack.c.l.b16 %v429
        %v782 = vunpack.c.l.b16 %v430
        %v783 = vunpack.c.l.b16 %v431
        %v784 = vunpack.c.l.b16 %v432
        %v785 = vunpack.c.l.b16 %v433
        %v786 = vunpack.c.l.b16 %v434
        %v787 = vunpack.c.l.b16 %v435
        %v788 = vunpack.c.l.b16 %v436
        %v789 = vunpack.c.l.b16 %v437
        %v790 = vunpack.c.l.b16 %v438
        %v791 = vunpack.c.l.b16 %v439
        %v792 = vpack.c.b16 %v745, %v744
        %v793 = vpack.c.b16 %v747, %v746
        %v794 = vpack.c.b16 %v749, %v748
        %v795 = vpack.c.b16 %v751, %v750
        %v796 = vpack.c.b16 %v753, %v752
        %v797 = vpack.c.b16 %v755, %v754
        %v798 = vpack.c.b16 %v757, %v756
        %v799 = vpack.c.b16 %v759, %v758
        %v800 = vpack.c.b16 %v761, %v760
        %v801 = vpack.c.b16 %v763, %v762
        %v802 = vpack.c.b16 %v765, %v764
        %v803 = vpack.c.b16 %v767, %v766
        %v804 = vpack.c.b16 %v769, %v768
        %v805 = vpack.c.b16 %v771, %v770
        %v806 = vpack.c.b16 %v773, %v772
        %v807 = vpack.c.b16 %v775, %v774
        %v808 = vpack.c.b16 %v777, %v776
        %v809 = vpack.c.b16 %v779, %v778
        %v810 = vpack.c.b16 %v781, %v780
        %v811 = vpack.c.b16 %v783, %v782
        %v812 = vpack.c.b16 %v785, %v784
        %v813 = vpack.c.b16 %v787, %v786
        %v814 = vpack.c.b16 %v789, %v788
        %v815 = vpack.c.b16 %v791, %v790
        %840 = vmatprep.subr.bf16.mxu0 0
        %841 = vmatpush1.bf16.msra.mxu0 %v792
        %842 = vmatprep.subr.bf16.mxu0 0
        %843 = vmatpush1.bf16.msra.mxu0 %v793
        %844 = vmatprep.subr.bf16.mxu0 0
        %845 = vmatpush1.bf16.msra.mxu0 %v794
        %846 = vmatprep.subr.bf16.mxu0 0
        %847 = vmatpush1.bf16.msra.mxu0 %v795
        %848 = vmatprep.subr.bf16.mxu0 0
        %849 = vmatpush1.bf16.msra.mxu0 %v796
        %850 = vmatprep.subr.bf16.mxu0 0
        %851 = vmatpush1.bf16.msra.mxu0 %v797
        %852 = vmatprep.subr.bf16.mxu0 0
        %853 = vmatpush1.bf16.msra.mxu0 %v798
        %854 = vmatprep.subr.bf16.mxu0 0
        %855 = vmatpush1.bf16.msra.mxu0 %v799
        %856 = vmatprep.subr.bf16.mxu0 0
        %857 = vmatpush1.bf16.msra.mxu0 %v800
        %858 = vmatprep.subr.bf16.mxu0 0
        %859 = vmatpush1.bf16.msra.mxu0 %v801
        %860 = vmatprep.subr.bf16.mxu0 0
        %861 = vmatpush1.bf16.msra.mxu0 %v802
        %862 = vmatprep.subr.bf16.mxu0 0
        %863 = vmatpush1.bf16.msra.mxu0 %v803
        %864 = vmatprep.subr.bf16.mxu0 0
        %865 = vmatpush1.bf16.msra.mxu0 %v804
        %866 = vmatprep.subr.bf16.mxu0 0
        %867 = vmatpush1.bf16.msra.mxu0 %v805
        %868 = vmatprep.subr.bf16.mxu0 0
        %869 = vmatpush1.bf16.msra.mxu0 %v806
        %870 = vmatprep.subr.bf16.mxu0 0
        %871 = vmatpush1.bf16.msra.mxu0 %v807
        %872 = vmatprep.mubr.bf16.mxu0 %v601
        %873 = vmatmul.mubr.bf16.gmra.mrb[0].mxu0 %v600
        %v874 = vpop.f32.mrb[0].mxu0
        %v875 = vadd.f32 0.0, %v874
        %v876 = vpop.f32.mrb[0].mxu0
        %v877 = vpop.f32.mrb[0].mxu0
        %v878 = vadd.f32 0.0, %v877
        %v879 = vpop.f32.mrb[0].mxu0
        %880 = vmatprep.mubr.bf16.mxu0 %v604
        %881 = vmatmul.mubr.bf16.gmra.mrb[0].mxu0 %v603
        %v882 = vpop.f32.mrb[0].mxu0
        %v883 = vadd.f32 0.0, %v882
        %v884 = vpop.f32.mrb[0].mxu0
        %v885 = vpop.f32.mrb[0].mxu0
        %v886 = vadd.f32 0.0, %v885
        %v887 = vpop.f32.mrb[0].mxu0
        %888 = vmatprep.mubr.bf16.mxu0 %v607
        %889 = vmatmul.mubr.bf16.gmra.mrb[0].mxu0 %v606
        %v890 = vpop.f32.mrb[0].mxu0
        %v891 = vadd.f32 0.0, %v890
        %v892 = vpop.f32.mrb[0].mxu0
        %v893 = vpop.f32.mrb[0].mxu0
        %v894 = vadd.f32 0.0, %v893
        %v895 = vpop.f32.mrb[0].mxu0
        %896 = vmatprep.mubr.bf16.mxu0 %v610
        %897 = vmatmul.mubr.bf16.gmra.mrb[0].mxu0 %v609
        %v898 = vpop.f32.mrb[0].mxu0
        %v899 = vadd.f32 0.0, %v898
        %v900 = vpop.f32.mrb[0].mxu0
        %v901 = vpop.f32.mrb[0].mxu0
        %v902 = vadd.f32 0.0, %v901
        %v903 = vpop.f32.mrb[0].mxu0
        %904 = vmatprep.mubr.bf16.mxu0 %v613
        %905 = vmatmul.mubr.bf16.gmra.mrb[0].mxu0 %v612
        %v906 = vpop.f32.mrb[0].mxu0
        %v907 = vadd.f32 0.0, %v906
        %v908 = vpop.f32.mrb[0].mxu0
        %v909 = vpop.f32.mrb[0].mxu0
        %v910 = vadd.f32 0.0, %v909
        %v911 = vpop.f32.mrb[0].mxu0
        %912 = vmatprep.mubr.bf16.mxu0 %v616
        %913 = vmatmul.mubr.bf16.gmra.mrb[0].mxu0 %v615
        %v914 = vpop.f32.mrb[0].mxu0
        %v915 = vadd.f32 0.0, %v914
        %v916 = vpop.f32.mrb[0].mxu0
        %v917 = vpop.f32.mrb[0].mxu0
        %v918 = vadd.f32 0.0, %v917
        %v919 = vpop.f32.mrb[0].mxu0
        %920 = vmatprep.mubr.bf16.mxu0 %v619
        %921 = vmatmul.mubr.bf16.gmra.mrb[0].mxu0 %v618
        %v922 = vpop.f32.mrb[0].mxu0
        %v923 = vadd.f32 0.0, %v922
        %v924 = vpop.f32.mrb[0].mxu0
        %v925 = vpop.f32.mrb[0].mxu0
        %v926 = vadd.f32 0.0, %v925
        %v927 = vpop.f32.mrb[0].mxu0
        %928 = vmatprep.mubr.bf16.mxu0 %v622
        %929 = vmatmul.mubr.bf16.gmra.mrb[0].mxu0 %v621
        %v930 = vpop.f32.mrb[0].mxu0
        %v931 = vadd.f32 0.0, %v930
        %v932 = vpop.f32.mrb[0].mxu0
        %v933 = vpop.f32.mrb[0].mxu0
        %v934 = vadd.f32 0.0, %v933
        %v935 = vpop.f32.mrb[0].mxu0
        %936 = vmatprep.mubr.bf16.mxu0 %v625
        %937 = vmatmul.mubr.bf16.gmra.mrb[0].mxu0 %v624
        %v938 = vpop.f32.mrb[0].mxu0
        %v939 = vadd.f32 0.0, %v938
        %v940 = vpop.f32.mrb[0].mxu0
        %v941 = vpop.f32.mrb[0].mxu0
        %v942 = vadd.f32 0.0, %v941
        %v943 = vpop.f32.mrb[0].mxu0
        %944 = vmatprep.mubr.bf16.mxu0 %v628
        %945 = vmatmul.mubr.bf16.gmra.mrb[0].mxu0 %v627
        %v946 = vpop.f32.mrb[0].mxu0
        %v947 = vadd.f32 0.0, %v946
        %v948 = vpop.f32.mrb[0].mxu0
        %v949 = vpop.f32.mrb[0].mxu0
        %v950 = vadd.f32 0.0, %v949
        %v951 = vpop.f32.mrb[0].mxu0
        %952 = vmatprep.mubr.bf16.mxu0 %v631
        %953 = vmatmul.mubr.bf16.gmra.mrb[0].mxu0 %v630
        %v954 = vpop.f32.mrb[0].mxu0
        %v955 = vadd.f32 0.0, %v954
        %v956 = vpop.f32.mrb[0].mxu0
        %v957 = vpop.f32.mrb[0].mxu0
        %v958 = vadd.f32 0.0, %v957
        %v959 = vpop.f32.mrb[0].mxu0
        %960 = vmatprep.mubr.bf16.mxu0 %v634
        %961 = vmatmul.mubr.bf16.gmra.mrb[0].mxu0 %v633
        %v962 = vpop.f32.mrb[0].mxu0
        %v963 = vadd.f32 0.0, %v962
        %v964 = vpop.f32.mrb[0].mxu0
        %v965 = vpop.f32.mrb[0].mxu0
        %v966 = vadd.f32 0.0, %v965
        %v967 = vpop.f32.mrb[0].mxu0
        %968 = vmatprep.mubr.bf16.mxu0 %v637
        %969 = vmatmul.mubr.bf16.gmra.mrb[0].mxu0 %v636
        %v970 = vpop.f32.mrb[0].mxu0
        %v971 = vadd.f32 0.0, %v970
        %v972 = vpop.f32.mrb[0].mxu0
        %v973 = vpop.f32.mrb[0].mxu0
        %v974 = vadd.f32 0.0, %v973
        %v975 = vpop.f32.mrb[0].mxu0
        %976 = vmatprep.mubr.bf16.mxu0 %v640
        %977 = vmatmul.mubr.bf16.gmra.mrb[0].mxu0 %v639
        %v978 = vpop.f32.mrb[0].mxu0
        %v979 = vadd.f32 0.0, %v978
        %v980 = vpop.f32.mrb[0].mxu0
        %v981 = vpop.f32.mrb[0].mxu0
        %v982 = vadd.f32 0.0, %v981
        %v983 = vpop.f32.mrb[0].mxu0
        %984 = vmatprep.mubr.bf16.mxu0 %v643
        %985 = vmatmul.mubr.bf16.gmra.mrb[0].mxu0 %v642
        %v986 = vpop.f32.mrb[0].mxu0
        %v987 = vadd.f32 0.0, %v986
        %v988 = vpop.f32.mrb[0].mxu0
        %v989 = vpop.f32.mrb[0].mxu0
        %v990 = vadd.f32 0.0, %v989
        %v991 = vpop.f32.mrb[0].mxu0
        %992 = vmatprep.mubr.bf16.mxu0 %v646
        %993 = vmatmul.mubr.bf16.gmra.mrb[0].mxu0 %v645
        %v994 = vpop.f32.mrb[0].mxu0
        %v995 = vadd.f32 0.0, %v994
        %v996 = vpop.f32.mrb[0].mxu0
        %v997 = vpop.f32.mrb[0].mxu0
        %v998 = vadd.f32 0.0, %v997
        %v999 = vpop.f32.mrb[0].mxu0
        %1000 = vdwg.mxu0
        %1001 = vmatprep.subr.bf16.mxu0 0
        %1002 = vmatpush1.bf16.msra.mxu0 %v808
        %1003 = vmatprep.subr.bf16.mxu0 0
        %1004 = vmatpush1.bf16.msra.mxu0 %v809
        %1005 = vmatprep.subr.bf16.mxu0 0
        %1006 = vmatpush1.bf16.msra.mxu0 %v810
        %1007 = vmatprep.subr.bf16.mxu0 0
        %1008 = vmatpush1.bf16.msra.mxu0 %v811
        %1009 = vmatprep.subr.bf16.mxu0 0
        %1010 = vmatpush1.bf16.msra.mxu0 %v812
        %1011 = vmatprep.subr.bf16.mxu0 0
        %1012 = vmatpush1.bf16.msra.mxu0 %v813
        %1013 = vmatprep.subr.bf16.mxu0 0
        %1014 = vmatpush1.bf16.msra.mxu0 %v814
        %1015 = vmatprep.subr.bf16.mxu0 0
        %1016 = vmatpush1.bf16.msra.mxu0 %v815
        %1017 = vmatprep.subr.bf16.mxu0 0
        %1018 = vmatpush1.bf16.msra.mxu0 0
        %1019 = vmatprep.subr.bf16.mxu0 0
        %1020 = vmatpush1.bf16.msra.mxu0 0
        %1021 = vmatprep.subr.bf16.mxu0 0
        %1022 = vmatpush1.bf16.msra.mxu0 0
        %1023 = vmatprep.subr.bf16.mxu0 0
        %1024 = vmatpush1.bf16.msra.mxu0 0
        %1025 = vmatprep.subr.bf16.mxu0 0
        %1026 = vmatpush1.bf16.msra.mxu0 0
        %1027 = vmatprep.subr.bf16.mxu0 0
        %1028 = vmatpush1.bf16.msra.mxu0 0
        %1029 = vmatprep.subr.bf16.mxu0 0
        %1030 = vmatpush1.bf16.msra.mxu0 0
        %1031 = vmatprep.subr.bf16.mxu0 0
        %1032 = vmatpush1.bf16.msra.mxu0 0
        %1033 = vmatprep.mubr.bf16.mxu0 0
        %1034 = vmatmul.mubr.bf16.gmra.mrb[0].mxu0 %v602
        %v1035 = vpop.f32.mrb[0].mxu0
        %v1036 = vadd.f32 %v875, %v1035
        %v1037 = vpop.f32.mrb[0].mxu0
        %v1038 = vpop.f32.mrb[0].mxu0
        %v1039 = vadd.f32 %v878, %v1038
        %v1040 = vpop.f32.mrb[0].mxu0
        %1041 = vmatprep.mubr.bf16.mxu0 0
        %1042 = vmatmul.mubr.bf16.gmra.mrb[0].mxu0 %v605
        %v1043 = vpop.f32.mrb[0].mxu0
        %v1044 = vadd.f32 %v883, %v1043
        %v1045 = vpop.f32.mrb[0].mxu0
        %v1046 = vpop.f32.mrb[0].mxu0
        %v1047 = vadd.f32 %v886, %v1046
        %v1048 = vpop.f32.mrb[0].mxu0
        %1049 = vmatprep.mubr.bf16.mxu0 0
        %1050 = vmatmul.mubr.bf16.gmra.mrb[0].mxu0 %v608
        %v1051 = vpop.f32.mrb[0].mxu0
        %v1052 = vadd.f32 %v891, %v1051
        %v1053 = vpop.f32.mrb[0].mxu0
        %v1054 = vpop.f32.mrb[0].mxu0
        %v1055 = vadd.f32 %v894, %v1054
        %v1056 = vpop.f32.mrb[0].mxu0
        %1057 = vmatprep.mubr.bf16.mxu0 0
        %1058 = vmatmul.mubr.bf16.gmra.mrb[0].mxu0 %v611
        %v1059 = vpop.f32.mrb[0].mxu0
        %v1060 = vadd.f32 %v899, %v1059
        %v1061 = vpop.f32.mrb[0].mxu0
        %v1062 = vpop.f32.mrb[0].mxu0
        %v1063 = vadd.f32 %v902, %v1062
        %v1064 = vpop.f32.mrb[0].mxu0
        %1065 = vmatprep.mubr.bf16.mxu0 0
        %1066 = vmatmul.mubr.bf16.gmra.mrb[0].mxu0 %v614
        %v1067 = vpop.f32.mrb[0].mxu0
        %v1068 = vadd.f32 %v907, %v1067
        %v1069 = vpop.f32.mrb[0].mxu0
        %v1070 = vpop.f32.mrb[0].mxu0
        %v1071 = vadd.f32 %v910, %v1070
        %v1072 = vpop.f32.mrb[0].mxu0
        %1073 = vmatprep.mubr.bf16.mxu0 0
        %1074 = vmatmul.mubr.bf16.gmra.mrb[0].mxu0 %v617
        %v1075 = vpop.f32.mrb[0].mxu0
        %v1076 = vadd.f32 %v915, %v1075
        %v1077 = vpop.f32.mrb[0].mxu0
        %v1078 = vpop.f32.mrb[0].mxu0
        %v1079 = vadd.f32 %v918, %v1078
        %v1080 = vpop.f32.mrb[0].mxu0
        %1081 = vmatprep.mubr.bf16.mxu0 0
        %1082 = vmatmul.mubr.bf16.gmra.mrb[0].mxu0 %v620
        %v1083 = vpop.f32.mrb[0].mxu0
        %v1084 = vadd.f32 %v923, %v1083
        %v1085 = vpop.f32.mrb[0].mxu0
        %v1086 = vpop.f32.mrb[0].mxu0
        %v1087 = vadd.f32 %v926, %v1086
        %v1088 = vpop.f32.mrb[0].mxu0
        %1089 = vmatprep.mubr.bf16.mxu0 0
        %1090 = vmatmul.mubr.bf16.gmra.mrb[0].mxu0 %v623
        %v1091 = vpop.f32.mrb[0].mxu0
        %v1092 = vadd.f32 %v931, %v1091
        %v1093 = vpop.f32.mrb[0].mxu0
        %v1094 = vpop.f32.mrb[0].mxu0
        %v1095 = vadd.f32 %v934, %v1094
        %v1096 = vpop.f32.mrb[0].mxu0
        %1097 = vmatprep.mubr.bf16.mxu0 0
        %1098 = vmatmul.mubr.bf16.gmra.mrb[0].mxu0 %v626
        %v1099 = vpop.f32.mrb[0].mxu0
        %v1100 = vadd.f32 %v939, %v1099
        %v1101 = vpop.f32.mrb[0].mxu0
        %v1102 = vpop.f32.mrb[0].mxu0
        %v1103 = vadd.f32 %v942, %v1102
        %v1104 = vpop.f32.mrb[0].mxu0
        %1105 = vmatprep.mubr.bf16.mxu0 0
        %1106 = vmatmul.mubr.bf16.gmra.mrb[0].mxu0 %v629
        %v1107 = vpop.f32.mrb[0].mxu0
        %v1108 = vadd.f32 %v947, %v1107
        %v1109 = vpop.f32.mrb[0].mxu0
        %v1110 = vpop.f32.mrb[0].mxu0
        %v1111 = vadd.f32 %v950, %v1110
        %v1112 = vpop.f32.mrb[0].mxu0
        %1113 = vmatprep.mubr.bf16.mxu0 0
        %1114 = vmatmul.mubr.bf16.gmra.mrb[0].mxu0 %v632
        %v1115 = vpop.f32.mrb[0].mxu0
        %v1116 = vadd.f32 %v955, %v1115
        %v1117 = vpop.f32.mrb[0].mxu0
        %v1118 = vpop.f32.mrb[0].mxu0
        %v1119 = vadd.f32 %v958, %v1118
        %v1120 = vpop.f32.mrb[0].mxu0
        %1121 = vmatprep.mubr.bf16.mxu0 0
        %1122 = vmatmul.mubr.bf16.gmra.mrb[0].mxu0 %v635
        %v1123 = vpop.f32.mrb[0].mxu0
        %v1124 = vadd.f32 %v963, %v1123
        %v1125 = vpop.f32.mrb[0].mxu0
        %v1126 = vpop.f32.mrb[0].mxu0
        %v1127 = vadd.f32 %v966, %v1126
        %v1128 = vpop.f32.mrb[0].mxu0
        %1129 = vmatprep.mubr.bf16.mxu0 0
        %1130 = vmatmul.mubr.bf16.gmra.mrb[0].mxu0 %v638
        %v1131 = vpop.f32.mrb[0].mxu0
        %v1132 = vadd.f32 %v971, %v1131
        %v1133 = vpop.f32.mrb[0].mxu0
        %v1134 = vpop.f32.mrb[0].mxu0
        %v1135 = vadd.f32 %v974, %v1134
        %v1136 = vpop.f32.mrb[0].mxu0
        %1137 = vmatprep.mubr.bf16.mxu0 0
        %1138 = vmatmul.mubr.bf16.gmra.mrb[0].mxu0 %v641
        %v1139 = vpop.f32.mrb[0].mxu0
        %v1140 = vadd.f32 %v979, %v1139
        %v1141 = vpop.f32.mrb[0].mxu0
        %v1142 = vpop.f32.mrb[0].mxu0
        %v1143 = vadd.f32 %v982, %v1142
        %v1144 = vpop.f32.mrb[0].mxu0
        %1145 = vmatprep.mubr.bf16.mxu0 0
        %1146 = vmatmul.mubr.bf16.gmra.mrb[0].mxu0 %v644
        %v1147 = vpop.f32.mrb[0].mxu0
        %v1148 = vadd.f32 %v987, %v1147
        %v1149 = vpop.f32.mrb[0].mxu0
        %v1150 = vpop.f32.mrb[0].mxu0
        %v1151 = vadd.f32 %v990, %v1150
        %v1152 = vpop.f32.mrb[0].mxu0
        %1153 = vmatprep.mubr.bf16.mxu0 0
        %1154 = vmatmul.mubr.bf16.gmra.mrb[0].mxu0 %v647
        %v1155 = vpop.f32.mrb[0].mxu0
        %v1156 = vadd.f32 %v995, %v1155
        %v1157 = vpop.f32.mrb[0].mxu0
        %v1158 = vpop.f32.mrb[0].mxu0
        %v1159 = vadd.f32 %v998, %v1158
        %v1160 = vpop.f32.mrb[0].mxu0
        %1161 = vdwg.mxu0
        %v1162 = vadd.f32 %v360, %v1036
        %v1163 = vadd.f32 %v361, %v1039
        %v1164 = vadd.f32 %v362, %v1044
        %v1165 = vadd.f32 %v363, %v1047
        %v1166 = vadd.f32 %v364, %v1052
        %v1167 = vadd.f32 %v365, %v1055
        %v1168 = vadd.f32 %v366, %v1060
        %v1169 = vadd.f32 %v367, %v1063
        %v1170 = vadd.f32 %v368, %v1068
        %v1171 = vadd.f32 %v369, %v1071
        %v1172 = vadd.f32 %v370, %v1076
        %v1173 = vadd.f32 %v371, %v1079
        %v1174 = vadd.f32 %v372, %v1084
        %v1175 = vadd.f32 %v373, %v1087
        %v1176 = vadd.f32 %v374, %v1092
        %v1177 = vadd.f32 %v375, %v1095
        %v1178 = vadd.f32 %v376, %v1100
        %v1179 = vadd.f32 %v377, %v1103
        %v1180 = vadd.f32 %v378, %v1108
        %v1181 = vadd.f32 %v379, %v1111
        %v1182 = vadd.f32 %v380, %v1116
        %v1183 = vadd.f32 %v381, %v1119
        %v1184 = vadd.f32 %v382, %v1124
        %v1185 = vadd.f32 %v383, %v1127
        %v1186 = vadd.f32 %v384, %v1132
        %v1187 = vadd.f32 %v385, %v1135
        %v1188 = vadd.f32 %v386, %v1140
        %v1189 = vadd.f32 %v387, %v1143
        %v1190 = vadd.f32 %v388, %v1148
        %v1191 = vadd.f32 %v389, %v1151
        %v1192 = vadd.f32 %v390, %v1156
        %v1193 = vadd.f32 %v391, %v1159
        %1194 = vst [vmem:[#allocation2] sm:$0xff] %v1162
        %1195 = vst [vmem:[#allocation2 + $0x8] sm:$0xff] %v1163
        %1196 = vst [vmem:[#allocation2 + $0x10] sm:$0xff] %v1164
        %1197 = vst [vmem:[#allocation2 + $0x18] sm:$0xff] %v1165
        %1198 = vst [vmem:[#allocation2 + $0x20] sm:$0xff] %v1166
        %1199 = vst [vmem:[#allocation2 + $0x28] sm:$0xff] %v1167
        %1200 = vst [vmem:[#allocation2 + $0x30] sm:$0xff] %v1168
        %1201 = vst [vmem:[#allocation2 + $0x38] sm:$0xff] %v1169
        %1202 = vst [vmem:[#allocation2 + $0x40] sm:$0xff] %v1170
        %1203 = vst [vmem:[#allocation2 + $0x48] sm:$0xff] %v1171
        %1204 = vst [vmem:[#allocation2 + $0x50] sm:$0xff] %v1172
        %1205 = vst [vmem:[#allocation2 + $0x58] sm:$0xff] %v1173
        %1206 = vst [vmem:[#allocation2 + $0x60] sm:$0xff] %v1174
        %1207 = vst [vmem:[#allocation2 + $0x68] sm:$0xff] %v1175
        %1208 = vst [vmem:[#allocation2 + $0x70] sm:$0xff] %v1176
        %1209 = vst [vmem:[#allocation2 + $0x78] sm:$0xff] %v1177
        %1210 = vst [vmem:[#allocation2 + $0x80] sm:$0xff] %v1178
        %1211 = vst [vmem:[#allocation2 + $0x88] sm:$0xff] %v1179
        %1212 = vst [vmem:[#allocation2 + $0x90] sm:$0xff] %v1180
        %1213 = vst [vmem:[#allocation2 + $0x98] sm:$0xff] %v1181
        %1214 = vst [vmem:[#allocation2 + $0xa0] sm:$0xff] %v1182
        %1215 = vst [vmem:[#allocation2 + $0xa8] sm:$0xff] %v1183
        %1216 = vst [vmem:[#allocation2 + $0xb0] sm:$0xff] %v1184
        %1217 = vst [vmem:[#allocation2 + $0xb8] sm:$0xff] %v1185
        %1218 = vst [vmem:[#allocation2 + $0xc0] sm:$0xff] %v1186
        %1219 = vst [vmem:[#allocation2 + $0xc8] sm:$0xff] %v1187
        %1220 = vst [vmem:[#allocation2 + $0xd0] sm:$0xff] %v1188
        %1221 = vst [vmem:[#allocation2 + $0xd8] sm:$0xff] %v1189
        %1222 = vst [vmem:[#allocation2 + $0xe0] sm:$0xff] %v1190
        %1223 = vst [vmem:[#allocation2 + $0xe8] sm:$0xff] %v1191
        %1224 = vst [vmem:[#allocation2 + $0xf0] sm:$0xff] %v1192
        %1225 = vst [vmem:[#allocation2 + $0xf8] sm:$0xff] %v1193
        // Predicated region
        $region37: #{pyramid_features_forward.13} parent=31 // pred_check
          %p1226 = pneg %p260
        $region38: #{pyramid_features_forward.13} parent=31 // pred_check_branch
          %1228 = sbr.rel (%p1226) target = $region40
        $region39: #{pyramid_features_forward.13} parent=31 // pred_region
          %v1229 = vld [vmem:[#allocation2] sm:$0xff]
          %v1230 = vld [vmem:[#allocation2 + $0x8] sm:$0xff]
          %v1231 = vld [vmem:[#allocation2 + $0x10] sm:$0xff]
          %v1232 = vld [vmem:[#allocation2 + $0x18] sm:$0xff]
          %v1233 = vld [vmem:[#allocation2 + $0x20] sm:$0xff]
          %v1234 = vld [vmem:[#allocation2 + $0x28] sm:$0xff]
          %v1235 = vld [vmem:[#allocation2 + $0x30] sm:$0xff]
          %v1236 = vld [vmem:[#allocation2 + $0x38] sm:$0xff]
          %v1237 = vld [vmem:[#allocation2 + $0x40] sm:$0xff]
          %v1238 = vld [vmem:[#allocation2 + $0x48] sm:$0xff]
          %v1239 = vld [vmem:[#allocation2 + $0x50] sm:$0xff]
          %v1240 = vld [vmem:[#allocation2 + $0x58] sm:$0xff]
          %v1241 = vld [vmem:[#allocation2 + $0x60] sm:$0xff]
          %v1242 = vld [vmem:[#allocation2 + $0x68] sm:$0xff]
          %v1243 = vld [vmem:[#allocation2 + $0x70] sm:$0xff]
          %v1244 = vld [vmem:[#allocation2 + $0x78] sm:$0xff]
          %v1245 = vld [vmem:[#allocation2 + $0x80] sm:$0xff]
          %v1246 = vld [vmem:[#allocation2 + $0x88] sm:$0xff]
          %v1247 = vld [vmem:[#allocation2 + $0x90] sm:$0xff]
          %v1248 = vld [vmem:[#allocation2 + $0x98] sm:$0xff]
          %v1249 = vld [vmem:[#allocation2 + $0xa0] sm:$0xff]
          %v1250 = vld [vmem:[#allocation2 + $0xa8] sm:$0xff]
          %v1251 = vld [vmem:[#allocation2 + $0xb0] sm:$0xff]
          %v1252 = vld [vmem:[#allocation2 + $0xb8] sm:$0xff]
          %v1253 = vld [vmem:[#allocation2 + $0xc0] sm:$0xff]
          %v1254 = vld [vmem:[#allocation2 + $0xc8] sm:$0xff]
          %v1255 = vld [vmem:[#allocation2 + $0xd0] sm:$0xff]
          %v1256 = vld [vmem:[#allocation2 + $0xd8] sm:$0xff]
          %v1257 = vld [vmem:[#allocation2 + $0xe0] sm:$0xff]
          %v1258 = vld [vmem:[#allocation2 + $0xe8] sm:$0xff]
          %v1259 = vld [vmem:[#allocation2 + $0xf0] sm:$0xff]
          %v1260 = vld [vmem:[#allocation2 + $0xf8] sm:$0xff]
          %v1261 = vld [vmem:[%s257] sm:$0x1]
          %v1263 = vlaneseq
          %v1264 = vshrl.u32 %v1263, 7
          %v1265 = vsub.s32 0, %v1264
          %v1266 = vrot.slane %v1261, %v1265
          %v1268 = vadd.f32 %v1229, %v1266
          %v1269 = vadd.f32 %v1230, %v1266
          %v1270 = vadd.f32 %v1231, %v1266
          %v1271 = vadd.f32 %v1232, %v1266
          %v1272 = vadd.f32 %v1233, %v1266
          %v1273 = vadd.f32 %v1234, %v1266
          %v1274 = vadd.f32 %v1235, %v1266
          %v1275 = vadd.f32 %v1236, %v1266
          %v1276 = vadd.f32 %v1237, %v1266
          %v1277 = vadd.f32 %v1238, %v1266
          %v1278 = vadd.f32 %v1239, %v1266
          %v1279 = vadd.f32 %v1240, %v1266
          %v1280 = vadd.f32 %v1241, %v1266
          %v1281 = vadd.f32 %v1242, %v1266
          %v1282 = vadd.f32 %v1243, %v1266
          %v1283 = vadd.f32 %v1244, %v1266
          %v1284 = vadd.f32 %v1245, %v1266
          %v1285 = vadd.f32 %v1246, %v1266
          %v1286 = vadd.f32 %v1247, %v1266
          %v1287 = vadd.f32 %v1248, %v1266
          %v1288 = vadd.f32 %v1249, %v1266
          %v1289 = vadd.f32 %v1250, %v1266
          %v1290 = vadd.f32 %v1251, %v1266
          %v1291 = vadd.f32 %v1252, %v1266
          %v1292 = vadd.f32 %v1253, %v1266
          %v1293 = vadd.f32 %v1254, %v1266
          %v1294 = vadd.f32 %v1255, %v1266
          %v1295 = vadd.f32 %v1256, %v1266
          %v1296 = vadd.f32 %v1257, %v1266
          %v1297 = vadd.f32 %v1258, %v1266
          %v1298 = vadd.f32 %v1259, %v1266
          %v1299 = vadd.f32 %v1260, %v1266
          %1300 = vst [vmem:[%s233] sm:$0xff] %v1268
          %1301 = vst [vmem:[%s233 + $0x8] sm:$0xff] %v1269
          %1302 = vst [vmem:[%s233 + $0x10] sm:$0xff] %v1270
          %1303 = vst [vmem:[%s233 + $0x18] sm:$0xff] %v1271
          %1304 = vst [vmem:[%s233 + $0x20] sm:$0xff] %v1272
          %1305 = vst [vmem:[%s233 + $0x28] sm:$0xff] %v1273
          %1306 = vst [vmem:[%s233 + $0x30] sm:$0xff] %v1274
          %1307 = vst [vmem:[%s233 + $0x38] sm:$0xff] %v1275
          %1308 = vst [vmem:[%s233 + $0x40] sm:$0xff] %v1276
          %1309 = vst [vmem:[%s233 + $0x48] sm:$0xff] %v1277
          %1310 = vst [vmem:[%s233 + $0x50] sm:$0xff] %v1278
          %1311 = vst [vmem:[%s233 + $0x58] sm:$0xff] %v1279
          %1312 = vst [vmem:[%s233 + $0x60] sm:$0xff] %v1280
          %1313 = vst [vmem:[%s233 + $0x68] sm:$0xff] %v1281
          %1314 = vst [vmem:[%s233 + $0x70] sm:$0xff] %v1282
          %1315 = vst [vmem:[%s233 + $0x78] sm:$0xff] %v1283
          %1316 = vst [vmem:[%s233 + $0x80] sm:$0xff] %v1284
          %1317 = vst [vmem:[%s233 + $0x88] sm:$0xff] %v1285
          %1318 = vst [vmem:[%s233 + $0x90] sm:$0xff] %v1286
          %1319 = vst [vmem:[%s233 + $0x98] sm:$0xff] %v1287
          %1320 = vst [vmem:[%s233 + $0xa0] sm:$0xff] %v1288
          %1321 = vst [vmem:[%s233 + $0xa8] sm:$0xff] %v1289
          %1322 = vst [vmem:[%s233 + $0xb0] sm:$0xff] %v1290
          %1323 = vst [vmem:[%s233 + $0xb8] sm:$0xff] %v1291
          %1324 = vst [vmem:[%s233 + $0xc0] sm:$0xff] %v1292
          %1325 = vst [vmem:[%s233 + $0xc8] sm:$0xff] %v1293
          %1326 = vst [vmem:[%s233 + $0xd0] sm:$0xff] %v1294
          %1327 = vst [vmem:[%s233 + $0xd8] sm:$0xff] %v1295
          %1328 = vst [vmem:[%s233 + $0xe0] sm:$0xff] %v1296
          %1329 = vst [vmem:[%s233 + $0xe8] sm:$0xff] %v1297
          %1330 = vst [vmem:[%s233 + $0xf0] sm:$0xff] %v1298
          %1331 = vst [vmem:[%s233 + $0xf8] sm:$0xff] %v1299
        $region40: #{pyramid_features_forward.13} parent=31 // pred_fallthru
          _
        %s1332 = sand.u32 %s128, 1
        %s1333 = scalar_lea.sflag [#allocation4], %s1332
        %s1334 = sand.u32 %s128, 1
        %s1335 = smul.addr %s1334, 256
        %s1336 = scalar_lea.vmem [#allocation3], %s1335
        // Predicated region
        $region41: #{pyramid_features_forward.13} parent=31 // pred_check
          %p1337 = pneg %p138
        $region42: #{pyramid_features_forward.13} parent=31 // pred_check_branch
          %1339 = sbr.rel (%p1337) target = $region44
        $region43: #{pyramid_features_forward.13} parent=31 // pred_region
          %s1340 = smul.u32 32, %s22
          %s1342 = ssub.s32 4096, 4096
          %1343 = vsyncadd %s1333, %s1342
          %s1344 = sadd.s32 %s23, %s1340
          %s1345 = smul.addr %s1344, 128
          %s1346 = scalar_lea.hbm %s3, %s1345
          %s1347 = sshll.u32 %s1336, 4
          %s1348 = int_to_ptr.vmem [resolvable:$true] %s1347
          %1353 = dma.vmem_to_hbm [thread:$0]  %s1348, 4096, %s1346, %s1333, 128, 128, 8
        $region44: #{pyramid_features_forward.13} parent=31 // pred_fallthru
          _
      $region32: #{pyramid_features_forward.13} parent=5 // pred_fallthru
        _
      %p1354 = scmp.le.s32.totalorder 2, %s12
      // Predicated region
      $region45: #{pyramid_features_forward.13} parent=5 // pred_check
        %p1355 = pneg %p1354
      $region46: #{pyramid_features_forward.13} parent=5 // pred_check_branch
        %1357 = sbr.rel (%p1355) target = $region48
      $region47: #{pyramid_features_forward.13} parent=5 // pred_region
        %s1358 = ssub.s32 %s12, 2
        // Predicated region
        $region49: #{pyramid_features_forward.13} parent=47 // pred_check
          %p1359 = pneg %p144
        $region50: #{pyramid_features_forward.13} parent=47 // pred_check_branch
          %1361 = sbr.rel (%p1359) target = $region52
        $region51: #{pyramid_features_forward.13} parent=47 // pred_region
          %s1362 = sand.u32 %s129, 1
          %s1363 = scalar_lea.sflag [#allocation4], %s1362
          %s1364 = sand.u32 %s129, 1
          %s1365 = smul.addr %s1364, 256
          %s1366 = scalar_lea.vmem [#allocation3], %s1365
          %1367 = dma.done %s1363, 4096
        $region52: #{pyramid_features_forward.13} parent=47 // pred_fallthru
          _
      $region48: #{pyramid_features_forward.13} parent=5 // pred_fallthru
        _
    $region6: #{pyramid_features_forward.13} parent=1 // loop_footer
      %s16 = sadd.s32 1, %s12
    $region7: #{pyramid_features_forward.13} parent=1 // loop_footer_branch
      %11 = sbr.rel target = $region3
    $region8: #{pyramid_features_forward.13} parent=1 // loop_exit
      _
    %1368 = vsyncpa [#allocation4], 1
    %s1369 = scalar_lea.sflag [#allocation4], 1
    %1370 = vsyncpa %s1369, 1

// kernel: pyramid_features_forward.9
$region0: #{pyramid_features_forward.9}
  #allocation0 [shape = 'u32[]', space=smem, size = 0x4, offset = 0x4, fixed_abs, tag = 'smem constant byte address 0x4 - core index']
  #allocation1 [shape = 'u32[144,128]{1,0:T(1,128)}', space=vmem, size = 0x12000, scoped, tag = 'internal scratch']
  #allocation2 [shape = 'f32[32,128]{1,0:T(8,128)}', space=vmem, size = 0x4000, scoped, tag = 'scratch operand']
  %s0 = inlined_call_operand.vmem [shape: bf16[32,384], index: 0, kind: input, shape index: {}]
  %s1 = inlined_call_operand.vmem [shape: bf16[384,128], index: 1, kind: input, shape index: {}]
  %s2 = inlined_call_operand.vmem [shape: f32[1,128], index: 2, kind: input, shape index: {}]
  %s3 = inlined_call_operand.hbm [shape: f32[32,128], index: 3, kind: output, shape index: {}]
  %s4 = sld [smem:[#allocation0]]
  $region30: #{pyramid_features_forward.9} parent=0
    _
  %s6 = ssub.s32 1, %s4
  %s7 = scalar_select 0, %s6, %s4
  $region1: #{pyramid_features_forward.9} parent=0
    #allocation3 [shape = 'u8[16384]{0}', space=vmem, size = 0x4000, scoped, tag = 'output window, operand 0, single buffered']
    #allocation4 [shape = 's32[1]{0}', space=sflag, size = 0x4, scoped, tag = 'scoped memory for pyramid_features_forward.9']
    %8 = vsyncpa [#allocation4], 0
    // Predicated region
    $region2: #{pyramid_features_forward.9} parent=1 // pred_check
      _
    $region3: #{pyramid_features_forward.9} parent=1 // pred_check_branch
      %10 = sbr.rel (0) target = $region5
    $region4: #{pyramid_features_forward.9} parent=1 // pred_region
      _
    $region5: #{pyramid_features_forward.9} parent=1 // pred_fallthru
      _
    // Predicated region
    $region6: #{pyramid_features_forward.9} parent=1 // pred_check
      _
    $region7: #{pyramid_features_forward.9} parent=1 // pred_check_branch
      %12 = sbr.rel (0) target = $region9
    $region8: #{pyramid_features_forward.9} parent=1 // pred_region
      _
    $region9: #{pyramid_features_forward.9} parent=1 // pred_fallthru
      _
    // Predicated region
    $region10: #{pyramid_features_forward.9} parent=1 // pred_check
      _
    $region11: #{pyramid_features_forward.9} parent=1 // pred_check_branch
      %14 = sbr.rel (0) target = $region13
    $region12: #{pyramid_features_forward.9} parent=1 // pred_region
      _
    $region13: #{pyramid_features_forward.9} parent=1 // pred_fallthru
      _
    %p16 = scmp.eq.s32.totalorder 0, 0
    // Predicated region
    $region14: #{pyramid_features_forward.9} parent=1 // pred_check
      %p17 = pneg %p16
    $region15: #{pyramid_features_forward.9} parent=1 // pred_check_branch
      %19 = sbr.rel (%p17) target = $region17
    $region16: #{pyramid_features_forward.9} parent=1 // pred_region
      %20 = vst [vmem:[#allocation2] sm:$0xff] 0.0
      %21 = vst [vmem:[#allocation2 + $0x8] sm:$0xff] 0.0
      %22 = vst [vmem:[#allocation2 + $0x10] sm:$0xff] 0.0
      %23 = vst [vmem:[#allocation2 + $0x18] sm:$0xff] 0.0
    $region17: #{pyramid_features_forward.9} parent=1 // pred_fallthru
      _
    %v24 = vld [vmem:[%s0] sm:$0xff]
    %v25 = vld [vmem:[%s0 + $0x8] sm:$0xf]
    %v26 = vld [vmem:[%s0 + $0xc] sm:$0xff]
    %v27 = vld [vmem:[%s0 + $0x14] sm:$0xf]
    %v28 = vld [vmem:[%s0 + $0x18] sm:$0xff]
    %v29 = vld [vmem:[%s0 + $0x20] sm:$0xf]
    %v30 = vld [vmem:[%s0 + $0x24] sm:$0xff]
    %v31 = vld [vmem:[%s0 + $0x2c] sm:$0xf]
    %v32 = vld [vmem:[#allocation2] sm:$0xff]
    %v33 = vld [vmem:[#allocation2 + $0x8] sm:$0xff]
    %v34 = vld [vmem:[#allocation2 + $0x10] sm:$0xff]
    %v35 = vld [vmem:[#allocation2 + $0x18] sm:$0xff]
    %v36 = vld [vmem:[%s1] sm:$0xf]
    %v37 = vld [vmem:[%s1 + $0x4] sm:$0xf]
    %v38 = vld [vmem:[%s1 + $0x8] sm:$0xf]
    %v39 = vld [vmem:[%s1 + $0xc] sm:$0xf]
    %v40 = vld [vmem:[%s1 + $0x10] sm:$0xf]
    %v41 = vld [vmem:[%s1 + $0x14] sm:$0xf]
    %v42 = vld [vmem:[%s1 + $0x18] sm:$0xf]
    %v43 = vld [vmem:[%s1 + $0x1c] sm:$0xf]
    %v44 = vld [vmem:[%s1 + $0x20] sm:$0xf]
    %v45 = vld [vmem:[%s1 + $0x24] sm:$0xf]
    %v46 = vld [vmem:[%s1 + $0x28] sm:$0xf]
    %v47 = vld [vmem:[%s1 + $0x2c] sm:$0xf]
    %v48 = vld [vmem:[%s1 + $0x30] sm:$0xf]
    %v49 = vld [vmem:[%s1 + $0x34] sm:$0xf]
    %v50 = vld [vmem:[%s1 + $0x38] sm:$0xf]
    %v51 = vld [vmem:[%s1 + $0x3c] sm:$0xf]
    %v52 = vld [vmem:[%s1 + $0x40] sm:$0xf]
    %v53 = vld [vmem:[%s1 + $0x44] sm:$0xf]
    %v54 = vld [vmem:[%s1 + $0x48] sm:$0xf]
    %v55 = vld [vmem:[%s1 + $0x4c] sm:$0xf]
    %v56 = vld [vmem:[%s1 + $0x50] sm:$0xf]
    %v57 = vld [vmem:[%s1 + $0x54] sm:$0xf]
    %v58 = vld [vmem:[%s1 + $0x58] sm:$0xf]
    %v59 = vld [vmem:[%s1 + $0x5c] sm:$0xf]
    %v60 = vld [vmem:[%s1 + $0x60] sm:$0xf]
    %v61 = vld [vmem:[%s1 + $0x64] sm:$0xf]
    %v62 = vld [vmem:[%s1 + $0x68] sm:$0xf]
    %v63 = vld [vmem:[%s1 + $0x6c] sm:$0xf]
    %v64 = vld [vmem:[%s1 + $0x70] sm:$0xf]
    %v65 = vld [vmem:[%s1 + $0x74] sm:$0xf]
    %v66 = vld [vmem:[%s1 + $0x78] sm:$0xf]
    %v67 = vld [vmem:[%s1 + $0x7c] sm:$0xf]
    %v68 = vld [vmem:[%s1 + $0x80] sm:$0xf]
    %v69 = vld [vmem:[%s1 + $0x84] sm:$0xf]
    %v70 = vld [vmem:[%s1 + $0x88] sm:$0xf]
    %v71 = vld [vmem:[%s1 + $0x8c] sm:$0xf]
    %v72 = vld [vmem:[%s1 + $0x90] sm:$0xf]
    %v73 = vld [vmem:[%s1 + $0x94] sm:$0xf]
    %v74 = vld [vmem:[%s1 + $0x98] sm:$0xf]
    %v75 = vld [vmem:[%s1 + $0x9c] sm:$0xf]
    %v76 = vld [vmem:[%s1 + $0xa0] sm:$0xf]
    %v77 = vld [vmem:[%s1 + $0xa4] sm:$0xf]
    %v78 = vld [vmem:[%s1 + $0xa8] sm:$0xf]
    %v79 = vld [vmem:[%s1 + $0xac] sm:$0xf]
    %v80 = vld [vmem:[%s1 + $0xb0] sm:$0xf]
    %v81 = vld [vmem:[%s1 + $0xb4] sm:$0xf]
    %v82 = vld [vmem:[%s1 + $0xb8] sm:$0xf]
    %v83 = vld [vmem:[%s1 + $0xbc] sm:$0xf]
    %v92 = vunpack.c.l.b16 %v24
    %v93 = vunpack.c.h.b16 %v24
    %v94 = vunpack.c.l.b16 %v25
    %v95 = vunpack.c.l.b16 %v26
    %v96 = vunpack.c.h.b16 %v26
    %v97 = vunpack.c.l.b16 %v27
    %v98 = vunpack.c.l.b16 %v28
    %v99 = vunpack.c.h.b16 %v28
    %v100 = vunpack.c.l.b16 %v29
    %v101 = vunpack.c.l.b16 %v30
    %v102 = vunpack.c.h.b16 %v30
    %v103 = vunpack.c.l.b16 %v31
    %v104 = vpack.c.b16 %v95, %v92
    %v105 = vpack.c.b16 %v96, %v93
    %v106 = vpack.c.b16 %v97, %v94
    %v107 = vpack.c.b16 %v101, %v98
    %v108 = vpack.c.b16 %v102, %v99
    %v109 = vpack.c.b16 %v103, %v100
    %v164 = vunpack.c.l.b16 %v36
    %v165 = vunpack.c.l.b16 %v37
    %v166 = vunpack.c.l.b16 %v38
    %v167 = vunpack.c.l.b16 %v39
    %v168 = vunpack.c.l.b16 %v40
    %v169 = vunpack.c.l.b16 %v41
    %v170 = vunpack.c.l.b16 %v42
    %v171 = vunpack.c.l.b16 %v43
    %v172 = vunpack.c.l.b16 %v44
    %v173 = vunpack.c.l.b16 %v45
    %v174 = vunpack.c.l.b16 %v46
    %v175 = vunpack.c.l.b16 %v47
    %v176 = vunpack.c.l.b16 %v48
    %v177 = vunpack.c.l.b16 %v49
    %v178 = vunpack.c.l.b16 %v50
    %v179 = vunpack.c.l.b16 %v51
    %v180 = vunpack.c.l.b16 %v52
    %v181 = vunpack.c.l.b16 %v53
    %v182 = vunpack.c.l.b16 %v54
    %v183 = vunpack.c.l.b16 %v55
    %v184 = vunpack.c.l.b16 %v56
    %v185 = vunpack.c.l.b16 %v57
    %v186 = vunpack.c.l.b16 %v58
    %v187 = vunpack.c.l.b16 %v59
    %v188 = vunpack.c.l.b16 %v60
    %v189 = vunpack.c.l.b16 %v61
    %v190 = vunpack.c.l.b16 %v62
    %v191 = vunpack.c.l.b16 %v63
    %v192 = vunpack.c.l.b16 %v64
    %v193 = vunpack.c.l.b16 %v65
    %v194 = vunpack.c.l.b16 %v66
    %v195 = vunpack.c.l.b16 %v67
    %v196 = vunpack.c.l.b16 %v68
    %v197 = vunpack.c.l.b16 %v69
    %v198 = vunpack.c.l.b16 %v70
    %v199 = vunpack.c.l.b16 %v71
    %v200 = vunpack.c.l.b16 %v72
    %v201 = vunpack.c.l.b16 %v73
    %v202 = vunpack.c.l.b16 %v74
    %v203 = vunpack.c.l.b16 %v75
    %v204 = vunpack.c.l.b16 %v76
    %v205 = vunpack.c.l.b16 %v77
    %v206 = vunpack.c.l.b16 %v78
    %v207 = vunpack.c.l.b16 %v79
    %v208 = vunpack.c.l.b16 %v80
    %v209 = vunpack.c.l.b16 %v81
    %v210 = vunpack.c.l.b16 %v82
    %v211 = vunpack.c.l.b16 %v83
    %v212 = vpack.c.b16 %v165, %v164
    %v213 = vpack.c.b16 %v167, %v166
    %v214 = vpack.c.b16 %v169, %v168
    %v215 = vpack.c.b16 %v171, %v170
    %v216 = vpack.c.b16 %v173, %v172
    %v217 = vpack.c.b16 %v175, %v174
    %v218 = vpack.c.b16 %v177, %v176
    %v219 = vpack.c.b16 %v179, %v178
    %v220 = vpack.c.b16 %v181, %v180
    %v221 = vpack.c.b16 %v183, %v182
    %v222 = vpack.c.b16 %v185, %v184
    %v223 = vpack.c.b16 %v187, %v186
    %v224 = vpack.c.b16 %v189, %v188
    %v225 = vpack.c.b16 %v191, %v190
    %v226 = vpack.c.b16 %v193, %v192
    %v227 = vpack.c.b16 %v195, %v194
    %v228 = vpack.c.b16 %v197, %v196
    %v229 = vpack.c.b16 %v199, %v198
    %v230 = vpack.c.b16 %v201, %v200
    %v231 = vpack.c.b16 %v203, %v202
    %v232 = vpack.c.b16 %v205, %v204
    %v233 = vpack.c.b16 %v207, %v206
    %v234 = vpack.c.b16 %v209, %v208
    %v235 = vpack.c.b16 %v211, %v210
    %260 = vmatprep.subr.bf16.mxu0 0
    %261 = vmatpush1.bf16.msra.mxu0 %v212
    %262 = vmatprep.subr.bf16.mxu0 0
    %263 = vmatpush1.bf16.msra.mxu0 %v213
    %264 = vmatprep.subr.bf16.mxu0 0
    %265 = vmatpush1.bf16.msra.mxu0 %v214
    %266 = vmatprep.subr.bf16.mxu0 0
    %267 = vmatpush1.bf16.msra.mxu0 %v215
    %268 = vmatprep.subr.bf16.mxu0 0
    %269 = vmatpush1.bf16.msra.mxu0 %v216
    %270 = vmatprep.subr.bf16.mxu0 0
    %271 = vmatpush1.bf16.msra.mxu0 %v217
    %272 = vmatprep.subr.bf16.mxu0 0
    %273 = vmatpush1.bf16.msra.mxu0 %v218
    %274 = vmatprep.subr.bf16.mxu0 0
    %275 = vmatpush1.bf16.msra.mxu0 %v219
    %276 = vmatprep.subr.bf16.mxu0 0
    %277 = vmatpush1.bf16.msra.mxu0 %v220
    %278 = vmatprep.subr.bf16.mxu0 0
    %279 = vmatpush1.bf16.msra.mxu0 %v221
    %280 = vmatprep.subr.bf16.mxu0 0
    %281 = vmatpush1.bf16.msra.mxu0 %v222
    %282 = vmatprep.subr.bf16.mxu0 0
    %283 = vmatpush1.bf16.msra.mxu0 %v223
    %284 = vmatprep.subr.bf16.mxu0 0
    %285 = vmatpush1.bf16.msra.mxu0 %v224
    %286 = vmatprep.subr.bf16.mxu0 0
    %287 = vmatpush1.bf16.msra.mxu0 %v225
    %288 = vmatprep.subr.bf16.mxu0 0
    %289 = vmatpush1.bf16.msra.mxu0 %v226
    %290 = vmatprep.subr.bf16.mxu0 0
    %291 = vmatpush1.bf16.msra.mxu0 %v227
    %292 = vmatprep.mubr.bf16.mxu0 %v105
    %293 = vmatmul.mubr.bf16.gmra.mrb[0].mxu0 %v104
    %v294 = vpop.f32.mrb[0].mxu0
    %v295 = vadd.f32 0.0, %v294
    %v296 = vpop.f32.mrb[0].mxu0
    %v297 = vpop.f32.mrb[0].mxu0
    %v298 = vadd.f32 0.0, %v297
    %v299 = vpop.f32.mrb[0].mxu0
    %300 = vmatprep.mubr.bf16.mxu0 %v108
    %301 = vmatmul.mubr.bf16.gmra.mrb[0].mxu0 %v107
    %v302 = vpop.f32.mrb[0].mxu0
    %v303 = vadd.f32 0.0, %v302
    %v304 = vpop.f32.mrb[0].mxu0
    %v305 = vpop.f32.mrb[0].mxu0
    %v306 = vadd.f32 0.0, %v305
    %v307 = vpop.f32.mrb[0].mxu0
    %308 = vdwg.mxu0
    %309 = vmatprep.subr.bf16.mxu0 0
    %310 = vmatpush1.bf16.msra.mxu0 %v228
    %311 = vmatprep.subr.bf16.mxu0 0
    %312 = vmatpush1.bf16.msra.mxu0 %v229
    %313 = vmatprep.subr.bf16.mxu0 0
    %314 = vmatpush1.bf16.msra.mxu0 %v230
    %315 = vmatprep.subr.bf16.mxu0 0
    %316 = vmatpush1.bf16.msra.mxu0 %v231
    %317 = vmatprep.subr.bf16.mxu0 0
    %318 = vmatpush1.bf16.msra.mxu0 %v232
    %319 = vmatprep.subr.bf16.mxu0 0
    %320 = vmatpush1.bf16.msra.mxu0 %v233
    %321 = vmatprep.subr.bf16.mxu0 0
    %322 = vmatpush1.bf16.msra.mxu0 %v234
    %323 = vmatprep.subr.bf16.mxu0 0
    %324 = vmatpush1.bf16.msra.mxu0 %v235
    %325 = vmatprep.subr.bf16.mxu0 0
    %326 = vmatpush1.bf16.msra.mxu0 0
    %327 = vmatprep.subr.bf16.mxu0 0
    %328 = vmatpush1.bf16.msra.mxu0 0
    %329 = vmatprep.subr.bf16.mxu0 0
    %330 = vmatpush1.bf16.msra.mxu0 0
    %331 = vmatprep.subr.bf16.mxu0 0
    %332 = vmatpush1.bf16.msra.mxu0 0
    %333 = vmatprep.subr.bf16.mxu0 0
    %334 = vmatpush1.bf16.msra.mxu0 0
    %335 = vmatprep.subr.bf16.mxu0 0
    %336 = vmatpush1.bf16.msra.mxu0 0
    %337 = vmatprep.subr.bf16.mxu0 0
    %338 = vmatpush1.bf16.msra.mxu0 0
    %339 = vmatprep.subr.bf16.mxu0 0
    %340 = vmatpush1.bf16.msra.mxu0 0
    %341 = vmatprep.mubr.bf16.mxu0 0
    %342 = vmatmul.mubr.bf16.gmra.mrb[0].mxu0 %v106
    %v343 = vpop.f32.mrb[0].mxu0
    %v344 = vadd.f32 %v295, %v343
    %v345 = vpop.f32.mrb[0].mxu0
    %v346 = vpop.f32.mrb[0].mxu0
    %v347 = vadd.f32 %v298, %v346
    %v348 = vpop.f32.mrb[0].mxu0
    %349 = vmatprep.mubr.bf16.mxu0 0
    %350 = vmatmul.mubr.bf16.gmra.mrb[0].mxu0 %v109
    %v351 = vpop.f32.mrb[0].mxu0
    %v352 = vadd.f32 %v303, %v351
    %v353 = vpop.f32.mrb[0].mxu0
    %v354 = vpop.f32.mrb[0].mxu0
    %v355 = vadd.f32 %v306, %v354
    %v356 = vpop.f32.mrb[0].mxu0
    %357 = vdwg.mxu0
    %v358 = vadd.f32 %v32, %v344
    %v359 = vadd.f32 %v33, %v347
    %v360 = vadd.f32 %v34, %v352
    %v361 = vadd.f32 %v35, %v355
    %362 = vst [vmem:[#allocation2] sm:$0xff] %v358
    %363 = vst [vmem:[#allocation2 + $0x8] sm:$0xff] %v359
    %364 = vst [vmem:[#allocation2 + $0x10] sm:$0xff] %v360
    %365 = vst [vmem:[#allocation2 + $0x18] sm:$0xff] %v361
    // Predicated region
    $region18: #{pyramid_features_forward.9} parent=1 // pred_check
      %p366 = pneg %p16
    $region19: #{pyramid_features_forward.9} parent=1 // pred_check_branch
      %368 = sbr.rel (%p366) target = $region21
    $region20: #{pyramid_features_forward.9} parent=1 // pred_region
      %v369 = vld [vmem:[#allocation2] sm:$0xff]
      %v370 = vld [vmem:[#allocation2 + $0x8] sm:$0xff]
      %v371 = vld [vmem:[#allocation2 + $0x10] sm:$0xff]
      %v372 = vld [vmem:[#allocation2 + $0x18] sm:$0xff]
      %v373 = vld [vmem:[%s2] sm:$0x1]
      %v375 = vlaneseq
      %v376 = vshrl.u32 %v375, 7
      %v377 = vsub.s32 0, %v376
      %v378 = vrot.slane %v373, %v377
      %v380 = vadd.f32 %v369, %v378
      %v381 = vadd.f32 %v370, %v378
      %v382 = vadd.f32 %v371, %v378
      %v383 = vadd.f32 %v372, %v378
      %384 = vst [vmem:[#allocation3] sm:$0xff] %v380
      %385 = vst [vmem:[#allocation3 + $0x8] sm:$0xff] %v381
      %386 = vst [vmem:[#allocation3 + $0x10] sm:$0xff] %v382
      %387 = vst [vmem:[#allocation3 + $0x18] sm:$0xff] %v383
    $region21: #{pyramid_features_forward.9} parent=1 // pred_fallthru
      _
    // Predicated region
    $region22: #{pyramid_features_forward.9} parent=1 // pred_check
      _
    $region23: #{pyramid_features_forward.9} parent=1 // pred_check_branch
      %389 = sbr.rel (0) target = $region25
    $region24: #{pyramid_features_forward.9} parent=1 // pred_region
      %s391 = ssub.s32 512, 512
      %392 = vsyncadd [#allocation4], %s391
      %s393 = sshll.u32 [#allocation3], 4
      %s394 = int_to_ptr.vmem [resolvable:$true] %s393
      %399 = dma.vmem_to_hbm [thread:$0]  %s394, 512, %s3, [#allocation4], 128, 128, 8
    $region25: #{pyramid_features_forward.9} parent=1 // pred_fallthru
      _
    // Predicated region
    $region26: #{pyramid_features_forward.9} parent=1 // pred_check
      _
    $region27: #{pyramid_features_forward.9} parent=1 // pred_check_branch
      %401 = sbr.rel (0) target = $region29
    $region28: #{pyramid_features_forward.9} parent=1 // pred_region
      %402 = dma.done [#allocation4], 512
    $region29: #{pyramid_features_forward.9} parent=1 // pred_fallthru
      _
    %403 = vsyncpa [#allocation4], 1

</llo_original>
